<compile_context>
chip_gen: v5e
topology: v5e:2x2
jax: 0.10.0
libtpu: 0.0.40
codegen_flags: <defaults>
</compile_context>

<pallas_src>
import functools
import math

import jax
import jax.numpy as jnp
from jax.experimental import pallas as pl
from jax.experimental.pallas import tpu as pltpu

LN_EPS = 1e-12   # HF BertLayerNorm eps
BN_EPS = 1e-5    # nn.BatchNorm1d eps
_SQRT1_2 = 0.7071067811865476


# ----------------------------- in-kernel helpers ----------------------------

def _layer_norm(x, g, b):
    """LayerNorm over last dim; x (R, H) f32, g/b (1, H) f32."""
    mu = jnp.mean(x, axis=-1, keepdims=True)
    xc = x - mu
    var = jnp.mean(xc * xc, axis=-1, keepdims=True)
    return xc * jax.lax.rsqrt(var + LN_EPS) * g + b


def _erf(z):
    # Abramowitz & Stegun 7.1.26 rational approximation, |err| <= 1.5e-7.
    # (jax.lax.erf lowering inside Mosaic is not guaranteed; exp is EUP-cheap.)
    t = 1.0 / (1.0 + 0.3275911 * jnp.abs(z))
    poly = t * (0.254829592 + t * (-0.284496736 + t * (1.421413741 +
               t * (-1.453152027 + t * 1.061405429))))
    e = 1.0 - poly * jnp.exp(-z * z)
    return jnp.where(z >= 0, e, -e)


def _gelu(x):
    return 0.5 * x * (1.0 + _erf(x * _SQRT1_2))


def _conv_same_relu(x, w, b, *, K, L):
    """'same' Conv1d + ReLU.  x (L, Cin) f32, w (K, Cin, Cout) bf16, b (1, Cout).

    Zero padding is implicit: tap k is a 0/1 shift-matrix matmul, so rows that
    would read outside [0, L) contribute 0, exactly like PyTorch's zero pad."""
    pad = (K - 1) // 2
    Cout = w.shape[-1]
    bf = jnp.bfloat16
    row = jax.lax.broadcasted_iota(jnp.int32, (L, L), 0)
    col = jax.lax.broadcasted_iota(jnp.int32, (L, L), 1)
    xb = x.astype(bf)
    acc = jnp.zeros((L, Cout), jnp.float32)
    for k in range(K):                      # static, unrolled taps
        d = k - pad
        if d == 0:
            tap = xb
        else:
            sel = jnp.where(col - row == d, 1.0, 0.0).astype(bf)   # sel[l,m]=1 iff m=l+d
            tap = jnp.dot(sel, xb, preferred_element_type=jnp.float32).astype(bf)
        acc = acc + jnp.dot(tap, w[k], preferred_element_type=jnp.float32)
    return jnp.maximum(acc + b, 0.0)


# -------------------- kernel 1: BN + convs + embeddings ---------------------

def _preprocess_kernel(x_ref, bns_ref, bnb_ref, w1_ref, b1_ref, w2_ref, b2_ref,
                       w3_ref, b3_ref, cls_ref, pos_ref, tok_ref, g_ref, be_ref,
                       o_ref, *, L):
    # TODO(synk): training-only gaussian noise + dropout are identity in eval mode.
    x = x_ref[0]                                        # (L, Cin) f32
    xn = x * bns_ref[...] + bnb_ref[...]                # BatchNorm1d (eval, running stats)
    h = _conv_same_relu(xn, w1_ref[...], b1_ref[...], K=3, L=L)
    h = _conv_same_relu(h, w2_ref[...], b2_ref[...], K=5, L=L)
    h = _conv_same_relu(h, w3_ref[...], b3_ref[...], K=7, L=L)   # (L, H)

    # BertEmbeddings with inputs_embeds: + position + token_type(0), LayerNorm.
    tok = tok_ref[...]                                  # (1, H)
    e_main = h + pos_ref[0:L, :] + tok                  # conv tokens 0..L-1
    e_cls = cls_ref[...] + pos_ref[L:L + 1, :] + tok    # appended [CLS] token
    g = g_ref[...]
    be = be_ref[...]
    o_ref[:, 0:L, :] = _layer_norm(e_main, g, be)[None].astype(o_ref.dtype)
    o_ref[:, L:L + 1, :] = _layer_norm(e_cls, g, be)[None].astype(o_ref.dtype)


def _preprocess_call(x, p, S):
    B, L, Cin = x.shape
    H = p["cls"].shape[-1]
    pos_s = p["pos_emb"][:S]                            # (S, H)

    def full(a):                                        # whole array, constant index
        return pl.BlockSpec(a.shape, lambda b, nd=a.ndim: (0,) * nd)

    in_specs = [
        pl.BlockSpec((1, L, Cin), lambda b: (b, 0, 0)),
        full(p["bn_scale"]), full(p["bn_shift"]),
        full(p["conv1_w"]), full(p["conv1_b"]),
        full(p["conv2_w"]), full(p["conv2_b"]),
        full(p["conv3_w"]), full(p["conv3_b"]),
        full(p["cls"]), full(pos_s), full(p["tok0"]),
        full(p["emb_ln_g"]), full(p["emb_ln_b"]),
    ]
    return pl.pallas_call(
        functools.partial(_preprocess_kernel, L=L),
        out_shape=jax.ShapeDtypeStruct((B, S, H), jnp.float32),
        grid=(B,),
        in_specs=in_specs,
        out_specs=pl.BlockSpec((1, S, H), lambda b: (b, 0, 0)),
        compiler_params=pltpu.CompilerParams(dimension_semantics=("parallel",)),
    )(x, p["bn_scale"], p["bn_shift"], p["conv1_w"], p["conv1_b"],
      p["conv2_w"], p["conv2_b"], p["conv3_w"], p["conv3_b"],
      p["cls"], pos_s, p["tok0"], p["emb_ln_g"], p["emb_ln_b"])


# ------------- kernel 2: full transformer encoder + classifier --------------

def _encoder_kernel(x_ref, wqkv_ref, bqkv_ref, wo_ref, bo_ref, ln1g_ref, ln1b_ref,
                    wi_ref, bi_ref, wo2_ref, bo2_ref, ln2g_ref, ln2b_ref,
                    wcls_ref, bcls_ref, o_ref, h_ref, *, n_heads):
    l = pl.program_id(0)
    last = pl.num_programs(0) - 1
    B, S, H = h_ref.shape
    Dh = H // n_heads
    scale = 1.0 / math.sqrt(Dh)
    bf = jnp.bfloat16

    @pl.when(l == 0)
    def _():
        h_ref[...] = x_ref[...]          # embeddings become the resident carry

    wqkv = wqkv_ref[0]                   # (H, 3H) bf16
    bqkv = bqkv_ref[0]                   # (1, 3H) f32
    wo = wo_ref[0]
    bo = bo_ref[0]
    g1 = ln1g_ref[0]
    b1 = ln1b_ref[0]
    wi = wi_ref[0]
    bi = bi_ref[0]
    wo2 = wo2_ref[0]
    bo2 = bo2_ref[0]
    g2 = ln2g_ref[0]
    b2 = ln2b_ref[0]

    for b in range(B):                                  # static, B small
        hb = h_ref[b]                                   # (S, H) f32
        # fused QKV projection
        qkv = jnp.dot(hb.astype(bf), wqkv,
                      preferred_element_type=jnp.float32) + bqkv    # (S, 3H)
        # multi-head self-attention (all heads in this invocation); the output
        # projection is folded into the per-head accumulation via wo row slices.
        attn = jnp.zeros((S, H), jnp.float32)
        for hd in range(n_heads):
            o0 = hd * Dh
            qs = qkv[:, o0:o0 + Dh]
            ks = qkv[:, H + o0:H + o0 + Dh]
            vs = qkv[:, 2 * H + o0:2 * H + o0 + Dh]
            s = jax.lax.dot_general(qs, ks, (((1,), (1,)), ((), ())),
                                    preferred_element_type=jnp.float32) * scale
            s = s - jnp.max(s, axis=-1, keepdims=True)
            pexp = jnp.exp(s)
            pexp = pexp * pl.reciprocal(jnp.sum(pexp, axis=-1, keepdims=True),
                                        approx=True)
            ctx = jnp.dot(pexp, vs, preferred_element_type=jnp.float32)   # (S, Dh)
            attn = attn + jnp.dot(ctx.astype(bf), wo[o0:o0 + Dh, :],
                                  preferred_element_type=jnp.float32)
        attn = attn + bo
        h1 = _layer_norm(attn + hb, g1, b1)
        # FFN with fused GELU
        inter = _gelu(jnp.dot(h1.astype(bf), wi,
                              preferred_element_type=jnp.float32) + bi)   # (S, I)
        ffn = jnp.dot(inter.astype(bf), wo2,
                      preferred_element_type=jnp.float32) + bo2
        h2 = _layer_norm(ffn + h1, g2, b2)
        h_ref[b] = h2

        # fused classifier head on the last token ([CLS] appended at the end)
        @pl.when(l == last)
        def _():
            cls_row = h2[S - 1:S, :]                                     # (1, H)
            logits = jnp.dot(cls_row.astype(bf), wcls_ref[...],
                             preferred_element_type=jnp.float32) + bcls_ref[...]
            o_ref[b] = logits.astype(o_ref.dtype)


def _encoder_call(emb, p, n_heads):
    B, S, H = emb.shape
    nl = p["wqkv"].shape[0]
    NL = p["cls_b"].shape[-1]

    def lyr(a):          # per-layer stacked weight: pick block l each grid step
        return pl.BlockSpec((1,) + a.shape[1:],
                            lambda l, nd=a.ndim: (l,) + (0,) * (nd - 1))

    def const(a):        # whole array resident, constant block index
        return pl.BlockSpec(a.shape, lambda l, nd=a.ndim: (0,) * nd)

    in_specs = [
        const(emb),
        lyr(p["wqkv"]), lyr(p["bqkv"]),
        lyr(p["wo"]), lyr(p["bo"]),
        lyr(p["ln1_g"]), lyr(p["ln1_b"]),
        lyr(p["wi"]), lyr(p["bi"]),
        lyr(p["wo2"]), lyr(p["bo2"]),
        lyr(p["ln2_g"]), lyr(p["ln2_b"]),
        const(p["cls_w"]), const(p["cls_b"]),
    ]
    return pl.pallas_call(
        functools.partial(_encoder_kernel, n_heads=n_heads),
        out_shape=jax.ShapeDtypeStruct((B, 1, NL), jnp.float32),
        grid=(nl,),
        in_specs=in_specs,
        out_specs=pl.BlockSpec((B, 1, NL), lambda l: (0, 0, 0)),
        scratch_shapes=[pltpu.VMEM((B, S, H), jnp.float32)],
        compiler_params=pltpu.CompilerParams(dimension_semantics=("arbitrary",)),
    )(emb, p["wqkv"], p["bqkv"], p["wo"], p["bo"], p["ln1_g"], p["ln1_b"],
      p["wi"], p["bi"], p["wo2"], p["bo2"], p["ln2_g"], p["ln2_b"],
      p["cls_w"], p["cls_b"])


# ------------------------------- model glue ---------------------------------

def bert_forward(x, p, n_heads):
    # x: (B, L, input_size)
    B, L, _ = x.shape
    S = L + 1                                   # conv tokens + appended [CLS]
    emb = _preprocess_call(x, p, S)             # (B, S, H)
    logits = _encoder_call(emb, p, n_heads)     # (B, 1, num_labels)
    return logits.reshape(B, -1)


def prepare_params(params):
    """One-time packing: fold BN affine, merge QKV, stack layers, bf16 weights."""
    bf = jnp.bfloat16
    bn = params["bn"]
    inv = jax.lax.rsqrt(bn["var"] + BN_EPS)
    scale = bn["weight"] * inv
    shift = bn["bias"] - bn["mean"] * scale
    layers = params["layers"]

    def stk(fn):
        return jnp.stack([fn(lp) for lp in layers])

    return dict(
        bn_scale=scale.reshape(1, -1).astype(jnp.float32),
        bn_shift=shift.reshape(1, -1).astype(jnp.float32),
        conv1_w=params["conv1"]["w"].astype(bf),
        conv1_b=params["conv1"]["b"].reshape(1, -1),
        conv2_w=params["conv2"]["w"].astype(bf),
        conv2_b=params["conv2"]["b"].reshape(1, -1),
        conv3_w=params["conv3"]["w"].astype(bf),
        conv3_b=params["conv3"]["b"].reshape(1, -1),
        cls=params["cls"].reshape(1, -1),
        pos_emb=params["pos_emb"],
        tok0=params["tok_emb"][0].reshape(1, -1),
        emb_ln_g=params["emb_ln_g"].reshape(1, -1),
        emb_ln_b=params["emb_ln_b"].reshape(1, -1),
        wqkv=stk(lambda lp: jnp.concatenate([lp["wq"], lp["wk"], lp["wv"]],
                                            axis=1)).astype(bf),
        bqkv=stk(lambda lp: jnp.concatenate([lp["bq"], lp["bk"], lp["bv"]])[None, :]),
        wo=stk(lambda lp: lp["wo"]).astype(bf),
        bo=stk(lambda lp: lp["bo"][None, :]),
        ln1_g=stk(lambda lp: lp["ln1_g"][None, :]),
        ln1_b=stk(lambda lp: lp["ln1_b"][None, :]),
        wi=stk(lambda lp: lp["wi"]).astype(bf),
        bi=stk(lambda lp: lp["bi"][None, :]),
        wo2=stk(lambda lp: lp["wo2"]).astype(bf),
        bo2=stk(lambda lp: lp["bo2"][None, :]),
        ln2_g=stk(lambda lp: lp["ln2_g"][None, :]),
        ln2_b=stk(lambda lp: lp["ln2_b"][None, :]),
        cls_w=params["cls_w"].astype(bf),
        cls_b=params["cls_b"].reshape(1, -1),
    )


def init_params(key, input_size, hidden, num_labels, n_heads, n_layers, n_inter,
                max_pos=300):
    keys = iter(jax.random.split(key, 64))

    def nrm(shape, s=0.02):
        return (jax.random.normal(next(keys), shape) * s).astype(jnp.float32)

    c1 = int(hidden * 1 / 3)      # 21 for hidden=64
    c2 = int(hidden * 2 / 3)      # 42 for hidden=64
    inter = hidden * n_inter
    layers = []
    for _ in range(n_layers):
        layers.append(dict(
            wq=nrm((hidden, hidden)), bq=jnp.zeros((hidden,), jnp.float32),
            wk=nrm((hidden, hidden)), bk=jnp.zeros((hidden,), jnp.float32),
            wv=nrm((hidden, hidden)), bv=jnp.zeros((hidden,), jnp.float32),
            wo=nrm((hidden, hidden)), bo=jnp.zeros((hidden,), jnp.float32),
            ln1_g=jnp.ones((hidden,), jnp.float32),
            ln1_b=jnp.zeros((hidden,), jnp.float32),
            wi=nrm((hidden, inter)), bi=jnp.zeros((inter,), jnp.float32),
            wo2=nrm((inter, hidden)), bo2=jnp.zeros((hidden,), jnp.float32),
            ln2_g=jnp.ones((hidden,), jnp.float32),
            ln2_b=jnp.zeros((hidden,), jnp.float32),
        ))
    return dict(
        bn=dict(weight=jnp.ones((input_size,), jnp.float32),
                bias=jnp.zeros((input_size,), jnp.float32),
                mean=jnp.zeros((input_size,), jnp.float32),
                var=jnp.ones((input_size,), jnp.float32)),
        conv1=dict(w=nrm((3, input_size, c1), 0.1), b=nrm((c1,), 0.02)),
        conv2=dict(w=nrm((5, c1, c2), 0.1), b=nrm((c2,), 0.02)),
        conv3=dict(w=nrm((7, c2, hidden), 0.1), b=nrm((hidden,), 0.02)),
        cls=nrm((hidden,), 1.0),
        pos_emb=nrm((max_pos, hidden)),
        tok_emb=nrm((2, hidden)),
        emb_ln_g=jnp.ones((hidden,), jnp.float32),
        emb_ln_b=jnp.zeros((hidden,), jnp.float32),
        layers=layers,
        cls_w=nrm((hidden, num_labels)),
        cls_b=jnp.zeros((num_labels,), jnp.float32),
    )


if __name__ == "__main__":
    input_size = 1
    hidden_size = 64
    num_labels = 3
    n_heads = 4
    n_layers = 2
    n_inter = 4
    B, L = 2, 8

    raw = init_params(jax.random.PRNGKey(42), input_size, hidden_size,
                      num_labels, n_heads, n_layers, n_inter)
    prep = prepare_params(raw)
    x = jax.random.normal(jax.random.PRNGKey(0), (B, L, input_size),
                          dtype=jnp.float32)

    fwd = jax.jit(lambda xx, pp: bert_forward(xx, pp, n_heads))
    logits = fwd(x, prep)
    jax.block_until_ready(logits)
    assert logits.shape == (B, num_labels) and logits.dtype == jnp.float32
    print("KERNEL_OK")
</pallas_src>

<mosaic_0001>
module attributes {stable_mosaic.version = 11 : i64} {
  func.func @_preprocess_kernel(%arg0: i32, %arg1: memref<1x8x1xf32, #tpu.memory_space<vmem>>, %arg2: memref<1x1xf32, #tpu.memory_space<vmem>>, %arg3: memref<1x1xf32, #tpu.memory_space<vmem>>, %arg4: memref<3x1x21xbf16, #tpu.memory_space<vmem>>, %arg5: memref<1x21xf32, #tpu.memory_space<vmem>>, %arg6: memref<5x21x42xbf16, #tpu.memory_space<vmem>>, %arg7: memref<1x42xf32, #tpu.memory_space<vmem>>, %arg8: memref<7x42x64xbf16, #tpu.memory_space<vmem>>, %arg9: memref<1x64xf32, #tpu.memory_space<vmem>>, %arg10: memref<1x64xf32, #tpu.memory_space<vmem>>, %arg11: memref<9x64xf32, #tpu.memory_space<vmem>>, %arg12: memref<1x64xf32, #tpu.memory_space<vmem>>, %arg13: memref<1x64xf32, #tpu.memory_space<vmem>>, %arg14: memref<1x64xf32, #tpu.memory_space<vmem>>, %arg15: memref<1x9x64xf32, #tpu.memory_space<vmem>>) attributes {dimension_semantics = [#tpu.dimension_semantics<parallel>], iteration_bounds = array<i64: 2>, scalar_prefetch = 0 : i64, scratch_operands = 0 : i64, tpu.core_type = #tpu.core_type<tc>, window_params = [{transform_indices = @transform_0, window_bounds = array<i64: 1, 8, 1>}, {pipeline_mode = #tpu.pipeline_mode<synchronous>, transform_indices = @transform_1, window_bounds = array<i64: 1, 1>}, {pipeline_mode = #tpu.pipeline_mode<synchronous>, transform_indices = @transform_2, window_bounds = array<i64: 1, 1>}, {pipeline_mode = #tpu.pipeline_mode<synchronous>, transform_indices = @transform_3, window_bounds = array<i64: 3, 1, 21>}, {pipeline_mode = #tpu.pipeline_mode<synchronous>, transform_indices = @transform_4, window_bounds = array<i64: 1, 21>}, {pipeline_mode = #tpu.pipeline_mode<synchronous>, transform_indices = @transform_5, window_bounds = array<i64: 5, 21, 42>}, {pipeline_mode = #tpu.pipeline_mode<synchronous>, transform_indices = @transform_6, window_bounds = array<i64: 1, 42>}, {pipeline_mode = #tpu.pipeline_mode<synchronous>, transform_indices = @transform_7, window_bounds = array<i64: 7, 42, 64>}, {pipeline_mode = #tpu.pipeline_mode<synchronous>, transform_indices = @transform_8, window_bounds = array<i64: 1, 64>}, {pipeline_mode = #tpu.pipeline_mode<synchronous>, transform_indices = @transform_9, window_bounds = array<i64: 1, 64>}, {pipeline_mode = #tpu.pipeline_mode<synchronous>, transform_indices = @transform_10, window_bounds = array<i64: 9, 64>}, {pipeline_mode = #tpu.pipeline_mode<synchronous>, transform_indices = @transform_11, window_bounds = array<i64: 1, 64>}, {pipeline_mode = #tpu.pipeline_mode<synchronous>, transform_indices = @transform_12, window_bounds = array<i64: 1, 64>}, {pipeline_mode = #tpu.pipeline_mode<synchronous>, transform_indices = @transform_13, window_bounds = array<i64: 1, 64>}, {transform_indices = @transform_14, window_bounds = array<i64: 1, 9, 64>}]} {
    %c0 = arith.constant 0 : index
    %c0_0 = arith.constant 0 : index
    %c0_1 = arith.constant 0 : index
    %0 = vector.load %arg1[%c0, %c0_0, %c0_1] : memref<1x8x1xf32, #tpu.memory_space<vmem>>, vector<1x8x1xf32>
    %1 = vector.shape_cast %0 : vector<1x8x1xf32> to vector<8x1xf32>
    %c0_2 = arith.constant 0 : index
    %c0_3 = arith.constant 0 : index
    %2 = vector.load %arg2[%c0_2, %c0_3] : memref<1x1xf32, #tpu.memory_space<vmem>>, vector<1x1xf32>
    %3 = vector.broadcast %2 : vector<1x1xf32> to vector<8x1xf32>
    %4 = arith.mulf %1, %3 : vector<8x1xf32>
    %c0_4 = arith.constant 0 : index
    %c0_5 = arith.constant 0 : index
    %5 = vector.load %arg3[%c0_4, %c0_5] : memref<1x1xf32, #tpu.memory_space<vmem>>, vector<1x1xf32>
    %6 = vector.broadcast %5 : vector<1x1xf32> to vector<8x1xf32>
    %7 = arith.addf %4, %6 : vector<8x1xf32>
    %c0_6 = arith.constant 0 : index
    %c0_7 = arith.constant 0 : index
    %c0_8 = arith.constant 0 : index
    %8 = vector.load %arg4[%c0_6, %c0_7, %c0_8] : memref<3x1x21xbf16, #tpu.memory_space<vmem>>, vector<3x1x21xbf16>
    %c0_9 = arith.constant 0 : index
    %c0_10 = arith.constant 0 : index
    %9 = vector.load %arg5[%c0_9, %c0_10] : memref<1x21xf32, #tpu.memory_space<vmem>>, vector<1x21xf32>
    %10 = tpu.iota {dimensions = array<i32: 0>} : vector<8x8xi32>
    %11 = tpu.iota {dimensions = array<i32: 1>} : vector<8x8xi32>
    %12 = arith.truncf %7 : vector<8x1xf32> to vector<8x1xbf16>
    %cst = arith.constant 0.000000e+00 : f32
    %13 = vector.broadcast %cst : f32 to vector<8x21xf32>
    %14 = arith.subi %11, %10 : vector<8x8xi32>
    %c-1_i32 = arith.constant -1 : i32
    %15 = vector.broadcast %c-1_i32 : i32 to vector<8x8xi32>
    %16 = arith.cmpi eq, %14, %15 : vector<8x8xi32>
    %cst_11 = arith.constant 1.000000e+00 : f32
    %cst_12 = arith.constant 0.000000e+00 : f32
    %17 = vector.broadcast %cst_11 : f32 to vector<8x8xf32>
    %18 = vector.broadcast %cst_12 : f32 to vector<8x8xf32>
    %19 = arith.select %16, %17, %18 : vector<8x8xi1>, vector<8x8xf32>
    %20 = arith.truncf %19 : vector<8x8xf32> to vector<8x8xbf16>
    %cst_13 = arith.constant dense<0.000000e+00> : vector<8x1xf32>
    %21 = tpu.matmul %20, %12, %cst_13 {dimension_numbers = #tpu.dot_dimension_numbers<[1], [0], [0], [1], [0, 0, 1, 1], [], []>} : vector<8x8xbf16>, vector<8x1xbf16>, vector<8x1xf32> -> vector<8x1xf32>
    %22 = arith.truncf %21 : vector<8x1xf32> to vector<8x1xbf16>
    %23 = vector.extract_strided_slice %8 {offsets = [0, 0, 0], sizes = [1, 1, 21], strides = [1, 1, 1]} : vector<3x1x21xbf16> to vector<1x1x21xbf16>
    %24 = vector.shape_cast %23 : vector<1x1x21xbf16> to vector<1x21xbf16>
    %cst_14 = arith.constant dense<0.000000e+00> : vector<8x21xf32>
    %25 = tpu.matmul %22, %24, %cst_14 {dimension_numbers = #tpu.dot_dimension_numbers<[1], [0], [0], [1], [0, 0, 1, 1], [], []>} : vector<8x1xbf16>, vector<1x21xbf16>, vector<8x21xf32> -> vector<8x21xf32>
    %26 = arith.addf %13, %25 : vector<8x21xf32>
    %27 = vector.extract_strided_slice %8 {offsets = [1, 0, 0], sizes = [1, 1, 21], strides = [1, 1, 1]} : vector<3x1x21xbf16> to vector<1x1x21xbf16>
    %28 = vector.shape_cast %27 : vector<1x1x21xbf16> to vector<1x21xbf16>
    %cst_15 = arith.constant dense<0.000000e+00> : vector<8x21xf32>
    %29 = tpu.matmul %12, %28, %cst_15 {dimension_numbers = #tpu.dot_dimension_numbers<[1], [0], [0], [1], [0, 0, 1, 1], [], []>} : vector<8x1xbf16>, vector<1x21xbf16>, vector<8x21xf32> -> vector<8x21xf32>
    %30 = arith.addf %26, %29 : vector<8x21xf32>
    %31 = arith.subi %11, %10 : vector<8x8xi32>
    %c1_i32 = arith.constant 1 : i32
    %32 = vector.broadcast %c1_i32 : i32 to vector<8x8xi32>
    %33 = arith.cmpi eq, %31, %32 : vector<8x8xi32>
    %cst_16 = arith.constant 1.000000e+00 : f32
    %cst_17 = arith.constant 0.000000e+00 : f32
    %34 = vector.broadcast %cst_16 : f32 to vector<8x8xf32>
    %35 = vector.broadcast %cst_17 : f32 to vector<8x8xf32>
    %36 = arith.select %33, %34, %35 : vector<8x8xi1>, vector<8x8xf32>
    %37 = arith.truncf %36 : vector<8x8xf32> to vector<8x8xbf16>
    %cst_18 = arith.constant dense<0.000000e+00> : vector<8x1xf32>
    %38 = tpu.matmul %37, %12, %cst_18 {dimension_numbers = #tpu.dot_dimension_numbers<[1], [0], [0], [1], [0, 0, 1, 1], [], []>} : vector<8x8xbf16>, vector<8x1xbf16>, vector<8x1xf32> -> vector<8x1xf32>
    %39 = arith.truncf %38 : vector<8x1xf32> to vector<8x1xbf16>
    %40 = vector.extract_strided_slice %8 {offsets = [2, 0, 0], sizes = [1, 1, 21], strides = [1, 1, 1]} : vector<3x1x21xbf16> to vector<1x1x21xbf16>
    %41 = vector.shape_cast %40 : vector<1x1x21xbf16> to vector<1x21xbf16>
    %cst_19 = arith.constant dense<0.000000e+00> : vector<8x21xf32>
    %42 = tpu.matmul %39, %41, %cst_19 {dimension_numbers = #tpu.dot_dimension_numbers<[1], [0], [0], [1], [0, 0, 1, 1], [], []>} : vector<8x1xbf16>, vector<1x21xbf16>, vector<8x21xf32> -> vector<8x21xf32>
    %43 = arith.addf %30, %42 : vector<8x21xf32>
    %44 = vector.broadcast %9 : vector<1x21xf32> to vector<8x21xf32>
    %45 = arith.addf %43, %44 : vector<8x21xf32>
    %cst_20 = arith.constant 0.000000e+00 : f32
    %46 = vector.broadcast %cst_20 : f32 to vector<8x21xf32>
    %47 = arith.maximumf %45, %46 : vector<8x21xf32>
    %c0_21 = arith.constant 0 : index
    %c0_22 = arith.constant 0 : index
    %c0_23 = arith.constant 0 : index
    %48 = vector.load %arg6[%c0_21, %c0_22, %c0_23] : memref<5x21x42xbf16, #tpu.memory_space<vmem>>, vector<5x21x42xbf16>
    %c0_24 = arith.constant 0 : index
    %c0_25 = arith.constant 0 : index
    %49 = vector.load %arg7[%c0_24, %c0_25] : memref<1x42xf32, #tpu.memory_space<vmem>>, vector<1x42xf32>
    %50 = tpu.iota {dimensions = array<i32: 0>} : vector<8x8xi32>
    %51 = tpu.iota {dimensions = array<i32: 1>} : vector<8x8xi32>
    %52 = arith.truncf %47 : vector<8x21xf32> to vector<8x21xbf16>
    %cst_26 = arith.constant 0.000000e+00 : f32
    %53 = vector.broadcast %cst_26 : f32 to vector<8x42xf32>
    %54 = arith.subi %51, %50 : vector<8x8xi32>
    %c-2_i32 = arith.constant -2 : i32
    %55 = vector.broadcast %c-2_i32 : i32 to vector<8x8xi32>
    %56 = arith.cmpi eq, %54, %55 : vector<8x8xi32>
    %cst_27 = arith.constant 1.000000e+00 : f32
    %cst_28 = arith.constant 0.000000e+00 : f32
    %57 = vector.broadcast %cst_27 : f32 to vector<8x8xf32>
    %58 = vector.broadcast %cst_28 : f32 to vector<8x8xf32>
    %59 = arith.select %56, %57, %58 : vector<8x8xi1>, vector<8x8xf32>
    %60 = arith.truncf %59 : vector<8x8xf32> to vector<8x8xbf16>
    %cst_29 = arith.constant dense<0.000000e+00> : vector<8x21xf32>
    %61 = tpu.matmul %60, %52, %cst_29 {dimension_numbers = #tpu.dot_dimension_numbers<[1], [0], [0], [1], [0, 0, 1, 1], [], []>} : vector<8x8xbf16>, vector<8x21xbf16>, vector<8x21xf32> -> vector<8x21xf32>
    %62 = arith.truncf %61 : vector<8x21xf32> to vector<8x21xbf16>
    %63 = vector.extract_strided_slice %48 {offsets = [0, 0, 0], sizes = [1, 21, 42], strides = [1, 1, 1]} : vector<5x21x42xbf16> to vector<1x21x42xbf16>
    %64 = vector.shape_cast %63 : vector<1x21x42xbf16> to vector<21x42xbf16>
    %cst_30 = arith.constant dense<0.000000e+00> : vector<8x42xf32>
    %65 = tpu.matmul %62, %64, %cst_30 {dimension_numbers = #tpu.dot_dimension_numbers<[1], [0], [0], [1], [0, 0, 1, 1], [], []>} : vector<8x21xbf16>, vector<21x42xbf16>, vector<8x42xf32> -> vector<8x42xf32>
    %66 = arith.addf %53, %65 : vector<8x42xf32>
    %67 = arith.subi %51, %50 : vector<8x8xi32>
    %c-1_i32_31 = arith.constant -1 : i32
    %68 = vector.broadcast %c-1_i32_31 : i32 to vector<8x8xi32>
    %69 = arith.cmpi eq, %67, %68 : vector<8x8xi32>
    %cst_32 = arith.constant 1.000000e+00 : f32
    %cst_33 = arith.constant 0.000000e+00 : f32
    %70 = vector.broadcast %cst_32 : f32 to vector<8x8xf32>
    %71 = vector.broadcast %cst_33 : f32 to vector<8x8xf32>
    %72 = arith.select %69, %70, %71 : vector<8x8xi1>, vector<8x8xf32>
    %73 = arith.truncf %72 : vector<8x8xf32> to vector<8x8xbf16>
    %cst_34 = arith.constant dense<0.000000e+00> : vector<8x21xf32>
    %74 = tpu.matmul %73, %52, %cst_34 {dimension_numbers = #tpu.dot_dimension_numbers<[1], [0], [0], [1], [0, 0, 1, 1], [], []>} : vector<8x8xbf16>, vector<8x21xbf16>, vector<8x21xf32> -> vector<8x21xf32>
    %75 = arith.truncf %74 : vector<8x21xf32> to vector<8x21xbf16>
    %76 = vector.extract_strided_slice %48 {offsets = [1, 0, 0], sizes = [1, 21, 42], strides = [1, 1, 1]} : vector<5x21x42xbf16> to vector<1x21x42xbf16>
    %77 = vector.shape_cast %76 : vector<1x21x42xbf16> to vector<21x42xbf16>
    %cst_35 = arith.constant dense<0.000000e+00> : vector<8x42xf32>
    %78 = tpu.matmul %75, %77, %cst_35 {dimension_numbers = #tpu.dot_dimension_numbers<[1], [0], [0], [1], [0, 0, 1, 1], [], []>} : vector<8x21xbf16>, vector<21x42xbf16>, vector<8x42xf32> -> vector<8x42xf32>
    %79 = arith.addf %66, %78 : vector<8x42xf32>
    %80 = vector.extract_strided_slice %48 {offsets = [2, 0, 0], sizes = [1, 21, 42], strides = [1, 1, 1]} : vector<5x21x42xbf16> to vector<1x21x42xbf16>
    %81 = vector.shape_cast %80 : vector<1x21x42xbf16> to vector<21x42xbf16>
    %cst_36 = arith.constant dense<0.000000e+00> : vector<8x42xf32>
    %82 = tpu.matmul %52, %81, %cst_36 {dimension_numbers = #tpu.dot_dimension_numbers<[1], [0], [0], [1], [0, 0, 1, 1], [], []>} : vector<8x21xbf16>, vector<21x42xbf16>, vector<8x42xf32> -> vector<8x42xf32>
    %83 = arith.addf %79, %82 : vector<8x42xf32>
    %84 = arith.subi %51, %50 : vector<8x8xi32>
    %c1_i32_37 = arith.constant 1 : i32
    %85 = vector.broadcast %c1_i32_37 : i32 to vector<8x8xi32>
    %86 = arith.cmpi eq, %84, %85 : vector<8x8xi32>
    %cst_38 = arith.constant 1.000000e+00 : f32
    %cst_39 = arith.constant 0.000000e+00 : f32
    %87 = vector.broadcast %cst_38 : f32 to vector<8x8xf32>
    %88 = vector.broadcast %cst_39 : f32 to vector<8x8xf32>
    %89 = arith.select %86, %87, %88 : vector<8x8xi1>, vector<8x8xf32>
    %90 = arith.truncf %89 : vector<8x8xf32> to vector<8x8xbf16>
    %cst_40 = arith.constant dense<0.000000e+00> : vector<8x21xf32>
    %91 = tpu.matmul %90, %52, %cst_40 {dimension_numbers = #tpu.dot_dimension_numbers<[1], [0], [0], [1], [0, 0, 1, 1], [], []>} : vector<8x8xbf16>, vector<8x21xbf16>, vector<8x21xf32> -> vector<8x21xf32>
    %92 = arith.truncf %91 : vector<8x21xf32> to vector<8x21xbf16>
    %93 = vector.extract_strided_slice %48 {offsets = [3, 0, 0], sizes = [1, 21, 42], strides = [1, 1, 1]} : vector<5x21x42xbf16> to vector<1x21x42xbf16>
    %94 = vector.shape_cast %93 : vector<1x21x42xbf16> to vector<21x42xbf16>
    %cst_41 = arith.constant dense<0.000000e+00> : vector<8x42xf32>
    %95 = tpu.matmul %92, %94, %cst_41 {dimension_numbers = #tpu.dot_dimension_numbers<[1], [0], [0], [1], [0, 0, 1, 1], [], []>} : vector<8x21xbf16>, vector<21x42xbf16>, vector<8x42xf32> -> vector<8x42xf32>
    %96 = arith.addf %83, %95 : vector<8x42xf32>
    %97 = arith.subi %51, %50 : vector<8x8xi32>
    %c2_i32 = arith.constant 2 : i32
    %98 = vector.broadcast %c2_i32 : i32 to vector<8x8xi32>
    %99 = arith.cmpi eq, %97, %98 : vector<8x8xi32>
    %cst_42 = arith.constant 1.000000e+00 : f32
    %cst_43 = arith.constant 0.000000e+00 : f32
    %100 = vector.broadcast %cst_42 : f32 to vector<8x8xf32>
    %101 = vector.broadcast %cst_43 : f32 to vector<8x8xf32>
    %102 = arith.select %99, %100, %101 : vector<8x8xi1>, vector<8x8xf32>
    %103 = arith.truncf %102 : vector<8x8xf32> to vector<8x8xbf16>
    %cst_44 = arith.constant dense<0.000000e+00> : vector<8x21xf32>
    %104 = tpu.matmul %103, %52, %cst_44 {dimension_numbers = #tpu.dot_dimension_numbers<[1], [0], [0], [1], [0, 0, 1, 1], [], []>} : vector<8x8xbf16>, vector<8x21xbf16>, vector<8x21xf32> -> vector<8x21xf32>
    %105 = arith.truncf %104 : vector<8x21xf32> to vector<8x21xbf16>
    %106 = vector.extract_strided_slice %48 {offsets = [4, 0, 0], sizes = [1, 21, 42], strides = [1, 1, 1]} : vector<5x21x42xbf16> to vector<1x21x42xbf16>
    %107 = vector.shape_cast %106 : vector<1x21x42xbf16> to vector<21x42xbf16>
    %cst_45 = arith.constant dense<0.000000e+00> : vector<8x42xf32>
    %108 = tpu.matmul %105, %107, %cst_45 {dimension_numbers = #tpu.dot_dimension_numbers<[1], [0], [0], [1], [0, 0, 1, 1], [], []>} : vector<8x21xbf16>, vector<21x42xbf16>, vector<8x42xf32> -> vector<8x42xf32>
    %109 = arith.addf %96, %108 : vector<8x42xf32>
    %110 = vector.broadcast %49 : vector<1x42xf32> to vector<8x42xf32>
    %111 = arith.addf %109, %110 : vector<8x42xf32>
    %cst_46 = arith.constant 0.000000e+00 : f32
    %112 = vector.broadcast %cst_46 : f32 to vector<8x42xf32>
    %113 = arith.maximumf %111, %112 : vector<8x42xf32>
    %c0_47 = arith.constant 0 : index
    %c0_48 = arith.constant 0 : index
    %c0_49 = arith.constant 0 : index
    %114 = vector.load %arg8[%c0_47, %c0_48, %c0_49] : memref<7x42x64xbf16, #tpu.memory_space<vmem>>, vector<7x42x64xbf16>
    %c0_50 = arith.constant 0 : index
    %c0_51 = arith.constant 0 : index
    %115 = vector.load %arg9[%c0_50, %c0_51] : memref<1x64xf32, #tpu.memory_space<vmem>>, vector<1x64xf32>
    %116 = tpu.iota {dimensions = array<i32: 0>} : vector<8x8xi32>
    %117 = tpu.iota {dimensions = array<i32: 1>} : vector<8x8xi32>
    %118 = arith.truncf %113 : vector<8x42xf32> to vector<8x42xbf16>
    %cst_52 = arith.constant 0.000000e+00 : f32
    %119 = vector.broadcast %cst_52 : f32 to vector<8x64xf32>
    %120 = arith.subi %117, %116 : vector<8x8xi32>
    %c-3_i32 = arith.constant -3 : i32
    %121 = vector.broadcast %c-3_i32 : i32 to vector<8x8xi32>
    %122 = arith.cmpi eq, %120, %121 : vector<8x8xi32>
    %cst_53 = arith.constant 1.000000e+00 : f32
    %cst_54 = arith.constant 0.000000e+00 : f32
    %123 = vector.broadcast %cst_53 : f32 to vector<8x8xf32>
    %124 = vector.broadcast %cst_54 : f32 to vector<8x8xf32>
    %125 = arith.select %122, %123, %124 : vector<8x8xi1>, vector<8x8xf32>
    %126 = arith.truncf %125 : vector<8x8xf32> to vector<8x8xbf16>
    %cst_55 = arith.constant dense<0.000000e+00> : vector<8x42xf32>
    %127 = tpu.matmul %126, %118, %cst_55 {dimension_numbers = #tpu.dot_dimension_numbers<[1], [0], [0], [1], [0, 0, 1, 1], [], []>} : vector<8x8xbf16>, vector<8x42xbf16>, vector<8x42xf32> -> vector<8x42xf32>
    %128 = arith.truncf %127 : vector<8x42xf32> to vector<8x42xbf16>
    %129 = vector.extract_strided_slice %114 {offsets = [0, 0, 0], sizes = [1, 42, 64], strides = [1, 1, 1]} : vector<7x42x64xbf16> to vector<1x42x64xbf16>
    %130 = vector.shape_cast %129 : vector<1x42x64xbf16> to vector<42x64xbf16>
    %cst_56 = arith.constant dense<0.000000e+00> : vector<8x64xf32>
    %131 = tpu.matmul %128, %130, %cst_56 {dimension_numbers = #tpu.dot_dimension_numbers<[1], [0], [0], [1], [0, 0, 1, 1], [], []>} : vector<8x42xbf16>, vector<42x64xbf16>, vector<8x64xf32> -> vector<8x64xf32>
    %132 = arith.addf %119, %131 : vector<8x64xf32>
    %133 = arith.subi %117, %116 : vector<8x8xi32>
    %c-2_i32_57 = arith.constant -2 : i32
    %134 = vector.broadcast %c-2_i32_57 : i32 to vector<8x8xi32>
    %135 = arith.cmpi eq, %133, %134 : vector<8x8xi32>
    %cst_58 = arith.constant 1.000000e+00 : f32
    %cst_59 = arith.constant 0.000000e+00 : f32
    %136 = vector.broadcast %cst_58 : f32 to vector<8x8xf32>
    %137 = vector.broadcast %cst_59 : f32 to vector<8x8xf32>
    %138 = arith.select %135, %136, %137 : vector<8x8xi1>, vector<8x8xf32>
    %139 = arith.truncf %138 : vector<8x8xf32> to vector<8x8xbf16>
    %cst_60 = arith.constant dense<0.000000e+00> : vector<8x42xf32>
    %140 = tpu.matmul %139, %118, %cst_60 {dimension_numbers = #tpu.dot_dimension_numbers<[1], [0], [0], [1], [0, 0, 1, 1], [], []>} : vector<8x8xbf16>, vector<8x42xbf16>, vector<8x42xf32> -> vector<8x42xf32>
    %141 = arith.truncf %140 : vector<8x42xf32> to vector<8x42xbf16>
    %142 = vector.extract_strided_slice %114 {offsets = [1, 0, 0], sizes = [1, 42, 64], strides = [1, 1, 1]} : vector<7x42x64xbf16> to vector<1x42x64xbf16>
    %143 = vector.shape_cast %142 : vector<1x42x64xbf16> to vector<42x64xbf16>
    %cst_61 = arith.constant dense<0.000000e+00> : vector<8x64xf32>
    %144 = tpu.matmul %141, %143, %cst_61 {dimension_numbers = #tpu.dot_dimension_numbers<[1], [0], [0], [1], [0, 0, 1, 1], [], []>} : vector<8x42xbf16>, vector<42x64xbf16>, vector<8x64xf32> -> vector<8x64xf32>
    %145 = arith.addf %132, %144 : vector<8x64xf32>
    %146 = arith.subi %117, %116 : vector<8x8xi32>
    %c-1_i32_62 = arith.constant -1 : i32
    %147 = vector.broadcast %c-1_i32_62 : i32 to vector<8x8xi32>
    %148 = arith.cmpi eq, %146, %147 : vector<8x8xi32>
    %cst_63 = arith.constant 1.000000e+00 : f32
    %cst_64 = arith.constant 0.000000e+00 : f32
    %149 = vector.broadcast %cst_63 : f32 to vector<8x8xf32>
    %150 = vector.broadcast %cst_64 : f32 to vector<8x8xf32>
    %151 = arith.select %148, %149, %150 : vector<8x8xi1>, vector<8x8xf32>
    %152 = arith.truncf %151 : vector<8x8xf32> to vector<8x8xbf16>
    %cst_65 = arith.constant dense<0.000000e+00> : vector<8x42xf32>
    %153 = tpu.matmul %152, %118, %cst_65 {dimension_numbers = #tpu.dot_dimension_numbers<[1], [0], [0], [1], [0, 0, 1, 1], [], []>} : vector<8x8xbf16>, vector<8x42xbf16>, vector<8x42xf32> -> vector<8x42xf32>
    %154 = arith.truncf %153 : vector<8x42xf32> to vector<8x42xbf16>
    %155 = vector.extract_strided_slice %114 {offsets = [2, 0, 0], sizes = [1, 42, 64], strides = [1, 1, 1]} : vector<7x42x64xbf16> to vector<1x42x64xbf16>
    %156 = vector.shape_cast %155 : vector<1x42x64xbf16> to vector<42x64xbf16>
    %cst_66 = arith.constant dense<0.000000e+00> : vector<8x64xf32>
    %157 = tpu.matmul %154, %156, %cst_66 {dimension_numbers = #tpu.dot_dimension_numbers<[1], [0], [0], [1], [0, 0, 1, 1], [], []>} : vector<8x42xbf16>, vector<42x64xbf16>, vector<8x64xf32> -> vector<8x64xf32>
    %158 = arith.addf %145, %157 : vector<8x64xf32>
    %159 = vector.extract_strided_slice %114 {offsets = [3, 0, 0], sizes = [1, 42, 64], strides = [1, 1, 1]} : vector<7x42x64xbf16> to vector<1x42x64xbf16>
    %160 = vector.shape_cast %159 : vector<1x42x64xbf16> to vector<42x64xbf16>
    %cst_67 = arith.constant dense<0.000000e+00> : vector<8x64xf32>
    %161 = tpu.matmul %118, %160, %cst_67 {dimension_numbers = #tpu.dot_dimension_numbers<[1], [0], [0], [1], [0, 0, 1, 1], [], []>} : vector<8x42xbf16>, vector<42x64xbf16>, vector<8x64xf32> -> vector<8x64xf32>
    %162 = arith.addf %158, %161 : vector<8x64xf32>
    %163 = arith.subi %117, %116 : vector<8x8xi32>
    %c1_i32_68 = arith.constant 1 : i32
    %164 = vector.broadcast %c1_i32_68 : i32 to vector<8x8xi32>
    %165 = arith.cmpi eq, %163, %164 : vector<8x8xi32>
    %cst_69 = arith.constant 1.000000e+00 : f32
    %cst_70 = arith.constant 0.000000e+00 : f32
    %166 = vector.broadcast %cst_69 : f32 to vector<8x8xf32>
    %167 = vector.broadcast %cst_70 : f32 to vector<8x8xf32>
    %168 = arith.select %165, %166, %167 : vector<8x8xi1>, vector<8x8xf32>
    %169 = arith.truncf %168 : vector<8x8xf32> to vector<8x8xbf16>
    %cst_71 = arith.constant dense<0.000000e+00> : vector<8x42xf32>
    %170 = tpu.matmul %169, %118, %cst_71 {dimension_numbers = #tpu.dot_dimension_numbers<[1], [0], [0], [1], [0, 0, 1, 1], [], []>} : vector<8x8xbf16>, vector<8x42xbf16>, vector<8x42xf32> -> vector<8x42xf32>
    %171 = arith.truncf %170 : vector<8x42xf32> to vector<8x42xbf16>
    %172 = vector.extract_strided_slice %114 {offsets = [4, 0, 0], sizes = [1, 42, 64], strides = [1, 1, 1]} : vector<7x42x64xbf16> to vector<1x42x64xbf16>
    %173 = vector.shape_cast %172 : vector<1x42x64xbf16> to vector<42x64xbf16>
    %cst_72 = arith.constant dense<0.000000e+00> : vector<8x64xf32>
    %174 = tpu.matmul %171, %173, %cst_72 {dimension_numbers = #tpu.dot_dimension_numbers<[1], [0], [0], [1], [0, 0, 1, 1], [], []>} : vector<8x42xbf16>, vector<42x64xbf16>, vector<8x64xf32> -> vector<8x64xf32>
    %175 = arith.addf %162, %174 : vector<8x64xf32>
    %176 = arith.subi %117, %116 : vector<8x8xi32>
    %c2_i32_73 = arith.constant 2 : i32
    %177 = vector.broadcast %c2_i32_73 : i32 to vector<8x8xi32>
    %178 = arith.cmpi eq, %176, %177 : vector<8x8xi32>
    %cst_74 = arith.constant 1.000000e+00 : f32
    %cst_75 = arith.constant 0.000000e+00 : f32
    %179 = vector.broadcast %cst_74 : f32 to vector<8x8xf32>
    %180 = vector.broadcast %cst_75 : f32 to vector<8x8xf32>
    %181 = arith.select %178, %179, %180 : vector<8x8xi1>, vector<8x8xf32>
    %182 = arith.truncf %181 : vector<8x8xf32> to vector<8x8xbf16>
    %cst_76 = arith.constant dense<0.000000e+00> : vector<8x42xf32>
    %183 = tpu.matmul %182, %118, %cst_76 {dimension_numbers = #tpu.dot_dimension_numbers<[1], [0], [0], [1], [0, 0, 1, 1], [], []>} : vector<8x8xbf16>, vector<8x42xbf16>, vector<8x42xf32> -> vector<8x42xf32>
    %184 = arith.truncf %183 : vector<8x42xf32> to vector<8x42xbf16>
    %185 = vector.extract_strided_slice %114 {offsets = [5, 0, 0], sizes = [1, 42, 64], strides = [1, 1, 1]} : vector<7x42x64xbf16> to vector<1x42x64xbf16>
    %186 = vector.shape_cast %185 : vector<1x42x64xbf16> to vector<42x64xbf16>
    %cst_77 = arith.constant dense<0.000000e+00> : vector<8x64xf32>
    %187 = tpu.matmul %184, %186, %cst_77 {dimension_numbers = #tpu.dot_dimension_numbers<[1], [0], [0], [1], [0, 0, 1, 1], [], []>} : vector<8x42xbf16>, vector<42x64xbf16>, vector<8x64xf32> -> vector<8x64xf32>
    %188 = arith.addf %175, %187 : vector<8x64xf32>
    %189 = arith.subi %117, %116 : vector<8x8xi32>
    %c3_i32 = arith.constant 3 : i32
    %190 = vector.broadcast %c3_i32 : i32 to vector<8x8xi32>
    %191 = arith.cmpi eq, %189, %190 : vector<8x8xi32>
    %cst_78 = arith.constant 1.000000e+00 : f32
    %cst_79 = arith.constant 0.000000e+00 : f32
    %192 = vector.broadcast %cst_78 : f32 to vector<8x8xf32>
    %193 = vector.broadcast %cst_79 : f32 to vector<8x8xf32>
    %194 = arith.select %191, %192, %193 : vector<8x8xi1>, vector<8x8xf32>
    %195 = arith.truncf %194 : vector<8x8xf32> to vector<8x8xbf16>
    %cst_80 = arith.constant dense<0.000000e+00> : vector<8x42xf32>
    %196 = tpu.matmul %195, %118, %cst_80 {dimension_numbers = #tpu.dot_dimension_numbers<[1], [0], [0], [1], [0, 0, 1, 1], [], []>} : vector<8x8xbf16>, vector<8x42xbf16>, vector<8x42xf32> -> vector<8x42xf32>
    %197 = arith.truncf %196 : vector<8x42xf32> to vector<8x42xbf16>
    %198 = vector.extract_strided_slice %114 {offsets = [6, 0, 0], sizes = [1, 42, 64], strides = [1, 1, 1]} : vector<7x42x64xbf16> to vector<1x42x64xbf16>
    %199 = vector.shape_cast %198 : vector<1x42x64xbf16> to vector<42x64xbf16>
    %cst_81 = arith.constant dense<0.000000e+00> : vector<8x64xf32>
    %200 = tpu.matmul %197, %199, %cst_81 {dimension_numbers = #tpu.dot_dimension_numbers<[1], [0], [0], [1], [0, 0, 1, 1], [], []>} : vector<8x42xbf16>, vector<42x64xbf16>, vector<8x64xf32> -> vector<8x64xf32>
    %201 = arith.addf %188, %200 : vector<8x64xf32>
    %202 = vector.broadcast %115 : vector<1x64xf32> to vector<8x64xf32>
    %203 = arith.addf %201, %202 : vector<8x64xf32>
    %cst_82 = arith.constant 0.000000e+00 : f32
    %204 = vector.broadcast %cst_82 : f32 to vector<8x64xf32>
    %205 = arith.maximumf %203, %204 : vector<8x64xf32>
    %c0_83 = arith.constant 0 : index
    %c0_84 = arith.constant 0 : index
    %206 = vector.load %arg12[%c0_83, %c0_84] : memref<1x64xf32, #tpu.memory_space<vmem>>, vector<1x64xf32>
    %c0_85 = arith.constant 0 : index
    %c0_86 = arith.constant 0 : index
    %207 = vector.load %arg11[%c0_85, %c0_86] : memref<9x64xf32, #tpu.memory_space<vmem>>, vector<8x64xf32>
    %208 = arith.addf %205, %207 : vector<8x64xf32>
    %209 = vector.broadcast %206 : vector<1x64xf32> to vector<8x64xf32>
    %210 = arith.addf %208, %209 : vector<8x64xf32>
    %c0_87 = arith.constant 0 : index
    %c0_88 = arith.constant 0 : index
    %211 = vector.load %arg10[%c0_87, %c0_88] : memref<1x64xf32, #tpu.memory_space<vmem>>, vector<1x64xf32>
    %c8 = arith.constant 8 : index
    %c0_89 = arith.constant 0 : index
    %212 = vector.load %arg11[%c8, %c0_89] : memref<9x64xf32, #tpu.memory_space<vmem>>, vector<1x64xf32>
    %213 = arith.addf %211, %212 : vector<1x64xf32>
    %214 = arith.addf %213, %206 : vector<1x64xf32>
    %c0_90 = arith.constant 0 : index
    %c0_91 = arith.constant 0 : index
    %215 = vector.load %arg13[%c0_90, %c0_91] : memref<1x64xf32, #tpu.memory_space<vmem>>, vector<1x64xf32>
    %c0_92 = arith.constant 0 : index
    %c0_93 = arith.constant 0 : index
    %216 = vector.load %arg14[%c0_92, %c0_93] : memref<1x64xf32, #tpu.memory_space<vmem>>, vector<1x64xf32>
    %cst_94 = arith.constant dense<0.000000e+00> : vector<8xf32>
    %217 = vector.multi_reduction <add>, %210, %cst_94 [1] : vector<8x64xf32> to vector<8xf32>
    %218 = vector.shape_cast %217 : vector<8xf32> to vector<8x1xf32>
    %cst_95 = arith.constant 6.400000e+01 : f32
    %219 = vector.broadcast %cst_95 : f32 to vector<8x1xf32>
    %220 = arith.divf %218, %219 : vector<8x1xf32>
    %221 = vector.broadcast %220 : vector<8x1xf32> to vector<8x64xf32>
    %222 = arith.subf %210, %221 : vector<8x64xf32>
    %223 = arith.mulf %222, %222 : vector<8x64xf32>
    %cst_96 = arith.constant dense<0.000000e+00> : vector<8xf32>
    %224 = vector.multi_reduction <add>, %223, %cst_96 [1] : vector<8x64xf32> to vector<8xf32>
    %225 = vector.shape_cast %224 : vector<8xf32> to vector<8x1xf32>
    %cst_97 = arith.constant 6.400000e+01 : f32
    %226 = vector.broadcast %cst_97 : f32 to vector<8x1xf32>
    %227 = arith.divf %225, %226 : vector<8x1xf32>
    %cst_98 = arith.constant 9.99999996E-13 : f32
    %228 = vector.broadcast %cst_98 : f32 to vector<8x1xf32>
    %229 = arith.addf %227, %228 : vector<8x1xf32>
    %230 = math.rsqrt %229 : vector<8x1xf32>
    %231 = vector.broadcast %230 : vector<8x1xf32> to vector<8x64xf32>
    %232 = arith.mulf %222, %231 : vector<8x64xf32>
    %233 = vector.broadcast %215 : vector<1x64xf32> to vector<8x64xf32>
    %234 = arith.mulf %232, %233 : vector<8x64xf32>
    %235 = vector.broadcast %216 : vector<1x64xf32> to vector<8x64xf32>
    %236 = arith.addf %234, %235 : vector<8x64xf32>
    %237 = vector.shape_cast %236 : vector<8x64xf32> to vector<1x8x64xf32>
    %c0_99 = arith.constant 0 : index
    %c0_100 = arith.constant 0 : index
    %c0_101 = arith.constant 0 : index
    %238 = vector.load %arg15[%c0_99, %c0_100, %c0_101] : memref<1x9x64xf32, #tpu.memory_space<vmem>>, vector<1x8x64xf32>
    tpu.vector_store %arg15[%c0_99, %c0_100, %c0_101], %237 {strides = array<i32>} : memref<1x9x64xf32, #tpu.memory_space<vmem>>, vector<1x8x64xf32>,
    %cst_102 = arith.constant dense<0.000000e+00> : vector<1xf32>
    %239 = vector.multi_reduction <add>, %214, %cst_102 [1] : vector<1x64xf32> to vector<1xf32>
    %240 = vector.shape_cast %239 : vector<1xf32> to vector<1x1xf32>
    %cst_103 = arith.constant 6.400000e+01 : f32
    %241 = vector.broadcast %cst_103 : f32 to vector<1x1xf32>
    %242 = arith.divf %240, %241 : vector<1x1xf32>
    %243 = vector.broadcast %242 : vector<1x1xf32> to vector<1x64xf32>
    %244 = arith.subf %214, %243 : vector<1x64xf32>
    %245 = arith.mulf %244, %244 : vector<1x64xf32>
    %cst_104 = arith.constant dense<0.000000e+00> : vector<1xf32>
    %246 = vector.multi_reduction <add>, %245, %cst_104 [1] : vector<1x64xf32> to vector<1xf32>
    %247 = vector.shape_cast %246 : vector<1xf32> to vector<1x1xf32>
    %cst_105 = arith.constant 6.400000e+01 : f32
    %248 = vector.broadcast %cst_105 : f32 to vector<1x1xf32>
    %249 = arith.divf %247, %248 : vector<1x1xf32>
    %cst_106 = arith.constant 9.99999996E-13 : f32
    %250 = vector.broadcast %cst_106 : f32 to vector<1x1xf32>
    %251 = arith.addf %249, %250 : vector<1x1xf32>
    %252 = math.rsqrt %251 : vector<1x1xf32>
    %253 = vector.broadcast %252 : vector<1x1xf32> to vector<1x64xf32>
    %254 = arith.mulf %244, %253 : vector<1x64xf32>
    %255 = arith.mulf %254, %215 : vector<1x64xf32>
    %256 = arith.addf %255, %216 : vector<1x64xf32>
    %257 = vector.shape_cast %256 : vector<1x64xf32> to vector<1x1x64xf32>
    %c0_107 = arith.constant 0 : index
    %c8_108 = arith.constant 8 : index
    %c0_109 = arith.constant 0 : index
    %258 = vector.load %arg15[%c0_107, %c8_108, %c0_109] : memref<1x9x64xf32, #tpu.memory_space<vmem>>, vector<1x1x64xf32>
    tpu.vector_store %arg15[%c0_107, %c8_108, %c0_109], %257 {strides = array<i32>} : memref<1x9x64xf32, #tpu.memory_space<vmem>>, vector<1x1x64xf32>,
    return
  }
  func.func @transform_0(%arg0: i32) -> (i32, i32, i32) {
    %c0_i32 = arith.constant 0 : i32
    %c0_i32_0 = arith.constant 0 : i32
    %c0_i32_1 = arith.constant 0 : i32
    return %arg0, %c0_i32, %c0_i32_0 : i32, i32, i32
  }
  func.func @transform_1(%arg0: i32) -> (i32, i32) {
    %c0_i32 = arith.constant 0 : i32
    %c0_i32_0 = arith.constant 0 : i32
    %c0_i32_1 = arith.constant 0 : i32
    return %c0_i32, %c0_i32_0 : i32, i32
  }
  func.func @transform_2(%arg0: i32) -> (i32, i32) {
    %c0_i32 = arith.constant 0 : i32
    %c0_i32_0 = arith.constant 0 : i32
    %c0_i32_1 = arith.constant 0 : i32
    return %c0_i32, %c0_i32_0 : i32, i32
  }
  func.func @transform_3(%arg0: i32) -> (i32, i32, i32) {
    %c0_i32 = arith.constant 0 : i32
    %c0_i32_0 = arith.constant 0 : i32
    %c0_i32_1 = arith.constant 0 : i32
    %c0_i32_2 = arith.constant 0 : i32
    return %c0_i32, %c0_i32_0, %c0_i32_1 : i32, i32, i32
  }
  func.func @transform_4(%arg0: i32) -> (i32, i32) {
    %c0_i32 = arith.constant 0 : i32
    %c0_i32_0 = arith.constant 0 : i32
    %c0_i32_1 = arith.constant 0 : i32
    return %c0_i32, %c0_i32_0 : i32, i32
  }
  func.func @transform_5(%arg0: i32) -> (i32, i32, i32) {
    %c0_i32 = arith.constant 0 : i32
    %c0_i32_0 = arith.constant 0 : i32
    %c0_i32_1 = arith.constant 0 : i32
    %c0_i32_2 = arith.constant 0 : i32
    return %c0_i32, %c0_i32_0, %c0_i32_1 : i32, i32, i32
  }
  func.func @transform_6(%arg0: i32) -> (i32, i32) {
    %c0_i32 = arith.constant 0 : i32
    %c0_i32_0 = arith.constant 0 : i32
    %c0_i32_1 = arith.constant 0 : i32
    return %c0_i32, %c0_i32_0 : i32, i32
  }
  func.func @transform_7(%arg0: i32) -> (i32, i32, i32) {
    %c0_i32 = arith.constant 0 : i32
    %c0_i32_0 = arith.constant 0 : i32
    %c0_i32_1 = arith.constant 0 : i32
    %c0_i32_2 = arith.constant 0 : i32
    return %c0_i32, %c0_i32_0, %c0_i32_1 : i32, i32, i32
  }
  func.func @transform_8(%arg0: i32) -> (i32, i32) {
    %c0_i32 = arith.constant 0 : i32
    %c0_i32_0 = arith.constant 0 : i32
    %c0_i32_1 = arith.constant 0 : i32
    return %c0_i32, %c0_i32_0 : i32, i32
  }
  func.func @transform_9(%arg0: i32) -> (i32, i32) {
    %c0_i32 = arith.constant 0 : i32
    %c0_i32_0 = arith.constant 0 : i32
    %c0_i32_1 = arith.constant 0 : i32
    return %c0_i32, %c0_i32_0 : i32, i32
  }
  func.func @transform_10(%arg0: i32) -> (i32, i32) {
    %c0_i32 = arith.constant 0 : i32
    %c0_i32_0 = arith.constant 0 : i32
    %c0_i32_1 = arith.constant 0 : i32
    return %c0_i32, %c0_i32_0 : i32, i32
  }
  func.func @transform_11(%arg0: i32) -> (i32, i32) {
    %c0_i32 = arith.constant 0 : i32
    %c0_i32_0 = arith.constant 0 : i32
    %c0_i32_1 = arith.constant 0 : i32
    return %c0_i32, %c0_i32_0 : i32, i32
  }
  func.func @transform_12(%arg0: i32) -> (i32, i32) {
    %c0_i32 = arith.constant 0 : i32
    %c0_i32_0 = arith.constant 0 : i32
    %c0_i32_1 = arith.constant 0 : i32
    return %c0_i32, %c0_i32_0 : i32, i32
  }
  func.func @transform_13(%arg0: i32) -> (i32, i32) {
    %c0_i32 = arith.constant 0 : i32
    %c0_i32_0 = arith.constant 0 : i32
    %c0_i32_1 = arith.constant 0 : i32
    return %c0_i32, %c0_i32_0 : i32, i32
  }
  func.func @transform_14(%arg0: i32) -> (i32, i32, i32) {
    %c0_i32 = arith.constant 0 : i32
    %c0_i32_0 = arith.constant 0 : i32
    %c0_i32_1 = arith.constant 0 : i32
    return %arg0, %c0_i32, %c0_i32_0 : i32, i32, i32
  }
}

module attributes {stable_mosaic.version = 11 : i64} {
  func.func @_encoder_kernel(%arg0: i32, %arg1: memref<2x9x64xf32, #tpu.memory_space<vmem>>, %arg2: memref<1x64x192xbf16, #tpu.memory_space<vmem>>, %arg3: memref<1x1x192xf32, #tpu.memory_space<vmem>>, %arg4: memref<1x64x64xbf16, #tpu.memory_space<vmem>>, %arg5: memref<1x1x64xf32, #tpu.memory_space<vmem>>, %arg6: memref<1x1x64xf32, #tpu.memory_space<vmem>>, %arg7: memref<1x1x64xf32, #tpu.memory_space<vmem>>, %arg8: memref<1x64x256xbf16, #tpu.memory_space<vmem>>, %arg9: memref<1x1x256xf32, #tpu.memory_space<vmem>>, %arg10: memref<1x256x64xbf16, #tpu.memory_space<vmem>>, %arg11: memref<1x1x64xf32, #tpu.memory_space<vmem>>, %arg12: memref<1x1x64xf32, #tpu.memory_space<vmem>>, %arg13: memref<1x1x64xf32, #tpu.memory_space<vmem>>, %arg14: memref<64x3xbf16, #tpu.memory_space<vmem>>, %arg15: memref<1x3xf32, #tpu.memory_space<vmem>>, %arg16: memref<2x1x3xf32, #tpu.memory_space<vmem>>, %arg17: memref<2x9x64xf32, #tpu.memory_space<vmem>>) attributes {dimension_semantics = [#tpu.dimension_semantics<arbitrary>], iteration_bounds = array<i64: 2>, scalar_prefetch = 0 : i64, scratch_operands = 1 : i64, tpu.core_type = #tpu.core_type<tc>, window_params = [{pipeline_mode = #tpu.pipeline_mode<synchronous>, transform_indices = @transform_0, window_bounds = array<i64: 2, 9, 64>}, {transform_indices = @transform_1, window_bounds = array<i64: 1, 64, 192>}, {transform_indices = @transform_2, window_bounds = array<i64: 1, 1, 192>}, {transform_indices = @transform_3, window_bounds = array<i64: 1, 64, 64>}, {transform_indices = @transform_4, window_bounds = array<i64: 1, 1, 64>}, {transform_indices = @transform_5, window_bounds = array<i64: 1, 1, 64>}, {transform_indices = @transform_6, window_bounds = array<i64: 1, 1, 64>}, {transform_indices = @transform_7, window_bounds = array<i64: 1, 64, 256>}, {transform_indices = @transform_8, window_bounds = array<i64: 1, 1, 256>}, {transform_indices = @transform_9, window_bounds = array<i64: 1, 256, 64>}, {transform_indices = @transform_10, window_bounds = array<i64: 1, 1, 64>}, {transform_indices = @transform_11, window_bounds = array<i64: 1, 1, 64>}, {transform_indices = @transform_12, window_bounds = array<i64: 1, 1, 64>}, {pipeline_mode = #tpu.pipeline_mode<synchronous>, transform_indices = @transform_13, window_bounds = array<i64: 64, 3>}, {pipeline_mode = #tpu.pipeline_mode<synchronous>, transform_indices = @transform_14, window_bounds = array<i64: 1, 3>}, {pipeline_mode = #tpu.pipeline_mode<synchronous>, transform_indices = @transform_15, window_bounds = array<i64: 2, 1, 3>}]} {
    %c0_i32 = arith.constant 0 : i32
    %0 = arith.cmpi eq, %arg0, %c0_i32 : i32
    %1 = arith.extui %0 : i1 to i32
    %c0_i32_0 = arith.constant 0 : i32
    %2 = arith.cmpi ne, %1, %c0_i32_0 : i32
    scf.if %2 {
      %c0_155 = arith.constant 0 : index
      %c0_156 = arith.constant 0 : index
      %c0_157 = arith.constant 0 : index
      %405 = vector.load %arg1[%c0_155, %c0_156, %c0_157] : memref<2x9x64xf32, #tpu.memory_space<vmem>>, vector<2x9x64xf32>
      %c0_158 = arith.constant 0 : index
      %c0_159 = arith.constant 0 : index
      %c0_160 = arith.constant 0 : index
      %406 = vector.load %arg17[%c0_158, %c0_159, %c0_160] : memref<2x9x64xf32, #tpu.memory_space<vmem>>, vector<2x9x64xf32>
      tpu.vector_store %arg17[%c0_158, %c0_159, %c0_160], %405 {strides = array<i32>} : memref<2x9x64xf32, #tpu.memory_space<vmem>>, vector<2x9x64xf32>,
    } else {
    }
    %c0 = arith.constant 0 : index
    %c0_1 = arith.constant 0 : index
    %c0_2 = arith.constant 0 : index
    %3 = vector.load %arg2[%c0, %c0_1, %c0_2] : memref<1x64x192xbf16, #tpu.memory_space<vmem>>, vector<1x64x192xbf16>
    %4 = vector.shape_cast %3 : vector<1x64x192xbf16> to vector<64x192xbf16>
    %c0_3 = arith.constant 0 : index
    %c0_4 = arith.constant 0 : index
    %c0_5 = arith.constant 0 : index
    %5 = vector.load %arg3[%c0_3, %c0_4, %c0_5] : memref<1x1x192xf32, #tpu.memory_space<vmem>>, vector<1x1x192xf32>
    %6 = vector.shape_cast %5 : vector<1x1x192xf32> to vector<1x192xf32>
    %c0_6 = arith.constant 0 : index
    %c0_7 = arith.constant 0 : index
    %c0_8 = arith.constant 0 : index
    %7 = vector.load %arg4[%c0_6, %c0_7, %c0_8] : memref<1x64x64xbf16, #tpu.memory_space<vmem>>, vector<1x64x64xbf16>
    %8 = vector.shape_cast %7 : vector<1x64x64xbf16> to vector<64x64xbf16>
    %c0_9 = arith.constant 0 : index
    %c0_10 = arith.constant 0 : index
    %c0_11 = arith.constant 0 : index
    %9 = vector.load %arg5[%c0_9, %c0_10, %c0_11] : memref<1x1x64xf32, #tpu.memory_space<vmem>>, vector<1x1x64xf32>
    %10 = vector.shape_cast %9 : vector<1x1x64xf32> to vector<1x64xf32>
    %c0_12 = arith.constant 0 : index
    %c0_13 = arith.constant 0 : index
    %c0_14 = arith.constant 0 : index
    %11 = vector.load %arg6[%c0_12, %c0_13, %c0_14] : memref<1x1x64xf32, #tpu.memory_space<vmem>>, vector<1x1x64xf32>
    %12 = vector.shape_cast %11 : vector<1x1x64xf32> to vector<1x64xf32>
    %c0_15 = arith.constant 0 : index
    %c0_16 = arith.constant 0 : index
    %c0_17 = arith.constant 0 : index
    %13 = vector.load %arg7[%c0_15, %c0_16, %c0_17] : memref<1x1x64xf32, #tpu.memory_space<vmem>>, vector<1x1x64xf32>
    %14 = vector.shape_cast %13 : vector<1x1x64xf32> to vector<1x64xf32>
    %c0_18 = arith.constant 0 : index
    %c0_19 = arith.constant 0 : index
    %c0_20 = arith.constant 0 : index
    %15 = vector.load %arg8[%c0_18, %c0_19, %c0_20] : memref<1x64x256xbf16, #tpu.memory_space<vmem>>, vector<1x64x256xbf16>
    %16 = vector.shape_cast %15 : vector<1x64x256xbf16> to vector<64x256xbf16>
    %c0_21 = arith.constant 0 : index
    %c0_22 = arith.constant 0 : index
    %c0_23 = arith.constant 0 : index
    %17 = vector.load %arg9[%c0_21, %c0_22, %c0_23] : memref<1x1x256xf32, #tpu.memory_space<vmem>>, vector<1x1x256xf32>
    %18 = vector.shape_cast %17 : vector<1x1x256xf32> to vector<1x256xf32>
    %c0_24 = arith.constant 0 : index
    %c0_25 = arith.constant 0 : index
    %c0_26 = arith.constant 0 : index
    %19 = vector.load %arg10[%c0_24, %c0_25, %c0_26] : memref<1x256x64xbf16, #tpu.memory_space<vmem>>, vector<1x256x64xbf16>
    %20 = vector.shape_cast %19 : vector<1x256x64xbf16> to vector<256x64xbf16>
    %c0_27 = arith.constant 0 : index
    %c0_28 = arith.constant 0 : index
    %c0_29 = arith.constant 0 : index
    %21 = vector.load %arg11[%c0_27, %c0_28, %c0_29] : memref<1x1x64xf32, #tpu.memory_space<vmem>>, vector<1x1x64xf32>
    %22 = vector.shape_cast %21 : vector<1x1x64xf32> to vector<1x64xf32>
    %c0_30 = arith.constant 0 : index
    %c0_31 = arith.constant 0 : index
    %c0_32 = arith.constant 0 : index
    %23 = vector.load %arg12[%c0_30, %c0_31, %c0_32] : memref<1x1x64xf32, #tpu.memory_space<vmem>>, vector<1x1x64xf32>
    %24 = vector.shape_cast %23 : vector<1x1x64xf32> to vector<1x64xf32>
    %c0_33 = arith.constant 0 : index
    %c0_34 = arith.constant 0 : index
    %c0_35 = arith.constant 0 : index
    %25 = vector.load %arg13[%c0_33, %c0_34, %c0_35] : memref<1x1x64xf32, #tpu.memory_space<vmem>>, vector<1x1x64xf32>
    %26 = vector.shape_cast %25 : vector<1x1x64xf32> to vector<1x64xf32>
    %c0_36 = arith.constant 0 : index
    %c0_37 = arith.constant 0 : index
    %c0_38 = arith.constant 0 : index
    %27 = vector.load %arg17[%c0_36, %c0_37, %c0_38] : memref<2x9x64xf32, #tpu.memory_space<vmem>>, vector<1x9x64xf32>
    %28 = vector.shape_cast %27 : vector<1x9x64xf32> to vector<9x64xf32>
    %29 = arith.truncf %28 : vector<9x64xf32> to vector<9x64xbf16>
    %cst = arith.constant dense<0.000000e+00> : vector<9x192xf32>
    %30 = tpu.matmul %29, %4, %cst {dimension_numbers = #tpu.dot_dimension_numbers<[1], [0], [0], [1], [0, 0, 1, 1], [], []>} : vector<9x64xbf16>, vector<64x192xbf16>, vector<9x192xf32> -> vector<9x192xf32>
    %31 = vector.broadcast %6 : vector<1x192xf32> to vector<9x192xf32>
    %32 = arith.addf %30, %31 : vector<9x192xf32>
    %cst_39 = arith.constant 0.000000e+00 : f32
    %33 = vector.broadcast %cst_39 : f32 to vector<9x64xf32>
    %34 = vector.extract_strided_slice %32 {offsets = [0, 0], sizes = [9, 16], strides = [1, 1]} : vector<9x192xf32> to vector<9x16xf32>
    %35 = vector.extract_strided_slice %32 {offsets = [0, 64], sizes = [9, 16], strides = [1, 1]} : vector<9x192xf32> to vector<9x16xf32>
    %36 = vector.extract_strided_slice %32 {offsets = [0, 128], sizes = [9, 16], strides = [1, 1]} : vector<9x192xf32> to vector<9x16xf32>
    %cst_40 = arith.constant dense<0.000000e+00> : vector<9x9xf32>
    %37 = tpu.matmul %34, %35, %cst_40 {dimension_numbers = #tpu.dot_dimension_numbers<[1], [1], [0], [0], [0, 0, 1, 0], [], []>} : vector<9x16xf32>, vector<9x16xf32>, vector<9x9xf32> -> vector<9x9xf32>
    %cst_41 = arith.constant 2.500000e-01 : f32
    %38 = vector.broadcast %cst_41 : f32 to vector<9x9xf32>
    %39 = arith.mulf %37, %38 : vector<9x9xf32>
    %cst_42 = arith.constant dense<0xFF800000> : vector<9xf32>
    %40 = vector.multi_reduction <maximumf>, %39, %cst_42 [1] : vector<9x9xf32> to vector<9xf32>
    %41 = vector.shape_cast %40 : vector<9xf32> to vector<9x1xf32>
    %42 = vector.broadcast %41 : vector<9x1xf32> to vector<9x9xf32>
    %43 = arith.subf %39, %42 : vector<9x9xf32>
    %44 = math.exp %43 : vector<9x9xf32>
    %cst_43 = arith.constant dense<0.000000e+00> : vector<9xf32>
    %45 = vector.multi_reduction <add>, %44, %cst_43 [1] : vector<9x9xf32> to vector<9xf32>
    %46 = vector.shape_cast %45 : vector<9xf32> to vector<9x1xf32>
    %47 = tpu.reciprocal %46 {approx = true} : vector<9x1xf32> -> vector<9x1xf32>
    %48 = vector.broadcast %47 : vector<9x1xf32> to vector<9x9xf32>
    %49 = arith.mulf %44, %48 : vector<9x9xf32>
    %cst_44 = arith.constant dense<0.000000e+00> : vector<9x16xf32>
    %50 = tpu.matmul %49, %36, %cst_44 {dimension_numbers = #tpu.dot_dimension_numbers<[1], [0], [0], [1], [0, 0, 1, 1], [], []>} : vector<9x9xf32>, vector<9x16xf32>, vector<9x16xf32> -> vector<9x16xf32>
    %51 = arith.truncf %50 : vector<9x16xf32> to vector<9x16xbf16>
    %52 = vector.extract_strided_slice %8 {offsets = [0, 0], sizes = [16, 64], strides = [1, 1]} : vector<64x64xbf16> to vector<16x64xbf16>
    %cst_45 = arith.constant dense<0.000000e+00> : vector<9x64xf32>
    %53 = tpu.matmul %51, %52, %cst_45 {dimension_numbers = #tpu.dot_dimension_numbers<[1], [0], [0], [1], [0, 0, 1, 1], [], []>} : vector<9x16xbf16>, vector<16x64xbf16>, vector<9x64xf32> -> vector<9x64xf32>
    %54 = arith.addf %33, %53 : vector<9x64xf32>
    %55 = vector.extract_strided_slice %32 {offsets = [0, 16], sizes = [9, 16], strides = [1, 1]} : vector<9x192xf32> to vector<9x16xf32>
    %56 = vector.extract_strided_slice %32 {offsets = [0, 80], sizes = [9, 16], strides = [1, 1]} : vector<9x192xf32> to vector<9x16xf32>
    %57 = vector.extract_strided_slice %32 {offsets = [0, 144], sizes = [9, 16], strides = [1, 1]} : vector<9x192xf32> to vector<9x16xf32>
    %cst_46 = arith.constant dense<0.000000e+00> : vector<9x9xf32>
    %58 = tpu.matmul %55, %56, %cst_46 {dimension_numbers = #tpu.dot_dimension_numbers<[1], [1], [0], [0], [0, 0, 1, 0], [], []>} : vector<9x16xf32>, vector<9x16xf32>, vector<9x9xf32> -> vector<9x9xf32>
    %cst_47 = arith.constant 2.500000e-01 : f32
    %59 = vector.broadcast %cst_47 : f32 to vector<9x9xf32>
    %60 = arith.mulf %58, %59 : vector<9x9xf32>
    %cst_48 = arith.constant dense<0xFF800000> : vector<9xf32>
    %61 = vector.multi_reduction <maximumf>, %60, %cst_48 [1] : vector<9x9xf32> to vector<9xf32>
    %62 = vector.shape_cast %61 : vector<9xf32> to vector<9x1xf32>
    %63 = vector.broadcast %62 : vector<9x1xf32> to vector<9x9xf32>
    %64 = arith.subf %60, %63 : vector<9x9xf32>
    %65 = math.exp %64 : vector<9x9xf32>
    %cst_49 = arith.constant dense<0.000000e+00> : vector<9xf32>
    %66 = vector.multi_reduction <add>, %65, %cst_49 [1] : vector<9x9xf32> to vector<9xf32>
    %67 = vector.shape_cast %66 : vector<9xf32> to vector<9x1xf32>
    %68 = tpu.reciprocal %67 {approx = true} : vector<9x1xf32> -> vector<9x1xf32>
    %69 = vector.broadcast %68 : vector<9x1xf32> to vector<9x9xf32>
    %70 = arith.mulf %65, %69 : vector<9x9xf32>
    %cst_50 = arith.constant dense<0.000000e+00> : vector<9x16xf32>
    %71 = tpu.matmul %70, %57, %cst_50 {dimension_numbers = #tpu.dot_dimension_numbers<[1], [0], [0], [1], [0, 0, 1, 1], [], []>} : vector<9x9xf32>, vector<9x16xf32>, vector<9x16xf32> -> vector<9x16xf32>
    %72 = arith.truncf %71 : vector<9x16xf32> to vector<9x16xbf16>
    %73 = vector.extract_strided_slice %8 {offsets = [16, 0], sizes = [16, 64], strides = [1, 1]} : vector<64x64xbf16> to vector<16x64xbf16>
    %cst_51 = arith.constant dense<0.000000e+00> : vector<9x64xf32>
    %74 = tpu.matmul %72, %73, %cst_51 {dimension_numbers = #tpu.dot_dimension_numbers<[1], [0], [0], [1], [0, 0, 1, 1], [], []>} : vector<9x16xbf16>, vector<16x64xbf16>, vector<9x64xf32> -> vector<9x64xf32>
    %75 = arith.addf %54, %74 : vector<9x64xf32>
    %76 = vector.extract_strided_slice %32 {offsets = [0, 32], sizes = [9, 16], strides = [1, 1]} : vector<9x192xf32> to vector<9x16xf32>
    %77 = vector.extract_strided_slice %32 {offsets = [0, 96], sizes = [9, 16], strides = [1, 1]} : vector<9x192xf32> to vector<9x16xf32>
    %78 = vector.extract_strided_slice %32 {offsets = [0, 160], sizes = [9, 16], strides = [1, 1]} : vector<9x192xf32> to vector<9x16xf32>
    %cst_52 = arith.constant dense<0.000000e+00> : vector<9x9xf32>
    %79 = tpu.matmul %76, %77, %cst_52 {dimension_numbers = #tpu.dot_dimension_numbers<[1], [1], [0], [0], [0, 0, 1, 0], [], []>} : vector<9x16xf32>, vector<9x16xf32>, vector<9x9xf32> -> vector<9x9xf32>
    %cst_53 = arith.constant 2.500000e-01 : f32
    %80 = vector.broadcast %cst_53 : f32 to vector<9x9xf32>
    %81 = arith.mulf %79, %80 : vector<9x9xf32>
    %cst_54 = arith.constant dense<0xFF800000> : vector<9xf32>
    %82 = vector.multi_reduction <maximumf>, %81, %cst_54 [1] : vector<9x9xf32> to vector<9xf32>
    %83 = vector.shape_cast %82 : vector<9xf32> to vector<9x1xf32>
    %84 = vector.broadcast %83 : vector<9x1xf32> to vector<9x9xf32>
    %85 = arith.subf %81, %84 : vector<9x9xf32>
    %86 = math.exp %85 : vector<9x9xf32>
    %cst_55 = arith.constant dense<0.000000e+00> : vector<9xf32>
    %87 = vector.multi_reduction <add>, %86, %cst_55 [1] : vector<9x9xf32> to vector<9xf32>
    %88 = vector.shape_cast %87 : vector<9xf32> to vector<9x1xf32>
    %89 = tpu.reciprocal %88 {approx = true} : vector<9x1xf32> -> vector<9x1xf32>
    %90 = vector.broadcast %89 : vector<9x1xf32> to vector<9x9xf32>
    %91 = arith.mulf %86, %90 : vector<9x9xf32>
    %cst_56 = arith.constant dense<0.000000e+00> : vector<9x16xf32>
    %92 = tpu.matmul %91, %78, %cst_56 {dimension_numbers = #tpu.dot_dimension_numbers<[1], [0], [0], [1], [0, 0, 1, 1], [], []>} : vector<9x9xf32>, vector<9x16xf32>, vector<9x16xf32> -> vector<9x16xf32>
    %93 = arith.truncf %92 : vector<9x16xf32> to vector<9x16xbf16>
    %94 = vector.extract_strided_slice %8 {offsets = [32, 0], sizes = [16, 64], strides = [1, 1]} : vector<64x64xbf16> to vector<16x64xbf16>
    %cst_57 = arith.constant dense<0.000000e+00> : vector<9x64xf32>
    %95 = tpu.matmul %93, %94, %cst_57 {dimension_numbers = #tpu.dot_dimension_numbers<[1], [0], [0], [1], [0, 0, 1, 1], [], []>} : vector<9x16xbf16>, vector<16x64xbf16>, vector<9x64xf32> -> vector<9x64xf32>
    %96 = arith.addf %75, %95 : vector<9x64xf32>
    %97 = vector.extract_strided_slice %32 {offsets = [0, 48], sizes = [9, 16], strides = [1, 1]} : vector<9x192xf32> to vector<9x16xf32>
    %98 = vector.extract_strided_slice %32 {offsets = [0, 112], sizes = [9, 16], strides = [1, 1]} : vector<9x192xf32> to vector<9x16xf32>
    %99 = vector.extract_strided_slice %32 {offsets = [0, 176], sizes = [9, 16], strides = [1, 1]} : vector<9x192xf32> to vector<9x16xf32>
    %cst_58 = arith.constant dense<0.000000e+00> : vector<9x9xf32>
    %100 = tpu.matmul %97, %98, %cst_58 {dimension_numbers = #tpu.dot_dimension_numbers<[1], [1], [0], [0], [0, 0, 1, 0], [], []>} : vector<9x16xf32>, vector<9x16xf32>, vector<9x9xf32> -> vector<9x9xf32>
    %cst_59 = arith.constant 2.500000e-01 : f32
    %101 = vector.broadcast %cst_59 : f32 to vector<9x9xf32>
    %102 = arith.mulf %100, %101 : vector<9x9xf32>
    %cst_60 = arith.constant dense<0xFF800000> : vector<9xf32>
    %103 = vector.multi_reduction <maximumf>, %102, %cst_60 [1] : vector<9x9xf32> to vector<9xf32>
    %104 = vector.shape_cast %103 : vector<9xf32> to vector<9x1xf32>
    %105 = vector.broadcast %104 : vector<9x1xf32> to vector<9x9xf32>
    %106 = arith.subf %102, %105 : vector<9x9xf32>
    %107 = math.exp %106 : vector<9x9xf32>
    %cst_61 = arith.constant dense<0.000000e+00> : vector<9xf32>
    %108 = vector.multi_reduction <add>, %107, %cst_61 [1] : vector<9x9xf32> to vector<9xf32>
    %109 = vector.shape_cast %108 : vector<9xf32> to vector<9x1xf32>
    %110 = tpu.reciprocal %109 {approx = true} : vector<9x1xf32> -> vector<9x1xf32>
    %111 = vector.broadcast %110 : vector<9x1xf32> to vector<9x9xf32>
    %112 = arith.mulf %107, %111 : vector<9x9xf32>
    %cst_62 = arith.constant dense<0.000000e+00> : vector<9x16xf32>
    %113 = tpu.matmul %112, %99, %cst_62 {dimension_numbers = #tpu.dot_dimension_numbers<[1], [0], [0], [1], [0, 0, 1, 1], [], []>} : vector<9x9xf32>, vector<9x16xf32>, vector<9x16xf32> -> vector<9x16xf32>
    %114 = arith.truncf %113 : vector<9x16xf32> to vector<9x16xbf16>
    %115 = vector.extract_strided_slice %8 {offsets = [48, 0], sizes = [16, 64], strides = [1, 1]} : vector<64x64xbf16> to vector<16x64xbf16>
    %cst_63 = arith.constant dense<0.000000e+00> : vector<9x64xf32>
    %116 = tpu.matmul %114, %115, %cst_63 {dimension_numbers = #tpu.dot_dimension_numbers<[1], [0], [0], [1], [0, 0, 1, 1], [], []>} : vector<9x16xbf16>, vector<16x64xbf16>, vector<9x64xf32> -> vector<9x64xf32>
    %117 = arith.addf %96, %116 : vector<9x64xf32>
    %118 = vector.broadcast %10 : vector<1x64xf32> to vector<9x64xf32>
    %119 = arith.addf %117, %118 : vector<9x64xf32>
    %120 = arith.addf %119, %28 : vector<9x64xf32>
    %cst_64 = arith.constant dense<0.000000e+00> : vector<9xf32>
    %121 = vector.multi_reduction <add>, %120, %cst_64 [1] : vector<9x64xf32> to vector<9xf32>
    %122 = vector.shape_cast %121 : vector<9xf32> to vector<9x1xf32>
    %cst_65 = arith.constant 6.400000e+01 : f32
    %123 = vector.broadcast %cst_65 : f32 to vector<9x1xf32>
    %124 = arith.divf %122, %123 : vector<9x1xf32>
    %125 = vector.broadcast %124 : vector<9x1xf32> to vector<9x64xf32>
    %126 = arith.subf %120, %125 : vector<9x64xf32>
    %127 = arith.mulf %126, %126 : vector<9x64xf32>
    %cst_66 = arith.constant dense<0.000000e+00> : vector<9xf32>
    %128 = vector.multi_reduction <add>, %127, %cst_66 [1] : vector<9x64xf32> to vector<9xf32>
    %129 = vector.shape_cast %128 : vector<9xf32> to vector<9x1xf32>
    %cst_67 = arith.constant 6.400000e+01 : f32
    %130 = vector.broadcast %cst_67 : f32 to vector<9x1xf32>
    %131 = arith.divf %129, %130 : vector<9x1xf32>
    %cst_68 = arith.constant 9.99999996E-13 : f32
    %132 = vector.broadcast %cst_68 : f32 to vector<9x1xf32>
    %133 = arith.addf %131, %132 : vector<9x1xf32>
    %134 = math.rsqrt %133 : vector<9x1xf32>
    %135 = vector.broadcast %134 : vector<9x1xf32> to vector<9x64xf32>
    %136 = arith.mulf %126, %135 : vector<9x64xf32>
    %137 = vector.broadcast %12 : vector<1x64xf32> to vector<9x64xf32>
    %138 = arith.mulf %136, %137 : vector<9x64xf32>
    %139 = vector.broadcast %14 : vector<1x64xf32> to vector<9x64xf32>
    %140 = arith.addf %138, %139 : vector<9x64xf32>
    %141 = arith.truncf %140 : vector<9x64xf32> to vector<9x64xbf16>
    %cst_69 = arith.constant dense<0.000000e+00> : vector<9x256xf32>
    %142 = tpu.matmul %141, %16, %cst_69 {dimension_numbers = #tpu.dot_dimension_numbers<[1], [0], [0], [1], [0, 0, 1, 1], [], []>} : vector<9x64xbf16>, vector<64x256xbf16>, vector<9x256xf32> -> vector<9x256xf32>
    %143 = vector.broadcast %18 : vector<1x256xf32> to vector<9x256xf32>
    %144 = arith.addf %142, %143 : vector<9x256xf32>
    %cst_70 = arith.constant 5.000000e-01 : f32
    %145 = vector.broadcast %cst_70 : f32 to vector<9x256xf32>
    %146 = arith.mulf %145, %144 : vector<9x256xf32>
    %cst_71 = arith.constant 0.707106769 : f32
    %147 = vector.broadcast %cst_71 : f32 to vector<9x256xf32>
    %148 = arith.mulf %144, %147 : vector<9x256xf32>
    %149 = math.absf %148 : vector<9x256xf32>
    %cst_72 = arith.constant 0.327591091 : f32
    %150 = vector.broadcast %cst_72 : f32 to vector<9x256xf32>
    %151 = arith.mulf %150, %149 : vector<9x256xf32>
    %cst_73 = arith.constant 1.000000e+00 : f32
    %152 = vector.broadcast %cst_73 : f32 to vector<9x256xf32>
    %153 = arith.addf %152, %151 : vector<9x256xf32>
    %cst_74 = arith.constant 1.000000e+00 : f32
    %154 = vector.broadcast %cst_74 : f32 to vector<9x256xf32>
    %155 = arith.divf %154, %153 : vector<9x256xf32>
    %cst_75 = arith.constant 1.06140542 : f32
    %156 = vector.broadcast %cst_75 : f32 to vector<9x256xf32>
    %157 = arith.mulf %155, %156 : vector<9x256xf32>
    %cst_76 = arith.constant -1.45315206 : f32
    %158 = vector.broadcast %cst_76 : f32 to vector<9x256xf32>
    %159 = arith.addf %158, %157 : vector<9x256xf32>
    %160 = arith.mulf %155, %159 : vector<9x256xf32>
    %cst_77 = arith.constant 1.42141378 : f32
    %161 = vector.broadcast %cst_77 : f32 to vector<9x256xf32>
    %162 = arith.addf %161, %160 : vector<9x256xf32>
    %163 = arith.mulf %155, %162 : vector<9x256xf32>
    %cst_78 = arith.constant -0.284496725 : f32
    %164 = vector.broadcast %cst_78 : f32 to vector<9x256xf32>
    %165 = arith.addf %164, %163 : vector<9x256xf32>
    %166 = arith.mulf %155, %165 : vector<9x256xf32>
    %cst_79 = arith.constant 0.254829586 : f32
    %167 = vector.broadcast %cst_79 : f32 to vector<9x256xf32>
    %168 = arith.addf %167, %166 : vector<9x256xf32>
    %169 = arith.mulf %155, %168 : vector<9x256xf32>
    %cst_80 = arith.constant 0.000000e+00 : f32
    %170 = vector.broadcast %cst_80 : f32 to vector<9x256xf32>
    %171 = arith.subf %170, %148 : vector<9x256xf32>
    %172 = arith.mulf %171, %148 : vector<9x256xf32>
    %173 = math.exp %172 : vector<9x256xf32>
    %174 = arith.mulf %169, %173 : vector<9x256xf32>
    %cst_81 = arith.constant 1.000000e+00 : f32
    %175 = vector.broadcast %cst_81 : f32 to vector<9x256xf32>
    %176 = arith.subf %175, %174 : vector<9x256xf32>
    %cst_82 = arith.constant 0.000000e+00 : f32
    %177 = vector.broadcast %cst_82 : f32 to vector<9x256xf32>
    %178 = arith.cmpf oge, %148, %177 : vector<9x256xf32>
    %cst_83 = arith.constant 0.000000e+00 : f32
    %179 = vector.broadcast %cst_83 : f32 to vector<9x256xf32>
    %180 = arith.subf %179, %176 : vector<9x256xf32>
    %181 = arith.select %178, %176, %180 : vector<9x256xi1>, vector<9x256xf32>
    %cst_84 = arith.constant 1.000000e+00 : f32
    %182 = vector.broadcast %cst_84 : f32 to vector<9x256xf32>
    %183 = arith.addf %182, %181 : vector<9x256xf32>
    %184 = arith.mulf %146, %183 : vector<9x256xf32>
    %185 = arith.truncf %184 : vector<9x256xf32> to vector<9x256xbf16>
    %cst_85 = arith.constant dense<0.000000e+00> : vector<9x64xf32>
    %186 = tpu.matmul %185, %20, %cst_85 {dimension_numbers = #tpu.dot_dimension_numbers<[1], [0], [0], [1], [0, 0, 1, 1], [], []>} : vector<9x256xbf16>, vector<256x64xbf16>, vector<9x64xf32> -> vector<9x64xf32>
    %187 = vector.broadcast %22 : vector<1x64xf32> to vector<9x64xf32>
    %188 = arith.addf %186, %187 : vector<9x64xf32>
    %189 = arith.addf %188, %140 : vector<9x64xf32>
    %cst_86 = arith.constant dense<0.000000e+00> : vector<9xf32>
    %190 = vector.multi_reduction <add>, %189, %cst_86 [1] : vector<9x64xf32> to vector<9xf32>
    %191 = vector.shape_cast %190 : vector<9xf32> to vector<9x1xf32>
    %cst_87 = arith.constant 6.400000e+01 : f32
    %192 = vector.broadcast %cst_87 : f32 to vector<9x1xf32>
    %193 = arith.divf %191, %192 : vector<9x1xf32>
    %194 = vector.broadcast %193 : vector<9x1xf32> to vector<9x64xf32>
    %195 = arith.subf %189, %194 : vector<9x64xf32>
    %196 = arith.mulf %195, %195 : vector<9x64xf32>
    %cst_88 = arith.constant dense<0.000000e+00> : vector<9xf32>
    %197 = vector.multi_reduction <add>, %196, %cst_88 [1] : vector<9x64xf32> to vector<9xf32>
    %198 = vector.shape_cast %197 : vector<9xf32> to vector<9x1xf32>
    %cst_89 = arith.constant 6.400000e+01 : f32
    %199 = vector.broadcast %cst_89 : f32 to vector<9x1xf32>
    %200 = arith.divf %198, %199 : vector<9x1xf32>
    %cst_90 = arith.constant 9.99999996E-13 : f32
    %201 = vector.broadcast %cst_90 : f32 to vector<9x1xf32>
    %202 = arith.addf %200, %201 : vector<9x1xf32>
    %203 = math.rsqrt %202 : vector<9x1xf32>
    %204 = vector.broadcast %203 : vector<9x1xf32> to vector<9x64xf32>
    %205 = arith.mulf %195, %204 : vector<9x64xf32>
    %206 = vector.broadcast %24 : vector<1x64xf32> to vector<9x64xf32>
    %207 = arith.mulf %205, %206 : vector<9x64xf32>
    %208 = vector.broadcast %26 : vector<1x64xf32> to vector<9x64xf32>
    %209 = arith.addf %207, %208 : vector<9x64xf32>
    %c0_91 = arith.constant 0 : index
    %c0_92 = arith.constant 0 : index
    %c0_93 = arith.constant 0 : index
    %210 = vector.load %arg17[%c0_91, %c0_92, %c0_93] : memref<2x9x64xf32, #tpu.memory_space<vmem>>, vector<1x9x64xf32>
    %211 = vector.shape_cast %210 : vector<1x9x64xf32> to vector<9x64xf32>
    %212 = vector.shape_cast %209 : vector<9x64xf32> to vector<1x9x64xf32>
    tpu.vector_store %arg17[%c0_91, %c0_92, %c0_93], %212 {strides = array<i32>} : memref<2x9x64xf32, #tpu.memory_space<vmem>>, vector<1x9x64xf32>,
    %c1_i32 = arith.constant 1 : i32
    %213 = arith.cmpi eq, %arg0, %c1_i32 : i32
    %214 = arith.extui %213 : i1 to i32
    %c0_i32_94 = arith.constant 0 : i32
    %215 = arith.cmpi ne, %214, %c0_i32_94 : i32
    scf.if %215 {
      %405 = vector.extract_strided_slice %209 {offsets = [8, 0], sizes = [1, 64], strides = [1, 1]} : vector<9x64xf32> to vector<1x64xf32>
      %406 = arith.truncf %405 : vector<1x64xf32> to vector<1x64xbf16>
      %c0_155 = arith.constant 0 : index
      %c0_156 = arith.constant 0 : index
      %407 = vector.load %arg14[%c0_155, %c0_156] : memref<64x3xbf16, #tpu.memory_space<vmem>>, vector<64x3xbf16>
      %cst_157 = arith.constant dense<0.000000e+00> : vector<1x3xf32>
      %408 = tpu.matmul %406, %407, %cst_157 {dimension_numbers = #tpu.dot_dimension_numbers<[1], [0], [0], [1], [0, 0, 1, 1], [], []>} : vector<1x64xbf16>, vector<64x3xbf16>, vector<1x3xf32> -> vector<1x3xf32>
      %c0_158 = arith.constant 0 : index
      %c0_159 = arith.constant 0 : index
      %409 = vector.load %arg15[%c0_158, %c0_159] : memref<1x3xf32, #tpu.memory_space<vmem>>, vector<1x3xf32>
      %410 = arith.addf %408, %409 : vector<1x3xf32>
      %c0_160 = arith.constant 0 : index
      %c0_161 = arith.constant 0 : index
      %c0_162 = arith.constant 0 : index
      %411 = vector.load %arg16[%c0_160, %c0_161, %c0_162] : memref<2x1x3xf32, #tpu.memory_space<vmem>>, vector<1x1x3xf32>
      %412 = vector.shape_cast %411 : vector<1x1x3xf32> to vector<1x3xf32>
      %413 = vector.shape_cast %410 : vector<1x3xf32> to vector<1x1x3xf32>
      tpu.vector_store %arg16[%c0_160, %c0_161, %c0_162], %413 {strides = array<i32>} : memref<2x1x3xf32, #tpu.memory_space<vmem>>, vector<1x1x3xf32>,
    } else {
    }
    %c1 = arith.constant 1 : index
    %c0_95 = arith.constant 0 : index
    %c0_96 = arith.constant 0 : index
    %216 = vector.load %arg17[%c1, %c0_95, %c0_96] : memref<2x9x64xf32, #tpu.memory_space<vmem>>, vector<1x9x64xf32>
    %217 = vector.shape_cast %216 : vector<1x9x64xf32> to vector<9x64xf32>
    %218 = arith.truncf %217 : vector<9x64xf32> to vector<9x64xbf16>
    %cst_97 = arith.constant dense<0.000000e+00> : vector<9x192xf32>
    %219 = tpu.matmul %218, %4, %cst_97 {dimension_numbers = #tpu.dot_dimension_numbers<[1], [0], [0], [1], [0, 0, 1, 1], [], []>} : vector<9x64xbf16>, vector<64x192xbf16>, vector<9x192xf32> -> vector<9x192xf32>
    %220 = vector.broadcast %6 : vector<1x192xf32> to vector<9x192xf32>
    %221 = arith.addf %219, %220 : vector<9x192xf32>
    %cst_98 = arith.constant 0.000000e+00 : f32
    %222 = vector.broadcast %cst_98 : f32 to vector<9x64xf32>
    %223 = vector.extract_strided_slice %221 {offsets = [0, 0], sizes = [9, 16], strides = [1, 1]} : vector<9x192xf32> to vector<9x16xf32>
    %224 = vector.extract_strided_slice %221 {offsets = [0, 64], sizes = [9, 16], strides = [1, 1]} : vector<9x192xf32> to vector<9x16xf32>
    %225 = vector.extract_strided_slice %221 {offsets = [0, 128], sizes = [9, 16], strides = [1, 1]} : vector<9x192xf32> to vector<9x16xf32>
    %cst_99 = arith.constant dense<0.000000e+00> : vector<9x9xf32>
    %226 = tpu.matmul %223, %224, %cst_99 {dimension_numbers = #tpu.dot_dimension_numbers<[1], [1], [0], [0], [0, 0, 1, 0], [], []>} : vector<9x16xf32>, vector<9x16xf32>, vector<9x9xf32> -> vector<9x9xf32>
    %cst_100 = arith.constant 2.500000e-01 : f32
    %227 = vector.broadcast %cst_100 : f32 to vector<9x9xf32>
    %228 = arith.mulf %226, %227 : vector<9x9xf32>
    %cst_101 = arith.constant dense<0xFF800000> : vector<9xf32>
    %229 = vector.multi_reduction <maximumf>, %228, %cst_101 [1] : vector<9x9xf32> to vector<9xf32>
    %230 = vector.shape_cast %229 : vector<9xf32> to vector<9x1xf32>
    %231 = vector.broadcast %230 : vector<9x1xf32> to vector<9x9xf32>
    %232 = arith.subf %228, %231 : vector<9x9xf32>
    %233 = math.exp %232 : vector<9x9xf32>
    %cst_102 = arith.constant dense<0.000000e+00> : vector<9xf32>
    %234 = vector.multi_reduction <add>, %233, %cst_102 [1] : vector<9x9xf32> to vector<9xf32>
    %235 = vector.shape_cast %234 : vector<9xf32> to vector<9x1xf32>
    %236 = tpu.reciprocal %235 {approx = true} : vector<9x1xf32> -> vector<9x1xf32>
    %237 = vector.broadcast %236 : vector<9x1xf32> to vector<9x9xf32>
    %238 = arith.mulf %233, %237 : vector<9x9xf32>
    %cst_103 = arith.constant dense<0.000000e+00> : vector<9x16xf32>
    %239 = tpu.matmul %238, %225, %cst_103 {dimension_numbers = #tpu.dot_dimension_numbers<[1], [0], [0], [1], [0, 0, 1, 1], [], []>} : vector<9x9xf32>, vector<9x16xf32>, vector<9x16xf32> -> vector<9x16xf32>
    %240 = arith.truncf %239 : vector<9x16xf32> to vector<9x16xbf16>
    %241 = vector.extract_strided_slice %8 {offsets = [0, 0], sizes = [16, 64], strides = [1, 1]} : vector<64x64xbf16> to vector<16x64xbf16>
    %cst_104 = arith.constant dense<0.000000e+00> : vector<9x64xf32>
    %242 = tpu.matmul %240, %241, %cst_104 {dimension_numbers = #tpu.dot_dimension_numbers<[1], [0], [0], [1], [0, 0, 1, 1], [], []>} : vector<9x16xbf16>, vector<16x64xbf16>, vector<9x64xf32> -> vector<9x64xf32>
    %243 = arith.addf %222, %242 : vector<9x64xf32>
    %244 = vector.extract_strided_slice %221 {offsets = [0, 16], sizes = [9, 16], strides = [1, 1]} : vector<9x192xf32> to vector<9x16xf32>
    %245 = vector.extract_strided_slice %221 {offsets = [0, 80], sizes = [9, 16], strides = [1, 1]} : vector<9x192xf32> to vector<9x16xf32>
    %246 = vector.extract_strided_slice %221 {offsets = [0, 144], sizes = [9, 16], strides = [1, 1]} : vector<9x192xf32> to vector<9x16xf32>
    %cst_105 = arith.constant dense<0.000000e+00> : vector<9x9xf32>
    %247 = tpu.matmul %244, %245, %cst_105 {dimension_numbers = #tpu.dot_dimension_numbers<[1], [1], [0], [0], [0, 0, 1, 0], [], []>} : vector<9x16xf32>, vector<9x16xf32>, vector<9x9xf32> -> vector<9x9xf32>
    %cst_106 = arith.constant 2.500000e-01 : f32
    %248 = vector.broadcast %cst_106 : f32 to vector<9x9xf32>
    %249 = arith.mulf %247, %248 : vector<9x9xf32>
    %cst_107 = arith.constant dense<0xFF800000> : vector<9xf32>
    %250 = vector.multi_reduction <maximumf>, %249, %cst_107 [1] : vector<9x9xf32> to vector<9xf32>
    %251 = vector.shape_cast %250 : vector<9xf32> to vector<9x1xf32>
    %252 = vector.broadcast %251 : vector<9x1xf32> to vector<9x9xf32>
    %253 = arith.subf %249, %252 : vector<9x9xf32>
    %254 = math.exp %253 : vector<9x9xf32>
    %cst_108 = arith.constant dense<0.000000e+00> : vector<9xf32>
    %255 = vector.multi_reduction <add>, %254, %cst_108 [1] : vector<9x9xf32> to vector<9xf32>
    %256 = vector.shape_cast %255 : vector<9xf32> to vector<9x1xf32>
    %257 = tpu.reciprocal %256 {approx = true} : vector<9x1xf32> -> vector<9x1xf32>
    %258 = vector.broadcast %257 : vector<9x1xf32> to vector<9x9xf32>
    %259 = arith.mulf %254, %258 : vector<9x9xf32>
    %cst_109 = arith.constant dense<0.000000e+00> : vector<9x16xf32>
    %260 = tpu.matmul %259, %246, %cst_109 {dimension_numbers = #tpu.dot_dimension_numbers<[1], [0], [0], [1], [0, 0, 1, 1], [], []>} : vector<9x9xf32>, vector<9x16xf32>, vector<9x16xf32> -> vector<9x16xf32>
    %261 = arith.truncf %260 : vector<9x16xf32> to vector<9x16xbf16>
    %262 = vector.extract_strided_slice %8 {offsets = [16, 0], sizes = [16, 64], strides = [1, 1]} : vector<64x64xbf16> to vector<16x64xbf16>
    %cst_110 = arith.constant dense<0.000000e+00> : vector<9x64xf32>
    %263 = tpu.matmul %261, %262, %cst_110 {dimension_numbers = #tpu.dot_dimension_numbers<[1], [0], [0], [1], [0, 0, 1, 1], [], []>} : vector<9x16xbf16>, vector<16x64xbf16>, vector<9x64xf32> -> vector<9x64xf32>
    %264 = arith.addf %243, %263 : vector<9x64xf32>
    %265 = vector.extract_strided_slice %221 {offsets = [0, 32], sizes = [9, 16], strides = [1, 1]} : vector<9x192xf32> to vector<9x16xf32>
    %266 = vector.extract_strided_slice %221 {offsets = [0, 96], sizes = [9, 16], strides = [1, 1]} : vector<9x192xf32> to vector<9x16xf32>
    %267 = vector.extract_strided_slice %221 {offsets = [0, 160], sizes = [9, 16], strides = [1, 1]} : vector<9x192xf32> to vector<9x16xf32>
    %cst_111 = arith.constant dense<0.000000e+00> : vector<9x9xf32>
    %268 = tpu.matmul %265, %266, %cst_111 {dimension_numbers = #tpu.dot_dimension_numbers<[1], [1], [0], [0], [0, 0, 1, 0], [], []>} : vector<9x16xf32>, vector<9x16xf32>, vector<9x9xf32> -> vector<9x9xf32>
    %cst_112 = arith.constant 2.500000e-01 : f32
    %269 = vector.broadcast %cst_112 : f32 to vector<9x9xf32>
    %270 = arith.mulf %268, %269 : vector<9x9xf32>
    %cst_113 = arith.constant dense<0xFF800000> : vector<9xf32>
    %271 = vector.multi_reduction <maximumf>, %270, %cst_113 [1] : vector<9x9xf32> to vector<9xf32>
    %272 = vector.shape_cast %271 : vector<9xf32> to vector<9x1xf32>
    %273 = vector.broadcast %272 : vector<9x1xf32> to vector<9x9xf32>
    %274 = arith.subf %270, %273 : vector<9x9xf32>
    %275 = math.exp %274 : vector<9x9xf32>
    %cst_114 = arith.constant dense<0.000000e+00> : vector<9xf32>
    %276 = vector.multi_reduction <add>, %275, %cst_114 [1] : vector<9x9xf32> to vector<9xf32>
    %277 = vector.shape_cast %276 : vector<9xf32> to vector<9x1xf32>
    %278 = tpu.reciprocal %277 {approx = true} : vector<9x1xf32> -> vector<9x1xf32>
    %279 = vector.broadcast %278 : vector<9x1xf32> to vector<9x9xf32>
    %280 = arith.mulf %275, %279 : vector<9x9xf32>
    %cst_115 = arith.constant dense<0.000000e+00> : vector<9x16xf32>
    %281 = tpu.matmul %280, %267, %cst_115 {dimension_numbers = #tpu.dot_dimension_numbers<[1], [0], [0], [1], [0, 0, 1, 1], [], []>} : vector<9x9xf32>, vector<9x16xf32>, vector<9x16xf32> -> vector<9x16xf32>
    %282 = arith.truncf %281 : vector<9x16xf32> to vector<9x16xbf16>
    %283 = vector.extract_strided_slice %8 {offsets = [32, 0], sizes = [16, 64], strides = [1, 1]} : vector<64x64xbf16> to vector<16x64xbf16>
    %cst_116 = arith.constant dense<0.000000e+00> : vector<9x64xf32>
    %284 = tpu.matmul %282, %283, %cst_116 {dimension_numbers = #tpu.dot_dimension_numbers<[1], [0], [0], [1], [0, 0, 1, 1], [], []>} : vector<9x16xbf16>, vector<16x64xbf16>, vector<9x64xf32> -> vector<9x64xf32>
    %285 = arith.addf %264, %284 : vector<9x64xf32>
    %286 = vector.extract_strided_slice %221 {offsets = [0, 48], sizes = [9, 16], strides = [1, 1]} : vector<9x192xf32> to vector<9x16xf32>
    %287 = vector.extract_strided_slice %221 {offsets = [0, 112], sizes = [9, 16], strides = [1, 1]} : vector<9x192xf32> to vector<9x16xf32>
    %288 = vector.extract_strided_slice %221 {offsets = [0, 176], sizes = [9, 16], strides = [1, 1]} : vector<9x192xf32> to vector<9x16xf32>
    %cst_117 = arith.constant dense<0.000000e+00> : vector<9x9xf32>
    %289 = tpu.matmul %286, %287, %cst_117 {dimension_numbers = #tpu.dot_dimension_numbers<[1], [1], [0], [0], [0, 0, 1, 0], [], []>} : vector<9x16xf32>, vector<9x16xf32>, vector<9x9xf32> -> vector<9x9xf32>
    %cst_118 = arith.constant 2.500000e-01 : f32
    %290 = vector.broadcast %cst_118 : f32 to vector<9x9xf32>
    %291 = arith.mulf %289, %290 : vector<9x9xf32>
    %cst_119 = arith.constant dense<0xFF800000> : vector<9xf32>
    %292 = vector.multi_reduction <maximumf>, %291, %cst_119 [1] : vector<9x9xf32> to vector<9xf32>
    %293 = vector.shape_cast %292 : vector<9xf32> to vector<9x1xf32>
    %294 = vector.broadcast %293 : vector<9x1xf32> to vector<9x9xf32>
    %295 = arith.subf %291, %294 : vector<9x9xf32>
    %296 = math.exp %295 : vector<9x9xf32>
    %cst_120 = arith.constant dense<0.000000e+00> : vector<9xf32>
    %297 = vector.multi_reduction <add>, %296, %cst_120 [1] : vector<9x9xf32> to vector<9xf32>
    %298 = vector.shape_cast %297 : vector<9xf32> to vector<9x1xf32>
    %299 = tpu.reciprocal %298 {approx = true} : vector<9x1xf32> -> vector<9x1xf32>
    %300 = vector.broadcast %299 : vector<9x1xf32> to vector<9x9xf32>
    %301 = arith.mulf %296, %300 : vector<9x9xf32>
    %cst_121 = arith.constant dense<0.000000e+00> : vector<9x16xf32>
    %302 = tpu.matmul %301, %288, %cst_121 {dimension_numbers = #tpu.dot_dimension_numbers<[1], [0], [0], [1], [0, 0, 1, 1], [], []>} : vector<9x9xf32>, vector<9x16xf32>, vector<9x16xf32> -> vector<9x16xf32>
    %303 = arith.truncf %302 : vector<9x16xf32> to vector<9x16xbf16>
    %304 = vector.extract_strided_slice %8 {offsets = [48, 0], sizes = [16, 64], strides = [1, 1]} : vector<64x64xbf16> to vector<16x64xbf16>
    %cst_122 = arith.constant dense<0.000000e+00> : vector<9x64xf32>
    %305 = tpu.matmul %303, %304, %cst_122 {dimension_numbers = #tpu.dot_dimension_numbers<[1], [0], [0], [1], [0, 0, 1, 1], [], []>} : vector<9x16xbf16>, vector<16x64xbf16>, vector<9x64xf32> -> vector<9x64xf32>
    %306 = arith.addf %285, %305 : vector<9x64xf32>
    %307 = vector.broadcast %10 : vector<1x64xf32> to vector<9x64xf32>
    %308 = arith.addf %306, %307 : vector<9x64xf32>
    %309 = arith.addf %308, %217 : vector<9x64xf32>
    %cst_123 = arith.constant dense<0.000000e+00> : vector<9xf32>
    %310 = vector.multi_reduction <add>, %309, %cst_123 [1] : vector<9x64xf32> to vector<9xf32>
    %311 = vector.shape_cast %310 : vector<9xf32> to vector<9x1xf32>
    %cst_124 = arith.constant 6.400000e+01 : f32
    %312 = vector.broadcast %cst_124 : f32 to vector<9x1xf32>
    %313 = arith.divf %311, %312 : vector<9x1xf32>
    %314 = vector.broadcast %313 : vector<9x1xf32> to vector<9x64xf32>
    %315 = arith.subf %309, %314 : vector<9x64xf32>
    %316 = arith.mulf %315, %315 : vector<9x64xf32>
    %cst_125 = arith.constant dense<0.000000e+00> : vector<9xf32>
    %317 = vector.multi_reduction <add>, %316, %cst_125 [1] : vector<9x64xf32> to vector<9xf32>
    %318 = vector.shape_cast %317 : vector<9xf32> to vector<9x1xf32>
    %cst_126 = arith.constant 6.400000e+01 : f32
    %319 = vector.broadcast %cst_126 : f32 to vector<9x1xf32>
    %320 = arith.divf %318, %319 : vector<9x1xf32>
    %cst_127 = arith.constant 9.99999996E-13 : f32
    %321 = vector.broadcast %cst_127 : f32 to vector<9x1xf32>
    %322 = arith.addf %320, %321 : vector<9x1xf32>
    %323 = math.rsqrt %322 : vector<9x1xf32>
    %324 = vector.broadcast %323 : vector<9x1xf32> to vector<9x64xf32>
    %325 = arith.mulf %315, %324 : vector<9x64xf32>
    %326 = vector.broadcast %12 : vector<1x64xf32> to vector<9x64xf32>
    %327 = arith.mulf %325, %326 : vector<9x64xf32>
    %328 = vector.broadcast %14 : vector<1x64xf32> to vector<9x64xf32>
    %329 = arith.addf %327, %328 : vector<9x64xf32>
    %330 = arith.truncf %329 : vector<9x64xf32> to vector<9x64xbf16>
    %cst_128 = arith.constant dense<0.000000e+00> : vector<9x256xf32>
    %331 = tpu.matmul %330, %16, %cst_128 {dimension_numbers = #tpu.dot_dimension_numbers<[1], [0], [0], [1], [0, 0, 1, 1], [], []>} : vector<9x64xbf16>, vector<64x256xbf16>, vector<9x256xf32> -> vector<9x256xf32>
    %332 = vector.broadcast %18 : vector<1x256xf32> to vector<9x256xf32>
    %333 = arith.addf %331, %332 : vector<9x256xf32>
    %cst_129 = arith.constant 5.000000e-01 : f32
    %334 = vector.broadcast %cst_129 : f32 to vector<9x256xf32>
    %335 = arith.mulf %334, %333 : vector<9x256xf32>
    %cst_130 = arith.constant 0.707106769 : f32
    %336 = vector.broadcast %cst_130 : f32 to vector<9x256xf32>
    %337 = arith.mulf %333, %336 : vector<9x256xf32>
    %338 = math.absf %337 : vector<9x256xf32>
    %cst_131 = arith.constant 0.327591091 : f32
    %339 = vector.broadcast %cst_131 : f32 to vector<9x256xf32>
    %340 = arith.mulf %339, %338 : vector<9x256xf32>
    %cst_132 = arith.constant 1.000000e+00 : f32
    %341 = vector.broadcast %cst_132 : f32 to vector<9x256xf32>
    %342 = arith.addf %341, %340 : vector<9x256xf32>
    %cst_133 = arith.constant 1.000000e+00 : f32
    %343 = vector.broadcast %cst_133 : f32 to vector<9x256xf32>
    %344 = arith.divf %343, %342 : vector<9x256xf32>
    %cst_134 = arith.constant 1.06140542 : f32
    %345 = vector.broadcast %cst_134 : f32 to vector<9x256xf32>
    %346 = arith.mulf %344, %345 : vector<9x256xf32>
    %cst_135 = arith.constant -1.45315206 : f32
    %347 = vector.broadcast %cst_135 : f32 to vector<9x256xf32>
    %348 = arith.addf %347, %346 : vector<9x256xf32>
    %349 = arith.mulf %344, %348 : vector<9x256xf32>
    %cst_136 = arith.constant 1.42141378 : f32
    %350 = vector.broadcast %cst_136 : f32 to vector<9x256xf32>
    %351 = arith.addf %350, %349 : vector<9x256xf32>
    %352 = arith.mulf %344, %351 : vector<9x256xf32>
    %cst_137 = arith.constant -0.284496725 : f32
    %353 = vector.broadcast %cst_137 : f32 to vector<9x256xf32>
    %354 = arith.addf %353, %352 : vector<9x256xf32>
    %355 = arith.mulf %344, %354 : vector<9x256xf32>
    %cst_138 = arith.constant 0.254829586 : f32
    %356 = vector.broadcast %cst_138 : f32 to vector<9x256xf32>
    %357 = arith.addf %356, %355 : vector<9x256xf32>
    %358 = arith.mulf %344, %357 : vector<9x256xf32>
    %cst_139 = arith.constant 0.000000e+00 : f32
    %359 = vector.broadcast %cst_139 : f32 to vector<9x256xf32>
    %360 = arith.subf %359, %337 : vector<9x256xf32>
    %361 = arith.mulf %360, %337 : vector<9x256xf32>
    %362 = math.exp %361 : vector<9x256xf32>
    %363 = arith.mulf %358, %362 : vector<9x256xf32>
    %cst_140 = arith.constant 1.000000e+00 : f32
    %364 = vector.broadcast %cst_140 : f32 to vector<9x256xf32>
    %365 = arith.subf %364, %363 : vector<9x256xf32>
    %cst_141 = arith.constant 0.000000e+00 : f32
    %366 = vector.broadcast %cst_141 : f32 to vector<9x256xf32>
    %367 = arith.cmpf oge, %337, %366 : vector<9x256xf32>
    %cst_142 = arith.constant 0.000000e+00 : f32
    %368 = vector.broadcast %cst_142 : f32 to vector<9x256xf32>
    %369 = arith.subf %368, %365 : vector<9x256xf32>
    %370 = arith.select %367, %365, %369 : vector<9x256xi1>, vector<9x256xf32>
    %cst_143 = arith.constant 1.000000e+00 : f32
    %371 = vector.broadcast %cst_143 : f32 to vector<9x256xf32>
    %372 = arith.addf %371, %370 : vector<9x256xf32>
    %373 = arith.mulf %335, %372 : vector<9x256xf32>
    %374 = arith.truncf %373 : vector<9x256xf32> to vector<9x256xbf16>
    %cst_144 = arith.constant dense<0.000000e+00> : vector<9x64xf32>
    %375 = tpu.matmul %374, %20, %cst_144 {dimension_numbers = #tpu.dot_dimension_numbers<[1], [0], [0], [1], [0, 0, 1, 1], [], []>} : vector<9x256xbf16>, vector<256x64xbf16>, vector<9x64xf32> -> vector<9x64xf32>
    %376 = vector.broadcast %22 : vector<1x64xf32> to vector<9x64xf32>
    %377 = arith.addf %375, %376 : vector<9x64xf32>
    %378 = arith.addf %377, %329 : vector<9x64xf32>
    %cst_145 = arith.constant dense<0.000000e+00> : vector<9xf32>
    %379 = vector.multi_reduction <add>, %378, %cst_145 [1] : vector<9x64xf32> to vector<9xf32>
    %380 = vector.shape_cast %379 : vector<9xf32> to vector<9x1xf32>
    %cst_146 = arith.constant 6.400000e+01 : f32
    %381 = vector.broadcast %cst_146 : f32 to vector<9x1xf32>
    %382 = arith.divf %380, %381 : vector<9x1xf32>
    %383 = vector.broadcast %382 : vector<9x1xf32> to vector<9x64xf32>
    %384 = arith.subf %378, %383 : vector<9x64xf32>
    %385 = arith.mulf %384, %384 : vector<9x64xf32>
    %cst_147 = arith.constant dense<0.000000e+00> : vector<9xf32>
    %386 = vector.multi_reduction <add>, %385, %cst_147 [1] : vector<9x64xf32> to vector<9xf32>
    %387 = vector.shape_cast %386 : vector<9xf32> to vector<9x1xf32>
    %cst_148 = arith.constant 6.400000e+01 : f32
    %388 = vector.broadcast %cst_148 : f32 to vector<9x1xf32>
    %389 = arith.divf %387, %388 : vector<9x1xf32>
    %cst_149 = arith.constant 9.99999996E-13 : f32
    %390 = vector.broadcast %cst_149 : f32 to vector<9x1xf32>
    %391 = arith.addf %389, %390 : vector<9x1xf32>
    %392 = math.rsqrt %391 : vector<9x1xf32>
    %393 = vector.broadcast %392 : vector<9x1xf32> to vector<9x64xf32>
    %394 = arith.mulf %384, %393 : vector<9x64xf32>
    %395 = vector.broadcast %24 : vector<1x64xf32> to vector<9x64xf32>
    %396 = arith.mulf %394, %395 : vector<9x64xf32>
    %397 = vector.broadcast %26 : vector<1x64xf32> to vector<9x64xf32>
    %398 = arith.addf %396, %397 : vector<9x64xf32>
    %c1_150 = arith.constant 1 : index
    %c0_151 = arith.constant 0 : index
    %c0_152 = arith.constant 0 : index
    %399 = vector.load %arg17[%c1_150, %c0_151, %c0_152] : memref<2x9x64xf32, #tpu.memory_space<vmem>>, vector<1x9x64xf32>
    %400 = vector.shape_cast %399 : vector<1x9x64xf32> to vector<9x64xf32>
    %401 = vector.shape_cast %398 : vector<9x64xf32> to vector<1x9x64xf32>
    tpu.vector_store %arg17[%c1_150, %c0_151, %c0_152], %401 {strides = array<i32>} : memref<2x9x64xf32, #tpu.memory_space<vmem>>, vector<1x9x64xf32>,
    %c1_i32_153 = arith.constant 1 : i32
    %402 = arith.cmpi eq, %arg0, %c1_i32_153 : i32
    %403 = arith.extui %402 : i1 to i32
    %c0_i32_154 = arith.constant 0 : i32
    %404 = arith.cmpi ne, %403, %c0_i32_154 : i32
    scf.if %404 {
      %405 = vector.extract_strided_slice %398 {offsets = [8, 0], sizes = [1, 64], strides = [1, 1]} : vector<9x64xf32> to vector<1x64xf32>
      %406 = arith.truncf %405 : vector<1x64xf32> to vector<1x64xbf16>
      %c0_155 = arith.constant 0 : index
      %c0_156 = arith.constant 0 : index
      %407 = vector.load %arg14[%c0_155, %c0_156] : memref<64x3xbf16, #tpu.memory_space<vmem>>, vector<64x3xbf16>
      %cst_157 = arith.constant dense<0.000000e+00> : vector<1x3xf32>
      %408 = tpu.matmul %406, %407, %cst_157 {dimension_numbers = #tpu.dot_dimension_numbers<[1], [0], [0], [1], [0, 0, 1, 1], [], []>} : vector<1x64xbf16>, vector<64x3xbf16>, vector<1x3xf32> -> vector<1x3xf32>
      %c0_158 = arith.constant 0 : index
      %c0_159 = arith.constant 0 : index
      %409 = vector.load %arg15[%c0_158, %c0_159] : memref<1x3xf32, #tpu.memory_space<vmem>>, vector<1x3xf32>
      %410 = arith.addf %408, %409 : vector<1x3xf32>
      %c1_160 = arith.constant 1 : index
      %c0_161 = arith.constant 0 : index
      %c0_162 = arith.constant 0 : index
      %411 = vector.load %arg16[%c1_160, %c0_161, %c0_162] : memref<2x1x3xf32, #tpu.memory_space<vmem>>, vector<1x1x3xf32>
      %412 = vector.shape_cast %411 : vector<1x1x3xf32> to vector<1x3xf32>
      %413 = vector.shape_cast %410 : vector<1x3xf32> to vector<1x1x3xf32>
      tpu.vector_store %arg16[%c1_160, %c0_161, %c0_162], %413 {strides = array<i32>} : memref<2x1x3xf32, #tpu.memory_space<vmem>>, vector<1x1x3xf32>,
    } else {
    }
    return
  }
  func.func @transform_0(%arg0: i32) -> (i32, i32, i32) {
    %c0_i32 = arith.constant 0 : i32
    %c0_i32_0 = arith.constant 0 : i32
    %c0_i32_1 = arith.constant 0 : i32
    %c0_i32_2 = arith.constant 0 : i32
    return %c0_i32, %c0_i32_0, %c0_i32_1 : i32, i32, i32
  }
  func.func @transform_1(%arg0: i32) -> (i32, i32, i32) {
    %c0_i32 = arith.constant 0 : i32
    %c0_i32_0 = arith.constant 0 : i32
    %c0_i32_1 = arith.constant 0 : i32
    return %arg0, %c0_i32, %c0_i32_0 : i32, i32, i32
  }
  func.func @transform_2(%arg0: i32) -> (i32, i32, i32) {
    %c0_i32 = arith.constant 0 : i32
    %c0_i32_0 = arith.constant 0 : i32
    %c0_i32_1 = arith.constant 0 : i32
    return %arg0, %c0_i32, %c0_i32_0 : i32, i32, i32
  }
  func.func @transform_3(%arg0: i32) -> (i32, i32, i32) {
    %c0_i32 = arith.constant 0 : i32
    %c0_i32_0 = arith.constant 0 : i32
    %c0_i32_1 = arith.constant 0 : i32
    return %arg0, %c0_i32, %c0_i32_0 : i32, i32, i32
  }
  func.func @transform_4(%arg0: i32) -> (i32, i32, i32) {
    %c0_i32 = arith.constant 0 : i32
    %c0_i32_0 = arith.constant 0 : i32
    %c0_i32_1 = arith.constant 0 : i32
    return %arg0, %c0_i32, %c0_i32_0 : i32, i32, i32
  }
  func.func @transform_5(%arg0: i32) -> (i32, i32, i32) {
    %c0_i32 = arith.constant 0 : i32
    %c0_i32_0 = arith.constant 0 : i32
    %c0_i32_1 = arith.constant 0 : i32
    return %arg0, %c0_i32, %c0_i32_0 : i32, i32, i32
  }
  func.func @transform_6(%arg0: i32) -> (i32, i32, i32) {
    %c0_i32 = arith.constant 0 : i32
    %c0_i32_0 = arith.constant 0 : i32
    %c0_i32_1 = arith.constant 0 : i32
    return %arg0, %c0_i32, %c0_i32_0 : i32, i32, i32
  }
  func.func @transform_7(%arg0: i32) -> (i32, i32, i32) {
    %c0_i32 = arith.constant 0 : i32
    %c0_i32_0 = arith.constant 0 : i32
    %c0_i32_1 = arith.constant 0 : i32
    return %arg0, %c0_i32, %c0_i32_0 : i32, i32, i32
  }
  func.func @transform_8(%arg0: i32) -> (i32, i32, i32) {
    %c0_i32 = arith.constant 0 : i32
    %c0_i32_0 = arith.constant 0 : i32
    %c0_i32_1 = arith.constant 0 : i32
    return %arg0, %c0_i32, %c0_i32_0 : i32, i32, i32
  }
  func.func @transform_9(%arg0: i32) -> (i32, i32, i32) {
    %c0_i32 = arith.constant 0 : i32
    %c0_i32_0 = arith.constant 0 : i32
    %c0_i32_1 = arith.constant 0 : i32
    return %arg0, %c0_i32, %c0_i32_0 : i32, i32, i32
  }
  func.func @transform_10(%arg0: i32) -> (i32, i32, i32) {
    %c0_i32 = arith.constant 0 : i32
    %c0_i32_0 = arith.constant 0 : i32
    %c0_i32_1 = arith.constant 0 : i32
    return %arg0, %c0_i32, %c0_i32_0 : i32, i32, i32
  }
  func.func @transform_11(%arg0: i32) -> (i32, i32, i32) {
    %c0_i32 = arith.constant 0 : i32
    %c0_i32_0 = arith.constant 0 : i32
    %c0_i32_1 = arith.constant 0 : i32
    return %arg0, %c0_i32, %c0_i32_0 : i32, i32, i32
  }
  func.func @transform_12(%arg0: i32) -> (i32, i32, i32) {
    %c0_i32 = arith.constant 0 : i32
    %c0_i32_0 = arith.constant 0 : i32
    %c0_i32_1 = arith.constant 0 : i32
    return %arg0, %c0_i32, %c0_i32_0 : i32, i32, i32
  }
  func.func @transform_13(%arg0: i32) -> (i32, i32) {
    %c0_i32 = arith.constant 0 : i32
    %c0_i32_0 = arith.constant 0 : i32
    %c0_i32_1 = arith.constant 0 : i32
    return %c0_i32, %c0_i32_0 : i32, i32
  }
  func.func @transform_14(%arg0: i32) -> (i32, i32) {
    %c0_i32 = arith.constant 0 : i32
    %c0_i32_0 = arith.constant 0 : i32
    %c0_i32_1 = arith.constant 0 : i32
    return %c0_i32, %c0_i32_0 : i32, i32
  }
  func.func @transform_15(%arg0: i32) -> (i32, i32, i32) {
    %c0_i32 = arith.constant 0 : i32
    %c0_i32_0 = arith.constant 0 : i32
    %c0_i32_1 = arith.constant 0 : i32
    %c0_i32_2 = arith.constant 0 : i32
    return %c0_i32, %c0_i32_0, %c0_i32_1 : i32, i32, i32
  }
}

</mosaic_0001>

<llo_original>
// kernel: _lambda_.2
$region0: #{_lambda_.2}
  #allocation0 [shape = 'u32[]', space=smem, size = 0x4, offset = 0x4, fixed_abs, tag = 'smem constant byte address 0x4 - core index']
  #allocation1 [shape = 'u32[72,128]{1,0:T(1,128)}', space=vmem, size = 0x9000, scoped, tag = 'internal scratch']
  #allocation2 [shape = 'f32[1,1]{1,0:T(1,128)S(1)}', space=vmem, size = 0x200, scoped, tag = 'scoped memory for _lambda_.2']
  #allocation3 [shape = 'f32[1,1]{1,0:T(1,128)S(1)}', space=vmem, size = 0x200, scoped, tag = 'scoped memory for _lambda_.2']
  %s0 = inlined_call_operand.vmem [shape: f32[2,8,1], index: 0, kind: input, shape index: {}]
  %s1 = inlined_call_operand.<no memory space> [shape: f32[1,1], index: 1, kind: input, shape index: {}]
  %s2 = inlined_call_operand.<no memory space> [shape: f32[1,1], index: 2, kind: input, shape index: {}]
  %s3 = inlined_call_operand.vmem [shape: bf16[3,1,21], index: 3, kind: input, shape index: {}]
  %s4 = inlined_call_operand.vmem [shape: f32[1,21], index: 4, kind: input, shape index: {}]
  %s5 = inlined_call_operand.vmem [shape: bf16[5,21,42], index: 5, kind: input, shape index: {}]
  %s6 = inlined_call_operand.vmem [shape: f32[1,42], index: 6, kind: input, shape index: {}]
  %s7 = inlined_call_operand.hbm [shape: bf16[7,42,64], index: 7, kind: input, shape index: {}]
  %s8 = inlined_call_operand.vmem [shape: f32[1,64], index: 8, kind: input, shape index: {}]
  %s9 = inlined_call_operand.vmem [shape: f32[1,64], index: 9, kind: input, shape index: {}]
  %s10 = inlined_call_operand.vmem [shape: f32[9,64], index: 10, kind: input, shape index: {}]
  %s11 = inlined_call_operand.vmem [shape: f32[1,64], index: 11, kind: input, shape index: {}]
  %s12 = inlined_call_operand.vmem [shape: f32[1,64], index: 12, kind: input, shape index: {}]
  %s13 = inlined_call_operand.vmem [shape: f32[1,64], index: 13, kind: input, shape index: {}]
  %s14 = inlined_call_operand.vmem [shape: f32[2,9,64], index: 14, kind: output, shape index: {}]
  %s15 = sld [smem:[#allocation0]]
  $region93: #{_lambda_.2} parent=0
    _
  %s17 = ssub.s32 1, %s15
  %s18 = scalar_select 0, %s17, %s15
  %v19 = vstv %s1
  %20 = vst [vmem:[#allocation2] sm:$0x1] %v19
  %v21 = vstv %s2
  %22 = vst [vmem:[#allocation3] sm:$0x1] %v21
  $region1: #{_lambda_.2} parent=0
    #allocation4 [shape = 'u8[86016]{0}', space=vmem, size = 0x15000, scoped, tag = 'input window, operand 7, single buffered']
    #allocation5 [shape = 's32[2]{0}', space=sflag, size = 0x8, scoped, tag = 'scoped memory for _lambda_.2']
    %23 = vsyncpa [#allocation5], 0
    loop: start=0, step=1, limit=4
    $region2: #{_lambda_.2} parent=1 // loop_pre_header
      _
    $region3: #{_lambda_.2} parent=1 // loop_header
      %s25 = sphi 0, %s29
      %p26 = scmp.ge.s32.totalorder %s25, 4
      %s35 = sphi 0, %s37
      %s38 = sphi 0, %s35
      %s39 = sphi 0, %s38
      %s55 = sphi 0, %s39
      %s59 = sphi 0, %s59
      %s61 = sphi 0, %s59
      %s62 = sphi 0, %s61
      %s76 = sphi 0, %s62
      %s80 = sphi 0, %s80
      %s82 = sphi 0, %s80
      %s83 = sphi 0, %s82
      %s97 = sphi 0, %s83
      %s101 = sphi 0, %s101
      %s103 = sphi 0, %s101
      %s104 = sphi 0, %s103
      %s118 = sphi 0, %s104
      %s122 = sphi 0, %s122
      %s124 = sphi 0, %s122
      %s125 = sphi 0, %s124
      %s139 = sphi 0, %s125
      %s143 = sphi 0, %s143
      %s145 = sphi 0, %s143
      %s146 = sphi 0, %s145
      %s160 = sphi 0, %s146
      %s164 = sphi 0, %s164
      %s166 = sphi 0, %s164
      %s167 = sphi 0, %s166
      %s181 = sphi 0, %s167
      %s185 = sphi 0, %s185
      %s187 = sphi 0, %s185
      %s188 = sphi 0, %s187
      %s202 = sphi 0, %s188
      %s206 = sphi 0, %s206
      %s208 = sphi 0, %s206
      %s209 = sphi 0, %s208
      %s223 = sphi 0, %s209
      %s227 = sphi 0, %s227
      %s229 = sphi 0, %s227
      %s230 = sphi 0, %s229
      %s244 = sphi 0, %s230
      %s248 = sphi 0, %s248
      %s250 = sphi 0, %s248
      %s251 = sphi 0, %s250
      %s265 = sphi 0, %s251
      %s269 = sphi 0, %s269
      %s271 = sphi 0, %s269
      %s272 = sphi 0, %s271
      %s286 = sphi 0, %s272
      %s290 = sphi 0, %s290
      %s292 = sphi 0, %s290
      %s293 = sphi 0, %s292
      %s307 = sphi 0, %s293
      %s311 = sphi 0, %s311
      %s313 = sphi 0, %s311
      %s314 = sphi 0, %s313
      %s328 = sphi 0, %s314
      %s334 = sphi 0, %s336
      %s337 = sphi 0, %s334
      %s338 = sphi 0, %s337
      %s354 = sphi 0, %s338
    $region4: #{_lambda_.2} parent=1 // loop_header_branch
      %28 = sbr.rel (%p26) target = $region8
    $region5: #{_lambda_.2} parent=1 // loop_body
      %s30 = ssub.s32 %s25, 1
      %s31 = ssub.s32 %s25, 2
      %s32 = sadd.s32 %s25, 1
      %s33 = ssub.s32 %s25, %s32
      %p34 = scmp.eq.s32.totalorder %s33, 0
      %s36 = sadd.s32 %s35, 1
      %s37 = scalar_select %p34, %s35, %s36
      %p40 = pneg %p34
      %p41 = scmp.eq.s32.totalorder %s25, 1
      %p42 = por %p40, %p41
      %p43 = scmp.ne.s32.totalorder %s35, %s38
      %p44 = scmp.eq.s32.totalorder %s25, 0
      %p45 = por %p43, %p44
      %p46 = scmp.ne.s32.totalorder %s35, %s38
      %p47 = scmp.eq.s32.totalorder %s30, 1
      %p48 = por %p46, %p47
      %p49 = scmp.ne.s32.totalorder %s38, %s39
      %p50 = scmp.eq.s32.totalorder %s30, 0
      %p51 = por %p49, %p50
      %p52 = scmp.ne.s32.totalorder %s38, %s39
      %p53 = scmp.eq.s32.totalorder %s31, 1
      %p54 = por %p52, %p53
      %p56 = scmp.ne.s32.totalorder %s39, %s55
      %p57 = scmp.eq.s32.totalorder %s31, 0
      %p58 = por %p56, %p57
      %s60 = sadd.s32 %s59, 1
      %p63 = scmp.eq.s32.totalorder %s25, 1
      %p64 = scmp.ne.s32.totalorder %s59, %s61
      %p65 = scmp.eq.s32.totalorder %s25, 0
      %p66 = por %p64, %p65
      %p67 = scmp.ne.s32.totalorder %s59, %s61
      %p68 = scmp.eq.s32.totalorder %s30, 1
      %p69 = por %p67, %p68
      %p70 = scmp.ne.s32.totalorder %s61, %s62
      %p71 = scmp.eq.s32.totalorder %s30, 0
      %p72 = por %p70, %p71
      %p73 = scmp.ne.s32.totalorder %s61, %s62
      %p74 = scmp.eq.s32.totalorder %s31, 1
      %p75 = por %p73, %p74
      %p77 = scmp.ne.s32.totalorder %s62, %s76
      %p78 = scmp.eq.s32.totalorder %s31, 0
      %p79 = por %p77, %p78
      %s81 = sadd.s32 %s80, 1
      %p84 = scmp.eq.s32.totalorder %s25, 1
      %p85 = scmp.ne.s32.totalorder %s80, %s82
      %p86 = scmp.eq.s32.totalorder %s25, 0
      %p87 = por %p85, %p86
      %p88 = scmp.ne.s32.totalorder %s80, %s82
      %p89 = scmp.eq.s32.totalorder %s30, 1
      %p90 = por %p88, %p89
      %p91 = scmp.ne.s32.totalorder %s82, %s83
      %p92 = scmp.eq.s32.totalorder %s30, 0
      %p93 = por %p91, %p92
      %p94 = scmp.ne.s32.totalorder %s82, %s83
      %p95 = scmp.eq.s32.totalorder %s31, 1
      %p96 = por %p94, %p95
      %p98 = scmp.ne.s32.totalorder %s83, %s97
      %p99 = scmp.eq.s32.totalorder %s31, 0
      %p100 = por %p98, %p99
      %s102 = sadd.s32 %s101, 1
      %p105 = scmp.eq.s32.totalorder %s25, 1
      %p106 = scmp.ne.s32.totalorder %s101, %s103
      %p107 = scmp.eq.s32.totalorder %s25, 0
      %p108 = por %p106, %p107
      %p109 = scmp.ne.s32.totalorder %s101, %s103
      %p110 = scmp.eq.s32.totalorder %s30, 1
      %p111 = por %p109, %p110
      %p112 = scmp.ne.s32.totalorder %s103, %s104
      %p113 = scmp.eq.s32.totalorder %s30, 0
      %p114 = por %p112, %p113
      %p115 = scmp.ne.s32.totalorder %s103, %s104
      %p116 = scmp.eq.s32.totalorder %s31, 1
      %p117 = por %p115, %p116
      %p119 = scmp.ne.s32.totalorder %s104, %s118
      %p120 = scmp.eq.s32.totalorder %s31, 0
      %p121 = por %p119, %p120
      %s123 = sadd.s32 %s122, 1
      %p126 = scmp.eq.s32.totalorder %s25, 1
      %p127 = scmp.ne.s32.totalorder %s122, %s124
      %p128 = scmp.eq.s32.totalorder %s25, 0
      %p129 = por %p127, %p128
      %p130 = scmp.ne.s32.totalorder %s122, %s124
      %p131 = scmp.eq.s32.totalorder %s30, 1
      %p132 = por %p130, %p131
      %p133 = scmp.ne.s32.totalorder %s124, %s125
      %p134 = scmp.eq.s32.totalorder %s30, 0
      %p135 = por %p133, %p134
      %p136 = scmp.ne.s32.totalorder %s124, %s125
      %p137 = scmp.eq.s32.totalorder %s31, 1
      %p138 = por %p136, %p137
      %p140 = scmp.ne.s32.totalorder %s125, %s139
      %p141 = scmp.eq.s32.totalorder %s31, 0
      %p142 = por %p140, %p141
      %s144 = sadd.s32 %s143, 1
      %p147 = scmp.eq.s32.totalorder %s25, 1
      %p148 = scmp.ne.s32.totalorder %s143, %s145
      %p149 = scmp.eq.s32.totalorder %s25, 0
      %p150 = por %p148, %p149
      %p151 = scmp.ne.s32.totalorder %s143, %s145
      %p152 = scmp.eq.s32.totalorder %s30, 1
      %p153 = por %p151, %p152
      %p154 = scmp.ne.s32.totalorder %s145, %s146
      %p155 = scmp.eq.s32.totalorder %s30, 0
      %p156 = por %p154, %p155
      %p157 = scmp.ne.s32.totalorder %s145, %s146
      %p158 = scmp.eq.s32.totalorder %s31, 1
      %p159 = por %p157, %p158
      %p161 = scmp.ne.s32.totalorder %s146, %s160
      %p162 = scmp.eq.s32.totalorder %s31, 0
      %p163 = por %p161, %p162
      %s165 = sadd.s32 %s164, 1
      %p168 = scmp.eq.s32.totalorder %s25, 1
      %p169 = scmp.ne.s32.totalorder %s164, %s166
      %p170 = scmp.eq.s32.totalorder %s25, 0
      %p171 = por %p169, %p170
      %p172 = scmp.ne.s32.totalorder %s164, %s166
      %p173 = scmp.eq.s32.totalorder %s30, 1
      %p174 = por %p172, %p173
      %p175 = scmp.ne.s32.totalorder %s166, %s167
      %p176 = scmp.eq.s32.totalorder %s30, 0
      %p177 = por %p175, %p176
      %p178 = scmp.ne.s32.totalorder %s166, %s167
      %p179 = scmp.eq.s32.totalorder %s31, 1
      %p180 = por %p178, %p179
      %p182 = scmp.ne.s32.totalorder %s167, %s181
      %p183 = scmp.eq.s32.totalorder %s31, 0
      %p184 = por %p182, %p183
      %s186 = sadd.s32 %s185, 1
      %p189 = scmp.eq.s32.totalorder %s25, 1
      %p190 = scmp.ne.s32.totalorder %s185, %s187
      %p191 = scmp.eq.s32.totalorder %s25, 0
      %p192 = por %p190, %p191
      %p193 = scmp.ne.s32.totalorder %s185, %s187
      %p194 = scmp.eq.s32.totalorder %s30, 1
      %p195 = por %p193, %p194
      %p196 = scmp.ne.s32.totalorder %s187, %s188
      %p197 = scmp.eq.s32.totalorder %s30, 0
      %p198 = por %p196, %p197
      %p199 = scmp.ne.s32.totalorder %s187, %s188
      %p200 = scmp.eq.s32.totalorder %s31, 1
      %p201 = por %p199, %p200
      %p203 = scmp.ne.s32.totalorder %s188, %s202
      %p204 = scmp.eq.s32.totalorder %s31, 0
      %p205 = por %p203, %p204
      %s207 = sadd.s32 %s206, 1
      %p210 = scmp.eq.s32.totalorder %s25, 1
      %p211 = scmp.ne.s32.totalorder %s206, %s208
      %p212 = scmp.eq.s32.totalorder %s25, 0
      %p213 = por %p211, %p212
      %p214 = scmp.ne.s32.totalorder %s206, %s208
      %p215 = scmp.eq.s32.totalorder %s30, 1
      %p216 = por %p214, %p215
      %p217 = scmp.ne.s32.totalorder %s208, %s209
      %p218 = scmp.eq.s32.totalorder %s30, 0
      %p219 = por %p217, %p218
      %p220 = scmp.ne.s32.totalorder %s208, %s209
      %p221 = scmp.eq.s32.totalorder %s31, 1
      %p222 = por %p220, %p221
      %p224 = scmp.ne.s32.totalorder %s209, %s223
      %p225 = scmp.eq.s32.totalorder %s31, 0
      %p226 = por %p224, %p225
      %s228 = sadd.s32 %s227, 1
      %p231 = scmp.eq.s32.totalorder %s25, 1
      %p232 = scmp.ne.s32.totalorder %s227, %s229
      %p233 = scmp.eq.s32.totalorder %s25, 0
      %p234 = por %p232, %p233
      %p235 = scmp.ne.s32.totalorder %s227, %s229
      %p236 = scmp.eq.s32.totalorder %s30, 1
      %p237 = por %p235, %p236
      %p238 = scmp.ne.s32.totalorder %s229, %s230
      %p239 = scmp.eq.s32.totalorder %s30, 0
      %p240 = por %p238, %p239
      %p241 = scmp.ne.s32.totalorder %s229, %s230
      %p242 = scmp.eq.s32.totalorder %s31, 1
      %p243 = por %p241, %p242
      %p245 = scmp.ne.s32.totalorder %s230, %s244
      %p246 = scmp.eq.s32.totalorder %s31, 0
      %p247 = por %p245, %p246
      %s249 = sadd.s32 %s248, 1
      %p252 = scmp.eq.s32.totalorder %s25, 1
      %p253 = scmp.ne.s32.totalorder %s248, %s250
      %p254 = scmp.eq.s32.totalorder %s25, 0
      %p255 = por %p253, %p254
      %p256 = scmp.ne.s32.totalorder %s248, %s250
      %p257 = scmp.eq.s32.totalorder %s30, 1
      %p258 = por %p256, %p257
      %p259 = scmp.ne.s32.totalorder %s250, %s251
      %p260 = scmp.eq.s32.totalorder %s30, 0
      %p261 = por %p259, %p260
      %p262 = scmp.ne.s32.totalorder %s250, %s251
      %p263 = scmp.eq.s32.totalorder %s31, 1
      %p264 = por %p262, %p263
      %p266 = scmp.ne.s32.totalorder %s251, %s265
      %p267 = scmp.eq.s32.totalorder %s31, 0
      %p268 = por %p266, %p267
      %s270 = sadd.s32 %s269, 1
      %p273 = scmp.eq.s32.totalorder %s25, 1
      %p274 = scmp.ne.s32.totalorder %s269, %s271
      %p275 = scmp.eq.s32.totalorder %s25, 0
      %p276 = por %p274, %p275
      %p277 = scmp.ne.s32.totalorder %s269, %s271
      %p278 = scmp.eq.s32.totalorder %s30, 1
      %p279 = por %p277, %p278
      %p280 = scmp.ne.s32.totalorder %s271, %s272
      %p281 = scmp.eq.s32.totalorder %s30, 0
      %p282 = por %p280, %p281
      %p283 = scmp.ne.s32.totalorder %s271, %s272
      %p284 = scmp.eq.s32.totalorder %s31, 1
      %p285 = por %p283, %p284
      %p287 = scmp.ne.s32.totalorder %s272, %s286
      %p288 = scmp.eq.s32.totalorder %s31, 0
      %p289 = por %p287, %p288
      %s291 = sadd.s32 %s290, 1
      %p294 = scmp.eq.s32.totalorder %s25, 1
      %p295 = scmp.ne.s32.totalorder %s290, %s292
      %p296 = scmp.eq.s32.totalorder %s25, 0
      %p297 = por %p295, %p296
      %p298 = scmp.ne.s32.totalorder %s290, %s292
      %p299 = scmp.eq.s32.totalorder %s30, 1
      %p300 = por %p298, %p299
      %p301 = scmp.ne.s32.totalorder %s292, %s293
      %p302 = scmp.eq.s32.totalorder %s30, 0
      %p303 = por %p301, %p302
      %p304 = scmp.ne.s32.totalorder %s292, %s293
      %p305 = scmp.eq.s32.totalorder %s31, 1
      %p306 = por %p304, %p305
      %p308 = scmp.ne.s32.totalorder %s293, %s307
      %p309 = scmp.eq.s32.totalorder %s31, 0
      %p310 = por %p308, %p309
      %s312 = sadd.s32 %s311, 1
      %p315 = scmp.eq.s32.totalorder %s25, 1
      %p316 = scmp.ne.s32.totalorder %s311, %s313
      %p317 = scmp.eq.s32.totalorder %s25, 0
      %p318 = por %p316, %p317
      %p319 = scmp.ne.s32.totalorder %s311, %s313
      %p320 = scmp.eq.s32.totalorder %s30, 1
      %p321 = por %p319, %p320
      %p322 = scmp.ne.s32.totalorder %s313, %s314
      %p323 = scmp.eq.s32.totalorder %s30, 0
      %p324 = por %p322, %p323
      %p325 = scmp.ne.s32.totalorder %s313, %s314
      %p326 = scmp.eq.s32.totalorder %s31, 1
      %p327 = por %p325, %p326
      %p329 = scmp.ne.s32.totalorder %s314, %s328
      %p330 = scmp.eq.s32.totalorder %s31, 0
      %p331 = por %p329, %p330
      %s332 = ssub.s32 %s25, %s32
      %p333 = scmp.eq.s32.totalorder %s332, 0
      %s335 = sadd.s32 %s334, 1
      %s336 = scalar_select %p333, %s334, %s335
      %p339 = pneg %p333
      %p340 = scmp.eq.s32.totalorder %s25, 1
      %p341 = por %p339, %p340
      %p342 = scmp.ne.s32.totalorder %s334, %s337
      %p343 = scmp.eq.s32.totalorder %s25, 0
      %p344 = por %p342, %p343
      %p345 = scmp.ne.s32.totalorder %s334, %s337
      %p346 = scmp.eq.s32.totalorder %s30, 1
      %p347 = por %p345, %p346
      %p348 = scmp.ne.s32.totalorder %s337, %s338
      %p349 = scmp.eq.s32.totalorder %s30, 0
      %p350 = por %p348, %p349
      %p351 = scmp.ne.s32.totalorder %s337, %s338
      %p352 = scmp.eq.s32.totalorder %s31, 1
      %p353 = por %p351, %p352
      %p355 = scmp.ne.s32.totalorder %s338, %s354
      %p356 = scmp.eq.s32.totalorder %s31, 0
      %p357 = por %p355, %p356
      %p358 = scmp.le.s32.totalorder 1, %s25
      %p359 = scmp.lt.s32.totalorder %s25, 3
      %p360 = pnand %p358, %p359
      %p361 = pneg %p360
      // Predicated region
      $region9: #{_lambda_.2} parent=5 // pred_check
        _
      $region10: #{_lambda_.2} parent=5 // pred_check_branch
        %363 = sbr.rel (%p360) target = $region12
      $region11: #{_lambda_.2} parent=5 // pred_region
        %s364 = ssub.s32 %s25, 1
        // Predicated region
        $region13: #{_lambda_.2} parent=11 // pred_check
          %p365 = pneg %p72
        $region14: #{_lambda_.2} parent=11 // pred_check_branch
          %367 = sbr.rel (%p365) target = $region16
        $region15: #{_lambda_.2} parent=11 // pred_region
          _
        $region16: #{_lambda_.2} parent=11 // pred_fallthru
          _
        // Predicated region
        $region17: #{_lambda_.2} parent=11 // pred_check
          %p368 = pneg %p93
        $region18: #{_lambda_.2} parent=11 // pred_check_branch
          %370 = sbr.rel (%p368) target = $region20
        $region19: #{_lambda_.2} parent=11 // pred_region
          _
        $region20: #{_lambda_.2} parent=11 // pred_fallthru
          _
        // Predicated region
        $region21: #{_lambda_.2} parent=11 // pred_check
          %p371 = pneg %p114
        $region22: #{_lambda_.2} parent=11 // pred_check_branch
          %373 = sbr.rel (%p371) target = $region24
        $region23: #{_lambda_.2} parent=11 // pred_region
          _
        $region24: #{_lambda_.2} parent=11 // pred_fallthru
          _
        // Predicated region
        $region25: #{_lambda_.2} parent=11 // pred_check
          %p374 = pneg %p135
        $region26: #{_lambda_.2} parent=11 // pred_check_branch
          %376 = sbr.rel (%p374) target = $region28
        $region27: #{_lambda_.2} parent=11 // pred_region
          _
        $region28: #{_lambda_.2} parent=11 // pred_fallthru
          _
        // Predicated region
        $region29: #{_lambda_.2} parent=11 // pred_check
          %p377 = pneg %p156
        $region30: #{_lambda_.2} parent=11 // pred_check_branch
          %379 = sbr.rel (%p377) target = $region32
        $region31: #{_lambda_.2} parent=11 // pred_region
          _
        $region32: #{_lambda_.2} parent=11 // pred_fallthru
          _
        // Predicated region
        $region33: #{_lambda_.2} parent=11 // pred_check
          %p380 = pneg %p177
        $region34: #{_lambda_.2} parent=11 // pred_check_branch
          %382 = sbr.rel (%p380) target = $region36
        $region35: #{_lambda_.2} parent=11 // pred_region
          _
        $region36: #{_lambda_.2} parent=11 // pred_fallthru
          _
        // Predicated region
        $region37: #{_lambda_.2} parent=11 // pred_check
          %p383 = pneg %p198
        $region38: #{_lambda_.2} parent=11 // pred_check_branch
          %385 = sbr.rel (%p383) target = $region40
        $region39: #{_lambda_.2} parent=11 // pred_region
          %387 = vsyncadd [#allocation5], 0
          %s388 = sshll.u32 %s7, 4
          %s389 = int_to_ptr.hbm [resolvable:$true] %s388
          %s390 = sshll.u32 [#allocation4], 4
          %s391 = int_to_ptr.vmem [resolvable:$true] %s390
          %396 = dma.hbm_to_vmem [thread:$0]  %s389, 2688, %s391, [#allocation5], 64, 64, 4
        $region40: #{_lambda_.2} parent=11 // pred_fallthru
          _
        // Predicated region
        $region41: #{_lambda_.2} parent=11 // pred_check
          %p397 = pneg %p219
        $region42: #{_lambda_.2} parent=11 // pred_check_branch
          %399 = sbr.rel (%p397) target = $region44
        $region43: #{_lambda_.2} parent=11 // pred_region
          _
        $region44: #{_lambda_.2} parent=11 // pred_fallthru
          _
        // Predicated region
        $region45: #{_lambda_.2} parent=11 // pred_check
          %p400 = pneg %p240
        $region46: #{_lambda_.2} parent=11 // pred_check_branch
          %402 = sbr.rel (%p400) target = $region48
        $region47: #{_lambda_.2} parent=11 // pred_region
          _
        $region48: #{_lambda_.2} parent=11 // pred_fallthru
          _
        // Predicated region
        $region49: #{_lambda_.2} parent=11 // pred_check
          %p403 = pneg %p261
        $region50: #{_lambda_.2} parent=11 // pred_check_branch
          %405 = sbr.rel (%p403) target = $region52
        $region51: #{_lambda_.2} parent=11 // pred_region
          _
        $region52: #{_lambda_.2} parent=11 // pred_fallthru
          _
        // Predicated region
        $region53: #{_lambda_.2} parent=11 // pred_check
          %p406 = pneg %p282
        $region54: #{_lambda_.2} parent=11 // pred_check_branch
          %408 = sbr.rel (%p406) target = $region56
        $region55: #{_lambda_.2} parent=11 // pred_region
          _
        $region56: #{_lambda_.2} parent=11 // pred_fallthru
          _
        // Predicated region
        $region57: #{_lambda_.2} parent=11 // pred_check
          %p409 = pneg %p303
        $region58: #{_lambda_.2} parent=11 // pred_check_branch
          %411 = sbr.rel (%p409) target = $region60
        $region59: #{_lambda_.2} parent=11 // pred_region
          _
        $region60: #{_lambda_.2} parent=11 // pred_fallthru
          _
        // Predicated region
        $region61: #{_lambda_.2} parent=11 // pred_check
          %p412 = pneg %p324
        $region62: #{_lambda_.2} parent=11 // pred_check_branch
          %414 = sbr.rel (%p412) target = $region64
        $region63: #{_lambda_.2} parent=11 // pred_region
          _
        $region64: #{_lambda_.2} parent=11 // pred_fallthru
          _
      $region12: #{_lambda_.2} parent=5 // pred_fallthru
        _
      %p415 = scmp.lt.s32.totalorder %s25, 2
      // Predicated region
      $region65: #{_lambda_.2} parent=5 // pred_check
        %p416 = pneg %p415
      $region66: #{_lambda_.2} parent=5 // pred_check_branch
        %418 = sbr.rel (%p416) target = $region68
      $region67: #{_lambda_.2} parent=5 // pred_region
        // Predicated region
        $region69: #{_lambda_.2} parent=67 // pred_check
          %p419 = pneg %p45
        $region70: #{_lambda_.2} parent=67 // pred_check_branch
          %421 = sbr.rel (%p419) target = $region72
        $region71: #{_lambda_.2} parent=67 // pred_region
          %p422 = scmp.lt.s32.totalorder %s25, 1
          %s423 = scalar_select %p422, %s25, 1
          %s424 = smul.addr %s423, 8
          %s425 = scalar_lea.vmem %s0, %s424
        $region72: #{_lambda_.2} parent=67 // pred_fallthru
          _
      $region68: #{_lambda_.2} parent=5 // pred_fallthru
        _
      %p426 = scmp.le.s32.totalorder 1, %s25
      %p427 = scmp.lt.s32.totalorder %s25, 3
      %p428 = pnand %p426, %p427
      %p429 = pneg %p428
      // Predicated region
      $region73: #{_lambda_.2} parent=5 // pred_check
        _
      $region74: #{_lambda_.2} parent=5 // pred_check_branch
        %431 = sbr.rel (%p428) target = $region76
      $region75: #{_lambda_.2} parent=5 // pred_region
        %s432 = ssub.s32 %s25, 1
        // Predicated region
        $region77: #{_lambda_.2} parent=75 // pred_check
          %p433 = pneg %p198
        $region78: #{_lambda_.2} parent=75 // pred_check_branch
          %435 = sbr.rel (%p433) target = $region80
        $region79: #{_lambda_.2} parent=75 // pred_region
          %437 = dma.done [#allocation5], 2688
        $region80: #{_lambda_.2} parent=75 // pred_fallthru
          _
        %p438 = scmp.lt.s32.totalorder %s30, 1
        %s439 = scalar_select %p438, %s30, 1
        %s440 = smul.addr %s439, 8
        %s441 = scalar_lea.vmem %s0, %s440
        %p442 = pneg %p51
        %p443 = pneg %p48
        %p444 = pneg %p72
        %p445 = pneg %p69
        %p446 = pneg %p93
        %p447 = pneg %p90
        %p448 = pneg %p114
        %p449 = pneg %p111
        %p450 = pneg %p135
        %p451 = pneg %p132
        %p452 = pneg %p156
        %p453 = pneg %p153
        %p454 = pneg %p177
        %p455 = pneg %p174
        %p456 = pneg %p198
        %p457 = pneg %p195
        %p458 = pneg %p219
        %p459 = pneg %p216
        %p460 = pneg %p240
        %p461 = pneg %p237
        %p462 = pneg %p261
        %p463 = pneg %p258
        %p464 = pneg %p282
        %p465 = pneg %p279
        %p466 = pneg %p303
        %p467 = pneg %p300
        %p468 = pneg %p324
        %p469 = pneg %p321
        %p470 = pneg %p350
        %p471 = pneg %p347
        %p472 = scmp.lt.s32.totalorder %s30, 1
        %s473 = scalar_select %p472, %s30, 1
        %s474 = smul.addr %s473, 2
        %s475 = smul.addr %s474, 8
        %s476 = scalar_lea.vmem %s14, %s475
        %p477 = scmp.lt.s32.totalorder %s30, 1
        %s478 = scalar_select %p477, %s30, 1
        %s479 = smul.addr %s478, 8
        %s480 = scalar_lea.vmem %s0, %s479
        %p481 = scmp.lt.s32.totalorder %s30, 1
        %s482 = scalar_select %p481, %s30, 1
        %s483 = smul.addr %s482, 2
        %s484 = smul.addr %s483, 8
        %s485 = scalar_lea.vmem %s14, %s484
        %v487 = vld [vmem:[%s480] sm:$0xff]
        %v488 = vld [vmem:[#allocation2] sm:$0x1]
        %v490 = vperm.slane %v488, 0
        %v492 = vmul.f32 %v487, %v490
        %v493 = vld [vmem:[#allocation3] sm:$0x1]
        %v495 = vperm.slane %v493, 0
        %v497 = vadd.f32 %v492, %v495
        %v498 = vld [vmem:[%s3] sm:$0x1]
        %v499 = vld [vmem:[%s3 + $0x1] sm:$0x1]
        %v500 = vld [vmem:[%s3 + $0x2] sm:$0x1]
        %v501 = vld [vmem:[%s4] sm:$0x1]
        %v502 = vlaneseq
        %v503 = vshrl.u32 %v502, 7
        %v504 = vlaneseq
        %v505 = vand.u32 %v504, 127
        %v506 = vpack.c.bf16 %v497, %v497
        %v507 = vsub.s32 %v505, %v503
        %vm508 = vcmp.eq.s32.totalorder %v507, 4294967295
        %v509 = vsel %vm508, 1.0, 0.0
        %v510 = vpack.c.bf16 %v509, %v509
        %vm511 = vcmask 64512
        %v513 = vsel %vm511, %v510, 0
        %vm515 = vcmask 1043456
        %v517 = vsel %vm515, %v506, 0
        %519 = vmatpush.bf16.msra.mxu0 0
        %520 = vmatpush.bf16.msra.mxu0 0
        %521 = vmatpush.bf16.msra.mxu0 0
        %522 = vmatpush.bf16.msra.mxu0 0
        %523 = vmatpush.bf16.msra.mxu0 0
        %524 = vmatpush.bf16.msra.mxu0 0
        %525 = vmatpush.bf16.msra.mxu0 0
        %526 = vmatpush.bf16.msra.mxu0 %v517
        %527 = vmatmul.bf16.gmra.mxu0 %v513
        %v528 = vpop.f32.mrf.mxu0
        %v529 = vadd.f32 0.0, %v528
        %v530 = vpop.f32.mrf.mxu0
        %531 = vdwg.mxu0
        %v532 = vpack.c.bf16 %v529, %v529
        %vm533 = vcmask 7168
        %v534 = vsel %vm533, %v506, 0
        %vm536 = vcmask 1040384
        %v537 = vsel 0, 4294967295, 65535
        %v538 = vsel %vm536, %v537, 0
        %v540 = vand.u32 %v499, %v538
        %542 = vmatpush.bf16.msra.mxu0 0
        %543 = vmatpush.bf16.msra.mxu0 0
        %544 = vmatpush.bf16.msra.mxu0 0
        %545 = vmatpush.bf16.msra.mxu0 0
        %546 = vmatpush.bf16.msra.mxu0 0
        %547 = vmatpush.bf16.msra.mxu0 0
        %548 = vmatpush.bf16.msra.mxu0 0
        %549 = vmatpush.bf16.msra.mxu0 %v540
        %550 = vmatmul.bf16.gmra.mxu0 %v534
        %v551 = vpop.f32.mrf.mxu0
        %v552 = vadd.f32 0.0, %v551
        %v553 = vpop.f32.mrf.mxu0
        %554 = vdwg.mxu0
        %v556 = vsel %vm533, %v532, 0
        %v559 = vand.u32 %v498, %v538
        %561 = vmatpush.bf16.msra.mxu0 0
        %562 = vmatpush.bf16.msra.mxu0 0
        %563 = vmatpush.bf16.msra.mxu0 0
        %564 = vmatpush.bf16.msra.mxu0 0
        %565 = vmatpush.bf16.msra.mxu0 0
        %566 = vmatpush.bf16.msra.mxu0 0
        %567 = vmatpush.bf16.msra.mxu0 0
        %568 = vmatpush.bf16.msra.mxu0 %v559
        %569 = vmatmul.bf16.gmra.mxu0 %v556
        %v570 = vpop.f32.mrf.mxu0
        %v571 = vadd.f32 %v552, %v570
        %v572 = vpop.f32.mrf.mxu0
        %573 = vdwg.mxu0
        %vm574 = vcmp.eq.s32.totalorder %v507, 1
        %v575 = vsel %vm574, 1.0, 0.0
        %v576 = vpack.c.bf16 %v575, %v575
        %v578 = vsel %vm511, %v576, 0
        %580 = vmatpush.bf16.msra.mxu0 0
        %581 = vmatpush.bf16.msra.mxu0 0
        %582 = vmatpush.bf16.msra.mxu0 0
        %583 = vmatpush.bf16.msra.mxu0 0
        %584 = vmatpush.bf16.msra.mxu0 0
        %585 = vmatpush.bf16.msra.mxu0 0
        %586 = vmatpush.bf16.msra.mxu0 0
        %587 = vmatpush.bf16.msra.mxu0 %v517
        %588 = vmatmul.bf16.gmra.mxu0 %v578
        %v589 = vpop.f32.mrf.mxu0
        %v590 = vadd.f32 0.0, %v589
        %v591 = vpop.f32.mrf.mxu0
        %592 = vdwg.mxu0
        %v593 = vpack.c.bf16 %v590, %v590
        %v595 = vsel %vm533, %v593, 0
        %v598 = vand.u32 %v500, %v538
        %600 = vmatpush.bf16.msra.mxu0 0
        %601 = vmatpush.bf16.msra.mxu0 0
        %602 = vmatpush.bf16.msra.mxu0 0
        %603 = vmatpush.bf16.msra.mxu0 0
        %604 = vmatpush.bf16.msra.mxu0 0
        %605 = vmatpush.bf16.msra.mxu0 0
        %606 = vmatpush.bf16.msra.mxu0 0
        %607 = vmatpush.bf16.msra.mxu0 %v598
        %608 = vmatmul.bf16.gmra.mxu0 %v595
        %v609 = vpop.f32.mrf.mxu0
        %v610 = vadd.f32 0.0, %v609
        %v611 = vpop.f32.mrf.mxu0
        %612 = vdwg.mxu0
        %v613 = vadd.f32 %v571, %v610
        %v615 = vperm.slane %v501, 0
        %v617 = vadd.f32 %v613, %v615
        %v618 = vmax.f32 %v617, 0.0
        %v619 = vld [vmem:[%s5] sm:$0xf]
        %v620 = vld [vmem:[%s5 + $0x4] sm:$0xf]
        %v621 = vld [vmem:[%s5 + $0x8] sm:$0x7]
        %v622 = vld [vmem:[%s5 + $0xc] sm:$0xf]
        %v623 = vld [vmem:[%s5 + $0x10] sm:$0xf]
        %v624 = vld [vmem:[%s5 + $0x14] sm:$0x7]
        %v625 = vld [vmem:[%s5 + $0x18] sm:$0xf]
        %v626 = vld [vmem:[%s5 + $0x1c] sm:$0xf]
        %v627 = vld [vmem:[%s5 + $0x20] sm:$0x7]
        %v628 = vld [vmem:[%s5 + $0x24] sm:$0xf]
        %v629 = vld [vmem:[%s5 + $0x28] sm:$0xf]
        %v630 = vld [vmem:[%s5 + $0x2c] sm:$0x7]
        %v631 = vld [vmem:[%s5 + $0x30] sm:$0xf]
        %v632 = vld [vmem:[%s5 + $0x34] sm:$0xf]
        %v633 = vld [vmem:[%s5 + $0x38] sm:$0x7]
        %v634 = vld [vmem:[%s6] sm:$0x1]
        %v635 = vpack.c.bf16 %v618, %v618
        %vm636 = vcmp.eq.s32.totalorder %v507, 4294967294
        %v637 = vsel %vm636, 1.0, 0.0
        %v638 = vpack.c.bf16 %v637, %v637
        %v640 = vsel %vm511, %v638, 0
        %v643 = vsel %vm515, %v635, 0
        %645 = vmatpush.bf16.msra.mxu0 0
        %646 = vmatpush.bf16.msra.mxu0 0
        %647 = vmatpush.bf16.msra.mxu0 0
        %648 = vmatpush.bf16.msra.mxu0 0
        %649 = vmatpush.bf16.msra.mxu0 0
        %650 = vmatpush.bf16.msra.mxu0 0
        %651 = vmatpush.bf16.msra.mxu0 0
        %652 = vmatpush.bf16.msra.mxu0 %v643
        %653 = vmatmul.bf16.gmra.mxu0 %v640
        %v654 = vpop.f32.mrf.mxu0
        %v655 = vadd.f32 0.0, %v654
        %v656 = vpop.f32.mrf.mxu0
        %657 = vdwg.mxu0
        %v658 = vpack.c.bf16 %v655, %v655
        %659 = vmatpush.bf16.msra.mxu0 0
        %660 = vmatpush.bf16.msra.mxu0 0
        %661 = vmatpush.bf16.msra.mxu0 0
        %662 = vmatpush.bf16.msra.mxu0 0
        %663 = vmatpush.bf16.msra.mxu0 0
        %664 = vmatpush.bf16.msra.mxu0 0
        %665 = vmatpush.bf16.msra.mxu0 0
        %666 = vmatpush.bf16.msra.mxu0 %v643
        %667 = vmatmul.bf16.gmra.mxu0 %v513
        %v668 = vpop.f32.mrf.mxu0
        %v669 = vadd.f32 0.0, %v668
        %v670 = vpop.f32.mrf.mxu0
        %671 = vdwg.mxu0
        %v672 = vpack.c.bf16 %v669, %v669
        %v676 = vunpack.c.l.b16 %v622
        %v677 = vunpack.c.l.b16 %v623
        %v678 = vunpack.c.l.b16 %v624
        %v679 = vpack.c.b16 %v677, %v676
        %v680 = vpack.c.b16 %v678, %v678
        %vm682 = vcmask 171008
        %v684 = vsel %vm682, %v672, 0
        %vm686 = vcmask 1041408
        %vm687 = vcmask 1042432
        %v688 = vsel %vm686, 4294967295, 65535
        %v689 = vsel %vm687, %v688, 0
        %v691 = vand.u32 %v680, %v689
        %693 = vmatpush.bf16.msra.mxu0 0
        %694 = vmatpush.bf16.msra.mxu0 0
        %695 = vmatpush.bf16.msra.mxu0 0
        %696 = vmatpush.bf16.msra.mxu0 0
        %697 = vmatpush.bf16.msra.mxu0 0
        %698 = vmatpush.bf16.msra.mxu0 0
        %699 = vmatpush.bf16.msra.mxu0 %v691
        %700 = vmatpush.bf16.msra.mxu0 %v679
        %701 = vmatmul.bf16.gmra.mxu0 %v684
        %v702 = vpop.f32.mrf.mxu0
        %v703 = vadd.f32 0.0, %v702
        %v704 = vpop.f32.mrf.mxu0
        %705 = vdwg.mxu0
        %v709 = vunpack.c.l.b16 %v619
        %v710 = vunpack.c.l.b16 %v620
        %v711 = vunpack.c.l.b16 %v621
        %v712 = vpack.c.b16 %v710, %v709
        %v713 = vpack.c.b16 %v711, %v711
        %v716 = vsel %vm682, %v658, 0
        %v719 = vand.u32 %v713, %v689
        %721 = vmatpush.bf16.msra.mxu0 0
        %722 = vmatpush.bf16.msra.mxu0 0
        %723 = vmatpush.bf16.msra.mxu0 0
        %724 = vmatpush.bf16.msra.mxu0 0
        %725 = vmatpush.bf16.msra.mxu0 0
        %726 = vmatpush.bf16.msra.mxu0 0
        %727 = vmatpush.bf16.msra.mxu0 %v719
        %728 = vmatpush.bf16.msra.mxu0 %v712
        %729 = vmatmul.bf16.gmra.mxu0 %v716
        %v730 = vpop.f32.mrf.mxu0
        %v731 = vadd.f32 %v703, %v730
        %v732 = vpop.f32.mrf.mxu0
        %733 = vdwg.mxu0
        %v737 = vunpack.c.l.b16 %v625
        %v738 = vunpack.c.l.b16 %v626
        %v739 = vunpack.c.l.b16 %v627
        %v740 = vpack.c.b16 %v738, %v737
        %v741 = vpack.c.b16 %v739, %v739
        %v743 = vsel %vm682, %v635, 0
        %v746 = vand.u32 %v741, %v689
        %748 = vmatpush.bf16.msra.mxu0 0
        %749 = vmatpush.bf16.msra.mxu0 0
        %750 = vmatpush.bf16.msra.mxu0 0
        %751 = vmatpush.bf16.msra.mxu0 0
        %752 = vmatpush.bf16.msra.mxu0 0
        %753 = vmatpush.bf16.msra.mxu0 0
        %754 = vmatpush.bf16.msra.mxu0 %v746
        %755 = vmatpush.bf16.msra.mxu0 %v740
        %756 = vmatmul.bf16.gmra.mxu0 %v743
        %v757 = vpop.f32.mrf.mxu0
        %v758 = vadd.f32 0.0, %v757
        %v759 = vpop.f32.mrf.mxu0
        %760 = vdwg.mxu0
        %v761 = vadd.f32 %v731, %v758
        %762 = vmatpush.bf16.msra.mxu0 0
        %763 = vmatpush.bf16.msra.mxu0 0
        %764 = vmatpush.bf16.msra.mxu0 0
        %765 = vmatpush.bf16.msra.mxu0 0
        %766 = vmatpush.bf16.msra.mxu0 0
        %767 = vmatpush.bf16.msra.mxu0 0
        %768 = vmatpush.bf16.msra.mxu0 0
        %769 = vmatpush.bf16.msra.mxu0 %v643
        %770 = vmatmul.bf16.gmra.mxu0 %v578
        %v771 = vpop.f32.mrf.mxu0
        %v772 = vadd.f32 0.0, %v771
        %v773 = vpop.f32.mrf.mxu0
        %774 = vdwg.mxu0
        %v775 = vpack.c.bf16 %v772, %v772
        %v779 = vunpack.c.l.b16 %v628
        %v780 = vunpack.c.l.b16 %v629
        %v781 = vunpack.c.l.b16 %v630
        %v782 = vpack.c.b16 %v780, %v779
        %v783 = vpack.c.b16 %v781, %v781
        %v786 = vsel %vm682, %v775, 0
        %v789 = vand.u32 %v783, %v689
        %791 = vmatpush.bf16.msra.mxu0 0
        %792 = vmatpush.bf16.msra.mxu0 0
        %793 = vmatpush.bf16.msra.mxu0 0
        %794 = vmatpush.bf16.msra.mxu0 0
        %795 = vmatpush.bf16.msra.mxu0 0
        %796 = vmatpush.bf16.msra.mxu0 0
        %797 = vmatpush.bf16.msra.mxu0 %v789
        %798 = vmatpush.bf16.msra.mxu0 %v782
        %799 = vmatmul.bf16.gmra.mxu0 %v786
        %v800 = vpop.f32.mrf.mxu0
        %v801 = vadd.f32 0.0, %v800
        %v802 = vpop.f32.mrf.mxu0
        %803 = vdwg.mxu0
        %v804 = vadd.f32 %v761, %v801
        %vm805 = vcmp.eq.s32.totalorder %v507, 2
        %v806 = vsel %vm805, 1.0, 0.0
        %v807 = vpack.c.bf16 %v806, %v806
        %v809 = vsel %vm511, %v807, 0
        %811 = vmatpush.bf16.msra.mxu0 0
        %812 = vmatpush.bf16.msra.mxu0 0
        %813 = vmatpush.bf16.msra.mxu0 0
        %814 = vmatpush.bf16.msra.mxu0 0
        %815 = vmatpush.bf16.msra.mxu0 0
        %816 = vmatpush.bf16.msra.mxu0 0
        %817 = vmatpush.bf16.msra.mxu0 0
        %818 = vmatpush.bf16.msra.mxu0 %v643
        %819 = vmatmul.bf16.gmra.mxu0 %v809
        %v820 = vpop.f32.mrf.mxu0
        %v821 = vadd.f32 0.0, %v820
        %v822 = vpop.f32.mrf.mxu0
        %823 = vdwg.mxu0
        %v824 = vpack.c.bf16 %v821, %v821
        %v828 = vunpack.c.l.b16 %v631
        %v829 = vunpack.c.l.b16 %v632
        %v830 = vunpack.c.l.b16 %v633
        %v831 = vpack.c.b16 %v829, %v828
        %v832 = vpack.c.b16 %v830, %v830
        %v835 = vsel %vm682, %v824, 0
        %v838 = vand.u32 %v832, %v689
        %840 = vmatpush.bf16.msra.mxu0 0
        %841 = vmatpush.bf16.msra.mxu0 0
        %842 = vmatpush.bf16.msra.mxu0 0
        %843 = vmatpush.bf16.msra.mxu0 0
        %844 = vmatpush.bf16.msra.mxu0 0
        %845 = vmatpush.bf16.msra.mxu0 0
        %846 = vmatpush.bf16.msra.mxu0 %v838
        %847 = vmatpush.bf16.msra.mxu0 %v831
        %848 = vmatmul.bf16.gmra.mxu0 %v835
        %v849 = vpop.f32.mrf.mxu0
        %v850 = vadd.f32 0.0, %v849
        %v851 = vpop.f32.mrf.mxu0
        %852 = vdwg.mxu0
        %v853 = vadd.f32 %v804, %v850
        %v855 = vperm.slane %v634, 0
        %v857 = vadd.f32 %v853, %v855
        %v858 = vmax.f32 %v857, 0.0
        %v859 = vld [vmem:[#allocation4] sm:$0xf]
        %v860 = vld [vmem:[#allocation4 + $0x4] sm:$0xf]
        %v861 = vld [vmem:[#allocation4 + $0x8] sm:$0xf]
        %v862 = vld [vmem:[#allocation4 + $0xc] sm:$0xf]
        %v863 = vld [vmem:[#allocation4 + $0x10] sm:$0xf]
        %v864 = vld [vmem:[#allocation4 + $0x14] sm:$0x1]
        %v865 = vld [vmem:[#allocation4 + $0x18] sm:$0xf]
        %v866 = vld [vmem:[#allocation4 + $0x1c] sm:$0xf]
        %v867 = vld [vmem:[#allocation4 + $0x20] sm:$0xf]
        %v868 = vld [vmem:[#allocation4 + $0x24] sm:$0xf]
        %v869 = vld [vmem:[#allocation4 + $0x28] sm:$0xf]
        %v870 = vld [vmem:[#allocation4 + $0x2c] sm:$0x1]
        %v871 = vld [vmem:[#allocation4 + $0x30] sm:$0xf]
        %v872 = vld [vmem:[#allocation4 + $0x34] sm:$0xf]
        %v873 = vld [vmem:[#allocation4 + $0x38] sm:$0xf]
        %v874 = vld [vmem:[#allocation4 + $0x3c] sm:$0xf]
        %v875 = vld [vmem:[#allocation4 + $0x40] sm:$0xf]
        %v876 = vld [vmem:[#allocation4 + $0x44] sm:$0x1]
        %v877 = vld [vmem:[#allocation4 + $0x48] sm:$0xf]
        %v878 = vld [vmem:[#allocation4 + $0x4c] sm:$0xf]
        %v879 = vld [vmem:[#allocation4 + $0x50] sm:$0xf]
        %v880 = vld [vmem:[#allocation4 + $0x54] sm:$0xf]
        %v881 = vld [vmem:[#allocation4 + $0x58] sm:$0xf]
        %v882 = vld [vmem:[#allocation4 + $0x5c] sm:$0x1]
        %v883 = vld [vmem:[#allocation4 + $0x60] sm:$0xf]
        %v884 = vld [vmem:[#allocation4 + $0x64] sm:$0xf]
        %v885 = vld [vmem:[#allocation4 + $0x68] sm:$0xf]
        %v886 = vld [vmem:[#allocation4 + $0x6c] sm:$0xf]
        %v887 = vld [vmem:[#allocation4 + $0x70] sm:$0xf]
        %v888 = vld [vmem:[#allocation4 + $0x74] sm:$0x1]
        %v889 = vld [vmem:[#allocation4 + $0x78] sm:$0xf]
        %v890 = vld [vmem:[#allocation4 + $0x7c] sm:$0xf]
        %v891 = vld [vmem:[#allocation4 + $0x80] sm:$0xf]
        %v892 = vld [vmem:[#allocation4 + $0x84] sm:$0xf]
        %v893 = vld [vmem:[#allocation4 + $0x88] sm:$0xf]
        %v894 = vld [vmem:[#allocation4 + $0x8c] sm:$0x1]
        %v895 = vld [vmem:[#allocation4 + $0x90] sm:$0xf]
        %v896 = vld [vmem:[#allocation4 + $0x94] sm:$0xf]
        %v897 = vld [vmem:[#allocation4 + $0x98] sm:$0xf]
        %v898 = vld [vmem:[#allocation4 + $0x9c] sm:$0xf]
        %v899 = vld [vmem:[#allocation4 + $0xa0] sm:$0xf]
        %v900 = vld [vmem:[#allocation4 + $0xa4] sm:$0x1]
        %v901 = vld [vmem:[%s8] sm:$0x1]
        %v902 = vpack.c.bf16 %v858, %v858
        %vm903 = vcmp.eq.s32.totalorder %v507, 4294967293
        %v904 = vsel %vm903, 1.0, 0.0
        %v905 = vpack.c.bf16 %v904, %v904
        %v907 = vsel %vm511, %v905, 0
        %v910 = vsel %vm515, %v902, 0
        %912 = vmatpush.bf16.msra.mxu0 0
        %913 = vmatpush.bf16.msra.mxu0 0
        %914 = vmatpush.bf16.msra.mxu0 0
        %915 = vmatpush.bf16.msra.mxu0 0
        %916 = vmatpush.bf16.msra.mxu0 0
        %917 = vmatpush.bf16.msra.mxu0 0
        %918 = vmatpush.bf16.msra.mxu0 0
        %919 = vmatpush.bf16.msra.mxu0 %v910
        %920 = vmatmul.bf16.gmra.mxu0 %v907
        %v921 = vpop.f32.mrf.mxu0
        %v922 = vadd.f32 0.0, %v921
        %v923 = vpop.f32.mrf.mxu0
        %924 = vdwg.mxu0
        %v925 = vpack.c.bf16 %v922, %v922
        %926 = vmatpush.bf16.msra.mxu0 0
        %927 = vmatpush.bf16.msra.mxu0 0
        %928 = vmatpush.bf16.msra.mxu0 0
        %929 = vmatpush.bf16.msra.mxu0 0
        %930 = vmatpush.bf16.msra.mxu0 0
        %931 = vmatpush.bf16.msra.mxu0 0
        %932 = vmatpush.bf16.msra.mxu0 0
        %933 = vmatpush.bf16.msra.mxu0 %v910
        %934 = vmatmul.bf16.gmra.mxu0 %v640
        %v935 = vpop.f32.mrf.mxu0
        %v936 = vadd.f32 0.0, %v935
        %v937 = vpop.f32.mrf.mxu0
        %938 = vdwg.mxu0
        %v939 = vpack.c.bf16 %v936, %v936
        %v946 = vunpack.c.l.b16 %v865
        %v947 = vunpack.c.l.b16 %v866
        %v948 = vunpack.c.l.b16 %v867
        %v949 = vunpack.c.l.b16 %v868
        %v950 = vunpack.c.l.b16 %v869
        %v951 = vunpack.c.l.b16 %v870
        %v952 = vpack.c.b16 %v947, %v946
        %v953 = vpack.c.b16 %v949, %v948
        %v954 = vpack.c.b16 %v951, %v950
        %vm957 = vcmask 343040
        %v959 = vsel %vm957, %v939, 0
        %vm961 = vcmask 1044480
        %v963 = vsel %vm961, %v954, 0
        %965 = vmatpush.bf16.msra.mxu0 0
        %966 = vmatpush.bf16.msra.mxu0 0
        %967 = vmatpush.bf16.msra.mxu0 0
        %968 = vmatpush.bf16.msra.mxu0 0
        %969 = vmatpush.bf16.msra.mxu0 0
        %970 = vmatpush.bf16.msra.mxu0 %v963
        %971 = vmatpush.bf16.msra.mxu0 %v953
        %972 = vmatpush.bf16.msra.mxu0 %v952
        %973 = vmatmul.bf16.gmra.mxu0 %v959
        %v974 = vpop.f32.mrf.mxu0
        %v975 = vadd.f32 0.0, %v974
        %v976 = vpop.f32.mrf.mxu0
        %977 = vdwg.mxu0
        %v984 = vunpack.c.l.b16 %v859
        %v985 = vunpack.c.l.b16 %v860
        %v986 = vunpack.c.l.b16 %v861
        %v987 = vunpack.c.l.b16 %v862
        %v988 = vunpack.c.l.b16 %v863
        %v989 = vunpack.c.l.b16 %v864
        %v990 = vpack.c.b16 %v985, %v984
        %v991 = vpack.c.b16 %v987, %v986
        %v992 = vpack.c.b16 %v989, %v988
        %v996 = vsel %vm957, %v925, 0
        %v999 = vsel %vm961, %v992, 0
        %1001 = vmatpush.bf16.msra.mxu0 0
        %1002 = vmatpush.bf16.msra.mxu0 0
        %1003 = vmatpush.bf16.msra.mxu0 0
        %1004 = vmatpush.bf16.msra.mxu0 0
        %1005 = vmatpush.bf16.msra.mxu0 0
        %1006 = vmatpush.bf16.msra.mxu0 %v999
        %1007 = vmatpush.bf16.msra.mxu0 %v991
        %1008 = vmatpush.bf16.msra.mxu0 %v990
        %1009 = vmatmul.bf16.gmra.mxu0 %v996
        %v1010 = vpop.f32.mrf.mxu0
        %v1011 = vadd.f32 %v975, %v1010
        %v1012 = vpop.f32.mrf.mxu0
        %1013 = vdwg.mxu0
        %1014 = vmatpush.bf16.msra.mxu0 0
        %1015 = vmatpush.bf16.msra.mxu0 0
        %1016 = vmatpush.bf16.msra.mxu0 0
        %1017 = vmatpush.bf16.msra.mxu0 0
        %1018 = vmatpush.bf16.msra.mxu0 0
        %1019 = vmatpush.bf16.msra.mxu0 0
        %1020 = vmatpush.bf16.msra.mxu0 0
        %1021 = vmatpush.bf16.msra.mxu0 %v910
        %1022 = vmatmul.bf16.gmra.mxu0 %v513
        %v1023 = vpop.f32.mrf.mxu0
        %v1024 = vadd.f32 0.0, %v1023
        %v1025 = vpop.f32.mrf.mxu0
        %1026 = vdwg.mxu0
        %v1027 = vpack.c.bf16 %v1024, %v1024
        %v1034 = vunpack.c.l.b16 %v871
        %v1035 = vunpack.c.l.b16 %v872
        %v1036 = vunpack.c.l.b16 %v873
        %v1037 = vunpack.c.l.b16 %v874
        %v1038 = vunpack.c.l.b16 %v875
        %v1039 = vunpack.c.l.b16 %v876
        %v1040 = vpack.c.b16 %v1035, %v1034
        %v1041 = vpack.c.b16 %v1037, %v1036
        %v1042 = vpack.c.b16 %v1039, %v1038
        %v1046 = vsel %vm957, %v1027, 0
        %v1049 = vsel %vm961, %v1042, 0
        %1051 = vmatpush.bf16.msra.mxu0 0
        %1052 = vmatpush.bf16.msra.mxu0 0
        %1053 = vmatpush.bf16.msra.mxu0 0
        %1054 = vmatpush.bf16.msra.mxu0 0
        %1055 = vmatpush.bf16.msra.mxu0 0
        %1056 = vmatpush.bf16.msra.mxu0 %v1049
        %1057 = vmatpush.bf16.msra.mxu0 %v1041
        %1058 = vmatpush.bf16.msra.mxu0 %v1040
        %1059 = vmatmul.bf16.gmra.mxu0 %v1046
        %v1060 = vpop.f32.mrf.mxu0
        %v1061 = vadd.f32 0.0, %v1060
        %v1062 = vpop.f32.mrf.mxu0
        %1063 = vdwg.mxu0
        %v1064 = vadd.f32 %v1011, %v1061
        %v1071 = vunpack.c.l.b16 %v877
        %v1072 = vunpack.c.l.b16 %v878
        %v1073 = vunpack.c.l.b16 %v879
        %v1074 = vunpack.c.l.b16 %v880
        %v1075 = vunpack.c.l.b16 %v881
        %v1076 = vunpack.c.l.b16 %v882
        %v1077 = vpack.c.b16 %v1072, %v1071
        %v1078 = vpack.c.b16 %v1074, %v1073
        %v1079 = vpack.c.b16 %v1076, %v1075
        %v1082 = vsel %vm957, %v902, 0
        %v1085 = vsel %vm961, %v1079, 0
        %1087 = vmatpush.bf16.msra.mxu0 0
        %1088 = vmatpush.bf16.msra.mxu0 0
        %1089 = vmatpush.bf16.msra.mxu0 0
        %1090 = vmatpush.bf16.msra.mxu0 0
        %1091 = vmatpush.bf16.msra.mxu0 0
        %1092 = vmatpush.bf16.msra.mxu0 %v1085
        %1093 = vmatpush.bf16.msra.mxu0 %v1078
        %1094 = vmatpush.bf16.msra.mxu0 %v1077
        %1095 = vmatmul.bf16.gmra.mxu0 %v1082
        %v1096 = vpop.f32.mrf.mxu0
        %v1097 = vadd.f32 0.0, %v1096
        %v1098 = vpop.f32.mrf.mxu0
        %1099 = vdwg.mxu0
        %v1100 = vadd.f32 %v1064, %v1097
        %1101 = vmatpush.bf16.msra.mxu0 0
        %1102 = vmatpush.bf16.msra.mxu0 0
        %1103 = vmatpush.bf16.msra.mxu0 0
        %1104 = vmatpush.bf16.msra.mxu0 0
        %1105 = vmatpush.bf16.msra.mxu0 0
        %1106 = vmatpush.bf16.msra.mxu0 0
        %1107 = vmatpush.bf16.msra.mxu0 0
        %1108 = vmatpush.bf16.msra.mxu0 %v910
        %1109 = vmatmul.bf16.gmra.mxu0 %v578
        %v1110 = vpop.f32.mrf.mxu0
        %v1111 = vadd.f32 0.0, %v1110
        %v1112 = vpop.f32.mrf.mxu0
        %1113 = vdwg.mxu0
        %v1114 = vpack.c.bf16 %v1111, %v1111
        %v1121 = vunpack.c.l.b16 %v883
        %v1122 = vunpack.c.l.b16 %v884
        %v1123 = vunpack.c.l.b16 %v885
        %v1124 = vunpack.c.l.b16 %v886
        %v1125 = vunpack.c.l.b16 %v887
        %v1126 = vunpack.c.l.b16 %v888
        %v1127 = vpack.c.b16 %v1122, %v1121
        %v1128 = vpack.c.b16 %v1124, %v1123
        %v1129 = vpack.c.b16 %v1126, %v1125
        %v1133 = vsel %vm957, %v1114, 0
        %v1136 = vsel %vm961, %v1129, 0
        %1138 = vmatpush.bf16.msra.mxu0 0
        %1139 = vmatpush.bf16.msra.mxu0 0
        %1140 = vmatpush.bf16.msra.mxu0 0
        %1141 = vmatpush.bf16.msra.mxu0 0
        %1142 = vmatpush.bf16.msra.mxu0 0
        %1143 = vmatpush.bf16.msra.mxu0 %v1136
        %1144 = vmatpush.bf16.msra.mxu0 %v1128
        %1145 = vmatpush.bf16.msra.mxu0 %v1127
        %1146 = vmatmul.bf16.gmra.mxu0 %v1133
        %v1147 = vpop.f32.mrf.mxu0
        %v1148 = vadd.f32 0.0, %v1147
        %v1149 = vpop.f32.mrf.mxu0
        %1150 = vdwg.mxu0
        %v1151 = vadd.f32 %v1100, %v1148
        %1152 = vmatpush.bf16.msra.mxu0 0
        %1153 = vmatpush.bf16.msra.mxu0 0
        %1154 = vmatpush.bf16.msra.mxu0 0
        %1155 = vmatpush.bf16.msra.mxu0 0
        %1156 = vmatpush.bf16.msra.mxu0 0
        %1157 = vmatpush.bf16.msra.mxu0 0
        %1158 = vmatpush.bf16.msra.mxu0 0
        %1159 = vmatpush.bf16.msra.mxu0 %v910
        %1160 = vmatmul.bf16.gmra.mxu0 %v809
        %v1161 = vpop.f32.mrf.mxu0
        %v1162 = vadd.f32 0.0, %v1161
        %v1163 = vpop.f32.mrf.mxu0
        %1164 = vdwg.mxu0
        %v1165 = vpack.c.bf16 %v1162, %v1162
        %v1172 = vunpack.c.l.b16 %v889
        %v1173 = vunpack.c.l.b16 %v890
        %v1174 = vunpack.c.l.b16 %v891
        %v1175 = vunpack.c.l.b16 %v892
        %v1176 = vunpack.c.l.b16 %v893
        %v1177 = vunpack.c.l.b16 %v894
        %v1178 = vpack.c.b16 %v1173, %v1172
        %v1179 = vpack.c.b16 %v1175, %v1174
        %v1180 = vpack.c.b16 %v1177, %v1176
        %v1184 = vsel %vm957, %v1165, 0
        %v1187 = vsel %vm961, %v1180, 0
        %1189 = vmatpush.bf16.msra.mxu0 0
        %1190 = vmatpush.bf16.msra.mxu0 0
        %1191 = vmatpush.bf16.msra.mxu0 0
        %1192 = vmatpush.bf16.msra.mxu0 0
        %1193 = vmatpush.bf16.msra.mxu0 0
        %1194 = vmatpush.bf16.msra.mxu0 %v1187
        %1195 = vmatpush.bf16.msra.mxu0 %v1179
        %1196 = vmatpush.bf16.msra.mxu0 %v1178
        %1197 = vmatmul.bf16.gmra.mxu0 %v1184
        %v1198 = vpop.f32.mrf.mxu0
        %v1199 = vadd.f32 0.0, %v1198
        %v1200 = vpop.f32.mrf.mxu0
        %1201 = vdwg.mxu0
        %v1202 = vadd.f32 %v1151, %v1199
        %vm1203 = vcmp.eq.s32.totalorder %v507, 3
        %v1204 = vsel %vm1203, 1.0, 0.0
        %v1205 = vpack.c.bf16 %v1204, %v1204
        %v1207 = vsel %vm511, %v1205, 0
        %1209 = vmatpush.bf16.msra.mxu0 0
        %1210 = vmatpush.bf16.msra.mxu0 0
        %1211 = vmatpush.bf16.msra.mxu0 0
        %1212 = vmatpush.bf16.msra.mxu0 0
        %1213 = vmatpush.bf16.msra.mxu0 0
        %1214 = vmatpush.bf16.msra.mxu0 0
        %1215 = vmatpush.bf16.msra.mxu0 0
        %1216 = vmatpush.bf16.msra.mxu0 %v910
        %1217 = vmatmul.bf16.gmra.mxu0 %v1207
        %v1218 = vpop.f32.mrf.mxu0
        %v1219 = vadd.f32 0.0, %v1218
        %v1220 = vpop.f32.mrf.mxu0
        %1221 = vdwg.mxu0
        %v1222 = vpack.c.bf16 %v1219, %v1219
        %v1229 = vunpack.c.l.b16 %v895
        %v1230 = vunpack.c.l.b16 %v896
        %v1231 = vunpack.c.l.b16 %v897
        %v1232 = vunpack.c.l.b16 %v898
        %v1233 = vunpack.c.l.b16 %v899
        %v1234 = vunpack.c.l.b16 %v900
        %v1235 = vpack.c.b16 %v1230, %v1229
        %v1236 = vpack.c.b16 %v1232, %v1231
        %v1237 = vpack.c.b16 %v1234, %v1233
        %v1241 = vsel %vm957, %v1222, 0
        %v1244 = vsel %vm961, %v1237, 0
        %1246 = vmatpush.bf16.msra.mxu0 0
        %1247 = vmatpush.bf16.msra.mxu0 0
        %1248 = vmatpush.bf16.msra.mxu0 0
        %1249 = vmatpush.bf16.msra.mxu0 0
        %1250 = vmatpush.bf16.msra.mxu0 0
        %1251 = vmatpush.bf16.msra.mxu0 %v1244
        %1252 = vmatpush.bf16.msra.mxu0 %v1236
        %1253 = vmatpush.bf16.msra.mxu0 %v1235
        %1254 = vmatmul.bf16.gmra.mxu0 %v1241
        %v1255 = vpop.f32.mrf.mxu0
        %v1256 = vadd.f32 0.0, %v1255
        %v1257 = vpop.f32.mrf.mxu0
        %1258 = vdwg.mxu0
        %v1259 = vadd.f32 %v1202, %v1256
        %v1261 = vperm.slane %v901, 0
        %v1263 = vadd.f32 %v1259, %v1261
        %v1264 = vmax.f32 %v1263, 0.0
        %v1265 = vld [vmem:[%s11] sm:$0x1]
        %v1266 = vld [vmem:[%s10] sm:$0xff]
        %v1267 = vadd.f32 %v1264, %v1266
        %v1269 = vperm.slane %v1265, 0
        %v1271 = vadd.f32 %v1267, %v1269
        %v1272 = vld [vmem:[%s9] sm:$0x1]
        %v1273 = vld [vmem:[%s10 + $0x8] sm:$0x1]
        %v1274 = vadd.f32 %v1272, %v1273
        %v1275 = vadd.f32 %v1274, %v1265
        %v1276 = vld [vmem:[%s12] sm:$0x1]
        %v1277 = vld [vmem:[%s13] sm:$0x1]
        %vm1278 = vcmask 523264
        %v1279 = vsel %vm1278, %v1271, 0.0
        %1280 = vadd.xlane.f32.xlu0 %v1279
        %v1281 = vpop.xlane.xlu0 %1280
        %v1282 = vrcp.pop 64.0
        %v1283 = vmul.f32 64.0, %v1282
        %v1284 = vsub.f32 1.0, %v1283
        %v1285 = vmul.f32 %v1282, %v1284
        %v1286 = vadd.f32 %v1282, %v1285
        %vm1287 = vweird.f32 %v1282
        %v1288 = vsel %vm1287, %v1282, %v1286
        %v1289 = vmul.f32 %v1281, %v1288
        %v1290 = vsub.f32 %v1271, %v1289
        %v1291 = vmul.f32 %v1290, %v1290
        %v1292 = vsel %vm1278, %v1291, 0.0
        %1293 = vadd.xlane.f32.xlu0 %v1292
        %v1294 = vpop.xlane.xlu0 %1293
        %v1295 = vmul.f32 %v1294, %v1288
        %v1296 = vadd.f32 %v1295, 1e-12
        %v1297 = vrsqrt.pop %v1296
        %v1298 = vmul.f32 %v1297, %v1296
        %v1299 = vmul.f32 %v1298, %v1297
        %v1300 = vmul.f32 0.5, %v1299
        %v1301 = vsub.f32 1.5, %v1300
        %v1302 = vmul.f32 %v1297, %v1301
        %vm1303 = vweird.f32 %v1296
        %vm1304 = vweird.f32 %v1297
        %vm1305 = vmor %vm1303, %vm1304
        %v1306 = vsel %vm1305, %v1297, %v1302
        %v1307 = vmul.f32 %v1290, %v1306
        %v1309 = vperm.slane %v1276, 0
        %v1311 = vmul.f32 %v1307, %v1309
        %v1313 = vperm.slane %v1277, 0
        %v1315 = vadd.f32 %v1311, %v1313
        %1316 = vst.msk [vmem:[%s485] sm:$0xff] %vm1278, %v1315
        %vm1317 = vcmask 516096
        %v1318 = vsel %vm1317, %v1275, 0.0
        %1319 = vadd.xlane.f32.xlu0 %v1318
        %v1320 = vpop.xlane.xlu0 %1319
        %v1321 = vmul.f32 %v1320, %v1288
        %v1322 = vsub.f32 %v1275, %v1321
        %v1323 = vmul.f32 %v1322, %v1322
        %v1324 = vsel %vm1317, %v1323, 0.0
        %1325 = vadd.xlane.f32.xlu0 %v1324
        %v1326 = vpop.xlane.xlu0 %1325
        %v1327 = vmul.f32 %v1326, %v1288
        %v1328 = vadd.f32 %v1327, 1e-12
        %v1329 = vrsqrt.pop %v1328
        %v1330 = vmul.f32 %v1329, %v1328
        %v1331 = vmul.f32 %v1330, %v1329
        %v1332 = vmul.f32 0.5, %v1331
        %v1333 = vsub.f32 1.5, %v1332
        %v1334 = vmul.f32 %v1329, %v1333
        %vm1335 = vweird.f32 %v1328
        %vm1336 = vweird.f32 %v1329
        %vm1337 = vmor %vm1335, %vm1336
        %v1338 = vsel %vm1337, %v1329, %v1334
        %v1339 = vmul.f32 %v1322, %v1338
        %v1340 = vmul.f32 %v1339, %v1276
        %v1341 = vadd.f32 %v1340, %v1277
        %1342 = vst.msk [vmem:[%s485 + $0x8] sm:$0x1] %vm1317, %v1341
        %p1343 = scmp.lt.s32.totalorder %s30, 1
        %s1344 = scalar_select %p1343, %s30, 1
        %s1345 = smul.addr %s1344, 2
        %s1346 = smul.addr %s1345, 8
        %s1347 = scalar_lea.vmem %s14, %s1346
        // Predicated region
        $region81: #{_lambda_.2} parent=75 // pred_check
          %p1348 = pneg %p347
        $region82: #{_lambda_.2} parent=75 // pred_check_branch
          %1350 = sbr.rel (%p1348) target = $region84
        $region83: #{_lambda_.2} parent=75 // pred_region
          _
        $region84: #{_lambda_.2} parent=75 // pred_fallthru
          _
      $region76: #{_lambda_.2} parent=5 // pred_fallthru
        _
      %p1351 = scmp.le.s32.totalorder 2, %s25
      // Predicated region
      $region85: #{_lambda_.2} parent=5 // pred_check
        %p1352 = pneg %p1351
      $region86: #{_lambda_.2} parent=5 // pred_check_branch
        %1354 = sbr.rel (%p1352) target = $region88
      $region87: #{_lambda_.2} parent=5 // pred_region
        %s1355 = ssub.s32 %s25, 2
        // Predicated region
        $region89: #{_lambda_.2} parent=87 // pred_check
          %p1356 = pneg %p353
        $region90: #{_lambda_.2} parent=87 // pred_check_branch
          %1358 = sbr.rel (%p1356) target = $region92
        $region91: #{_lambda_.2} parent=87 // pred_region
          %p1359 = scmp.lt.s32.totalorder %s31, 1
          %s1360 = scalar_select %p1359, %s31, 1
          %s1361 = smul.addr %s1360, 2
          %s1362 = smul.addr %s1361, 8
          %s1363 = scalar_lea.vmem %s14, %s1362
        $region92: #{_lambda_.2} parent=87 // pred_fallthru
          _
      $region88: #{_lambda_.2} parent=5 // pred_fallthru
        _
    $region6: #{_lambda_.2} parent=1 // loop_footer
      %s29 = sadd.s32 1, %s25
    $region7: #{_lambda_.2} parent=1 // loop_footer_branch
      %24 = sbr.rel target = $region3
    $region8: #{_lambda_.2} parent=1 // loop_exit
      _
    %1364 = vsyncpa [#allocation5], 1
    %s1365 = scalar_lea.sflag [#allocation5], 1
    %1366 = vsyncpa %s1365, 1

// kernel: _lambda_.3
$region0: #{_lambda_.3}
  #allocation0 [shape = 'u32[]', space=smem, size = 0x4, offset = 0x4, fixed_abs, tag = 'smem constant byte address 0x4 - core index']
  #allocation1 [shape = 'u32[72,128]{1,0:T(1,128)}', space=vmem, size = 0x9000, scoped, tag = 'internal scratch']
  #allocation2 [shape = 'f32[2,9,64]{2,1,0:T(8,128)}', space=vmem, size = 0x4000, scoped, tag = 'scratch operand']
  %s0 = inlined_call_operand.vmem [shape: f32[2,9,64], index: 0, kind: input, shape index: {}]
  %s1 = inlined_call_operand.vmem [shape: bf16[2,64,192], index: 1, kind: input, shape index: {}]
  %s2 = inlined_call_operand.vmem [shape: f32[2,1,192], index: 2, kind: input, shape index: {}]
  %s3 = inlined_call_operand.vmem [shape: bf16[2,64,64], index: 3, kind: input, shape index: {}]
  %s4 = inlined_call_operand.vmem [shape: f32[2,1,64], index: 4, kind: input, shape index: {}]
  %s5 = inlined_call_operand.vmem [shape: f32[2,1,64], index: 5, kind: input, shape index: {}]
  %s6 = inlined_call_operand.vmem [shape: f32[2,1,64], index: 6, kind: input, shape index: {}]
  %s7 = inlined_call_operand.vmem [shape: bf16[2,64,256], index: 7, kind: input, shape index: {}]
  %s8 = inlined_call_operand.vmem [shape: f32[2,1,256], index: 8, kind: input, shape index: {}]
  %s9 = inlined_call_operand.vmem [shape: bf16[2,256,64], index: 9, kind: input, shape index: {}]
  %s10 = inlined_call_operand.vmem [shape: f32[2,1,64], index: 10, kind: input, shape index: {}]
  %s11 = inlined_call_operand.vmem [shape: f32[2,1,64], index: 11, kind: input, shape index: {}]
  %s12 = inlined_call_operand.vmem [shape: f32[2,1,64], index: 12, kind: input, shape index: {}]
  %s13 = inlined_call_operand.vmem [shape: bf16[64,3], index: 13, kind: input, shape index: {}]
  %s14 = inlined_call_operand.vmem [shape: f32[1,3], index: 14, kind: input, shape index: {}]
  %s15 = inlined_call_operand.hbm [shape: f32[2,1,3], index: 15, kind: output, shape index: {}]
  %s16 = sld [smem:[#allocation0]]
  $region105: #{_lambda_.3} parent=0
    _
  %s18 = ssub.s32 1, %s16
  %s19 = scalar_select 0, %s18, %s16
  $region1: #{_lambda_.3} parent=0
    #allocation3 [shape = 'u8[1024]{0}', space=vmem, size = 0x400, scoped, tag = 'output window, operand 0, single buffered']
    #allocation4 [shape = 's32[2]{0}', space=sflag, size = 0x8, scoped, tag = 'scoped memory for _lambda_.3']
    %20 = vsyncpa [#allocation4], 0
    loop: start=0, step=1, limit=4
    $region2: #{_lambda_.3} parent=1 // loop_pre_header
      _
    $region3: #{_lambda_.3} parent=1 // loop_header
      %s22 = sphi 0, %s26
      %p23 = scmp.ge.s32.totalorder %s22, 4
      %s30 = sphi 0, %s30
      %s32 = sphi 0, %s30
      %s33 = sphi 0, %s32
      %s47 = sphi 0, %s33
      %s53 = sphi 0, %s55
      %s56 = sphi 0, %s53
      %s57 = sphi 0, %s56
      %s73 = sphi 0, %s57
      %s79 = sphi 0, %s81
      %s82 = sphi 0, %s79
      %s83 = sphi 0, %s82
      %s99 = sphi 0, %s83
      %s105 = sphi 0, %s107
      %s108 = sphi 0, %s105
      %s109 = sphi 0, %s108
      %s125 = sphi 0, %s109
      %s131 = sphi 0, %s133
      %s134 = sphi 0, %s131
      %s135 = sphi 0, %s134
      %s151 = sphi 0, %s135
      %s157 = sphi 0, %s159
      %s160 = sphi 0, %s157
      %s161 = sphi 0, %s160
      %s177 = sphi 0, %s161
      %s183 = sphi 0, %s185
      %s186 = sphi 0, %s183
      %s187 = sphi 0, %s186
      %s203 = sphi 0, %s187
      %s209 = sphi 0, %s211
      %s212 = sphi 0, %s209
      %s213 = sphi 0, %s212
      %s229 = sphi 0, %s213
      %s235 = sphi 0, %s237
      %s238 = sphi 0, %s235
      %s239 = sphi 0, %s238
      %s255 = sphi 0, %s239
      %s261 = sphi 0, %s263
      %s264 = sphi 0, %s261
      %s265 = sphi 0, %s264
      %s281 = sphi 0, %s265
      %s287 = sphi 0, %s289
      %s290 = sphi 0, %s287
      %s291 = sphi 0, %s290
      %s307 = sphi 0, %s291
      %s313 = sphi 0, %s315
      %s316 = sphi 0, %s313
      %s317 = sphi 0, %s316
      %s333 = sphi 0, %s317
      %s339 = sphi 0, %s341
      %s342 = sphi 0, %s339
      %s343 = sphi 0, %s342
      %s359 = sphi 0, %s343
      %s363 = sphi 0, %s363
      %s365 = sphi 0, %s363
      %s366 = sphi 0, %s365
      %s380 = sphi 0, %s366
      %s384 = sphi 0, %s384
      %s386 = sphi 0, %s384
      %s387 = sphi 0, %s386
      %s401 = sphi 0, %s387
      %s405 = sphi 0, %s405
      %s407 = sphi 0, %s405
      %s408 = sphi 0, %s407
      %s422 = sphi 0, %s408
    $region4: #{_lambda_.3} parent=1 // loop_header_branch
      %25 = sbr.rel (%p23) target = $region8
    $region5: #{_lambda_.3} parent=1 // loop_body
      %s27 = ssub.s32 %s22, 1
      %s28 = ssub.s32 %s22, 2
      %s29 = sadd.s32 %s22, 1
      %s31 = sadd.s32 %s30, 1
      %p34 = scmp.eq.s32.totalorder %s22, 1
      %p35 = scmp.ne.s32.totalorder %s30, %s32
      %p36 = scmp.eq.s32.totalorder %s22, 0
      %p37 = por %p35, %p36
      %p38 = scmp.ne.s32.totalorder %s30, %s32
      %p39 = scmp.eq.s32.totalorder %s27, 1
      %p40 = por %p38, %p39
      %p41 = scmp.ne.s32.totalorder %s32, %s33
      %p42 = scmp.eq.s32.totalorder %s27, 0
      %p43 = por %p41, %p42
      %p44 = scmp.ne.s32.totalorder %s32, %s33
      %p45 = scmp.eq.s32.totalorder %s28, 1
      %p46 = por %p44, %p45
      %p48 = scmp.ne.s32.totalorder %s33, %s47
      %p49 = scmp.eq.s32.totalorder %s28, 0
      %p50 = por %p48, %p49
      %s51 = ssub.s32 %s22, %s29
      %p52 = scmp.eq.s32.totalorder %s51, 0
      %s54 = sadd.s32 %s53, 1
      %s55 = scalar_select %p52, %s53, %s54
      %p58 = pneg %p52
      %p59 = scmp.eq.s32.totalorder %s22, 1
      %p60 = por %p58, %p59
      %p61 = scmp.ne.s32.totalorder %s53, %s56
      %p62 = scmp.eq.s32.totalorder %s22, 0
      %p63 = por %p61, %p62
      %p64 = scmp.ne.s32.totalorder %s53, %s56
      %p65 = scmp.eq.s32.totalorder %s27, 1
      %p66 = por %p64, %p65
      %p67 = scmp.ne.s32.totalorder %s56, %s57
      %p68 = scmp.eq.s32.totalorder %s27, 0
      %p69 = por %p67, %p68
      %p70 = scmp.ne.s32.totalorder %s56, %s57
      %p71 = scmp.eq.s32.totalorder %s28, 1
      %p72 = por %p70, %p71
      %p74 = scmp.ne.s32.totalorder %s57, %s73
      %p75 = scmp.eq.s32.totalorder %s28, 0
      %p76 = por %p74, %p75
      %s77 = ssub.s32 %s22, %s29
      %p78 = scmp.eq.s32.totalorder %s77, 0
      %s80 = sadd.s32 %s79, 1
      %s81 = scalar_select %p78, %s79, %s80
      %p84 = pneg %p78
      %p85 = scmp.eq.s32.totalorder %s22, 1
      %p86 = por %p84, %p85
      %p87 = scmp.ne.s32.totalorder %s79, %s82
      %p88 = scmp.eq.s32.totalorder %s22, 0
      %p89 = por %p87, %p88
      %p90 = scmp.ne.s32.totalorder %s79, %s82
      %p91 = scmp.eq.s32.totalorder %s27, 1
      %p92 = por %p90, %p91
      %p93 = scmp.ne.s32.totalorder %s82, %s83
      %p94 = scmp.eq.s32.totalorder %s27, 0
      %p95 = por %p93, %p94
      %p96 = scmp.ne.s32.totalorder %s82, %s83
      %p97 = scmp.eq.s32.totalorder %s28, 1
      %p98 = por %p96, %p97
      %p100 = scmp.ne.s32.totalorder %s83, %s99
      %p101 = scmp.eq.s32.totalorder %s28, 0
      %p102 = por %p100, %p101
      %s103 = ssub.s32 %s22, %s29
      %p104 = scmp.eq.s32.totalorder %s103, 0
      %s106 = sadd.s32 %s105, 1
      %s107 = scalar_select %p104, %s105, %s106
      %p110 = pneg %p104
      %p111 = scmp.eq.s32.totalorder %s22, 1
      %p112 = por %p110, %p111
      %p113 = scmp.ne.s32.totalorder %s105, %s108
      %p114 = scmp.eq.s32.totalorder %s22, 0
      %p115 = por %p113, %p114
      %p116 = scmp.ne.s32.totalorder %s105, %s108
      %p117 = scmp.eq.s32.totalorder %s27, 1
      %p118 = por %p116, %p117
      %p119 = scmp.ne.s32.totalorder %s108, %s109
      %p120 = scmp.eq.s32.totalorder %s27, 0
      %p121 = por %p119, %p120
      %p122 = scmp.ne.s32.totalorder %s108, %s109
      %p123 = scmp.eq.s32.totalorder %s28, 1
      %p124 = por %p122, %p123
      %p126 = scmp.ne.s32.totalorder %s109, %s125
      %p127 = scmp.eq.s32.totalorder %s28, 0
      %p128 = por %p126, %p127
      %s129 = ssub.s32 %s22, %s29
      %p130 = scmp.eq.s32.totalorder %s129, 0
      %s132 = sadd.s32 %s131, 1
      %s133 = scalar_select %p130, %s131, %s132
      %p136 = pneg %p130
      %p137 = scmp.eq.s32.totalorder %s22, 1
      %p138 = por %p136, %p137
      %p139 = scmp.ne.s32.totalorder %s131, %s134
      %p140 = scmp.eq.s32.totalorder %s22, 0
      %p141 = por %p139, %p140
      %p142 = scmp.ne.s32.totalorder %s131, %s134
      %p143 = scmp.eq.s32.totalorder %s27, 1
      %p144 = por %p142, %p143
      %p145 = scmp.ne.s32.totalorder %s134, %s135
      %p146 = scmp.eq.s32.totalorder %s27, 0
      %p147 = por %p145, %p146
      %p148 = scmp.ne.s32.totalorder %s134, %s135
      %p149 = scmp.eq.s32.totalorder %s28, 1
      %p150 = por %p148, %p149
      %p152 = scmp.ne.s32.totalorder %s135, %s151
      %p153 = scmp.eq.s32.totalorder %s28, 0
      %p154 = por %p152, %p153
      %s155 = ssub.s32 %s22, %s29
      %p156 = scmp.eq.s32.totalorder %s155, 0
      %s158 = sadd.s32 %s157, 1
      %s159 = scalar_select %p156, %s157, %s158
      %p162 = pneg %p156
      %p163 = scmp.eq.s32.totalorder %s22, 1
      %p164 = por %p162, %p163
      %p165 = scmp.ne.s32.totalorder %s157, %s160
      %p166 = scmp.eq.s32.totalorder %s22, 0
      %p167 = por %p165, %p166
      %p168 = scmp.ne.s32.totalorder %s157, %s160
      %p169 = scmp.eq.s32.totalorder %s27, 1
      %p170 = por %p168, %p169
      %p171 = scmp.ne.s32.totalorder %s160, %s161
      %p172 = scmp.eq.s32.totalorder %s27, 0
      %p173 = por %p171, %p172
      %p174 = scmp.ne.s32.totalorder %s160, %s161
      %p175 = scmp.eq.s32.totalorder %s28, 1
      %p176 = por %p174, %p175
      %p178 = scmp.ne.s32.totalorder %s161, %s177
      %p179 = scmp.eq.s32.totalorder %s28, 0
      %p180 = por %p178, %p179
      %s181 = ssub.s32 %s22, %s29
      %p182 = scmp.eq.s32.totalorder %s181, 0
      %s184 = sadd.s32 %s183, 1
      %s185 = scalar_select %p182, %s183, %s184
      %p188 = pneg %p182
      %p189 = scmp.eq.s32.totalorder %s22, 1
      %p190 = por %p188, %p189
      %p191 = scmp.ne.s32.totalorder %s183, %s186
      %p192 = scmp.eq.s32.totalorder %s22, 0
      %p193 = por %p191, %p192
      %p194 = scmp.ne.s32.totalorder %s183, %s186
      %p195 = scmp.eq.s32.totalorder %s27, 1
      %p196 = por %p194, %p195
      %p197 = scmp.ne.s32.totalorder %s186, %s187
      %p198 = scmp.eq.s32.totalorder %s27, 0
      %p199 = por %p197, %p198
      %p200 = scmp.ne.s32.totalorder %s186, %s187
      %p201 = scmp.eq.s32.totalorder %s28, 1
      %p202 = por %p200, %p201
      %p204 = scmp.ne.s32.totalorder %s187, %s203
      %p205 = scmp.eq.s32.totalorder %s28, 0
      %p206 = por %p204, %p205
      %s207 = ssub.s32 %s22, %s29
      %p208 = scmp.eq.s32.totalorder %s207, 0
      %s210 = sadd.s32 %s209, 1
      %s211 = scalar_select %p208, %s209, %s210
      %p214 = pneg %p208
      %p215 = scmp.eq.s32.totalorder %s22, 1
      %p216 = por %p214, %p215
      %p217 = scmp.ne.s32.totalorder %s209, %s212
      %p218 = scmp.eq.s32.totalorder %s22, 0
      %p219 = por %p217, %p218
      %p220 = scmp.ne.s32.totalorder %s209, %s212
      %p221 = scmp.eq.s32.totalorder %s27, 1
      %p222 = por %p220, %p221
      %p223 = scmp.ne.s32.totalorder %s212, %s213
      %p224 = scmp.eq.s32.totalorder %s27, 0
      %p225 = por %p223, %p224
      %p226 = scmp.ne.s32.totalorder %s212, %s213
      %p227 = scmp.eq.s32.totalorder %s28, 1
      %p228 = por %p226, %p227
      %p230 = scmp.ne.s32.totalorder %s213, %s229
      %p231 = scmp.eq.s32.totalorder %s28, 0
      %p232 = por %p230, %p231
      %s233 = ssub.s32 %s22, %s29
      %p234 = scmp.eq.s32.totalorder %s233, 0
      %s236 = sadd.s32 %s235, 1
      %s237 = scalar_select %p234, %s235, %s236
      %p240 = pneg %p234
      %p241 = scmp.eq.s32.totalorder %s22, 1
      %p242 = por %p240, %p241
      %p243 = scmp.ne.s32.totalorder %s235, %s238
      %p244 = scmp.eq.s32.totalorder %s22, 0
      %p245 = por %p243, %p244
      %p246 = scmp.ne.s32.totalorder %s235, %s238
      %p247 = scmp.eq.s32.totalorder %s27, 1
      %p248 = por %p246, %p247
      %p249 = scmp.ne.s32.totalorder %s238, %s239
      %p250 = scmp.eq.s32.totalorder %s27, 0
      %p251 = por %p249, %p250
      %p252 = scmp.ne.s32.totalorder %s238, %s239
      %p253 = scmp.eq.s32.totalorder %s28, 1
      %p254 = por %p252, %p253
      %p256 = scmp.ne.s32.totalorder %s239, %s255
      %p257 = scmp.eq.s32.totalorder %s28, 0
      %p258 = por %p256, %p257
      %s259 = ssub.s32 %s22, %s29
      %p260 = scmp.eq.s32.totalorder %s259, 0
      %s262 = sadd.s32 %s261, 1
      %s263 = scalar_select %p260, %s261, %s262
      %p266 = pneg %p260
      %p267 = scmp.eq.s32.totalorder %s22, 1
      %p268 = por %p266, %p267
      %p269 = scmp.ne.s32.totalorder %s261, %s264
      %p270 = scmp.eq.s32.totalorder %s22, 0
      %p271 = por %p269, %p270
      %p272 = scmp.ne.s32.totalorder %s261, %s264
      %p273 = scmp.eq.s32.totalorder %s27, 1
      %p274 = por %p272, %p273
      %p275 = scmp.ne.s32.totalorder %s264, %s265
      %p276 = scmp.eq.s32.totalorder %s27, 0
      %p277 = por %p275, %p276
      %p278 = scmp.ne.s32.totalorder %s264, %s265
      %p279 = scmp.eq.s32.totalorder %s28, 1
      %p280 = por %p278, %p279
      %p282 = scmp.ne.s32.totalorder %s265, %s281
      %p283 = scmp.eq.s32.totalorder %s28, 0
      %p284 = por %p282, %p283
      %s285 = ssub.s32 %s22, %s29
      %p286 = scmp.eq.s32.totalorder %s285, 0
      %s288 = sadd.s32 %s287, 1
      %s289 = scalar_select %p286, %s287, %s288
      %p292 = pneg %p286
      %p293 = scmp.eq.s32.totalorder %s22, 1
      %p294 = por %p292, %p293
      %p295 = scmp.ne.s32.totalorder %s287, %s290
      %p296 = scmp.eq.s32.totalorder %s22, 0
      %p297 = por %p295, %p296
      %p298 = scmp.ne.s32.totalorder %s287, %s290
      %p299 = scmp.eq.s32.totalorder %s27, 1
      %p300 = por %p298, %p299
      %p301 = scmp.ne.s32.totalorder %s290, %s291
      %p302 = scmp.eq.s32.totalorder %s27, 0
      %p303 = por %p301, %p302
      %p304 = scmp.ne.s32.totalorder %s290, %s291
      %p305 = scmp.eq.s32.totalorder %s28, 1
      %p306 = por %p304, %p305
      %p308 = scmp.ne.s32.totalorder %s291, %s307
      %p309 = scmp.eq.s32.totalorder %s28, 0
      %p310 = por %p308, %p309
      %s311 = ssub.s32 %s22, %s29
      %p312 = scmp.eq.s32.totalorder %s311, 0
      %s314 = sadd.s32 %s313, 1
      %s315 = scalar_select %p312, %s313, %s314
      %p318 = pneg %p312
      %p319 = scmp.eq.s32.totalorder %s22, 1
      %p320 = por %p318, %p319
      %p321 = scmp.ne.s32.totalorder %s313, %s316
      %p322 = scmp.eq.s32.totalorder %s22, 0
      %p323 = por %p321, %p322
      %p324 = scmp.ne.s32.totalorder %s313, %s316
      %p325 = scmp.eq.s32.totalorder %s27, 1
      %p326 = por %p324, %p325
      %p327 = scmp.ne.s32.totalorder %s316, %s317
      %p328 = scmp.eq.s32.totalorder %s27, 0
      %p329 = por %p327, %p328
      %p330 = scmp.ne.s32.totalorder %s316, %s317
      %p331 = scmp.eq.s32.totalorder %s28, 1
      %p332 = por %p330, %p331
      %p334 = scmp.ne.s32.totalorder %s317, %s333
      %p335 = scmp.eq.s32.totalorder %s28, 0
      %p336 = por %p334, %p335
      %s337 = ssub.s32 %s22, %s29
      %p338 = scmp.eq.s32.totalorder %s337, 0
      %s340 = sadd.s32 %s339, 1
      %s341 = scalar_select %p338, %s339, %s340
      %p344 = pneg %p338
      %p345 = scmp.eq.s32.totalorder %s22, 1
      %p346 = por %p344, %p345
      %p347 = scmp.ne.s32.totalorder %s339, %s342
      %p348 = scmp.eq.s32.totalorder %s22, 0
      %p349 = por %p347, %p348
      %p350 = scmp.ne.s32.totalorder %s339, %s342
      %p351 = scmp.eq.s32.totalorder %s27, 1
      %p352 = por %p350, %p351
      %p353 = scmp.ne.s32.totalorder %s342, %s343
      %p354 = scmp.eq.s32.totalorder %s27, 0
      %p355 = por %p353, %p354
      %p356 = scmp.ne.s32.totalorder %s342, %s343
      %p357 = scmp.eq.s32.totalorder %s28, 1
      %p358 = por %p356, %p357
      %p360 = scmp.ne.s32.totalorder %s343, %s359
      %p361 = scmp.eq.s32.totalorder %s28, 0
      %p362 = por %p360, %p361
      %s364 = sadd.s32 %s363, 1
      %p367 = scmp.eq.s32.totalorder %s22, 1
      %p368 = scmp.ne.s32.totalorder %s363, %s365
      %p369 = scmp.eq.s32.totalorder %s22, 0
      %p370 = por %p368, %p369
      %p371 = scmp.ne.s32.totalorder %s363, %s365
      %p372 = scmp.eq.s32.totalorder %s27, 1
      %p373 = por %p371, %p372
      %p374 = scmp.ne.s32.totalorder %s365, %s366
      %p375 = scmp.eq.s32.totalorder %s27, 0
      %p376 = por %p374, %p375
      %p377 = scmp.ne.s32.totalorder %s365, %s366
      %p378 = scmp.eq.s32.totalorder %s28, 1
      %p379 = por %p377, %p378
      %p381 = scmp.ne.s32.totalorder %s366, %s380
      %p382 = scmp.eq.s32.totalorder %s28, 0
      %p383 = por %p381, %p382
      %s385 = sadd.s32 %s384, 1
      %p388 = scmp.eq.s32.totalorder %s22, 1
      %p389 = scmp.ne.s32.totalorder %s384, %s386
      %p390 = scmp.eq.s32.totalorder %s22, 0
      %p391 = por %p389, %p390
      %p392 = scmp.ne.s32.totalorder %s384, %s386
      %p393 = scmp.eq.s32.totalorder %s27, 1
      %p394 = por %p392, %p393
      %p395 = scmp.ne.s32.totalorder %s386, %s387
      %p396 = scmp.eq.s32.totalorder %s27, 0
      %p397 = por %p395, %p396
      %p398 = scmp.ne.s32.totalorder %s386, %s387
      %p399 = scmp.eq.s32.totalorder %s28, 1
      %p400 = por %p398, %p399
      %p402 = scmp.ne.s32.totalorder %s387, %s401
      %p403 = scmp.eq.s32.totalorder %s28, 0
      %p404 = por %p402, %p403
      %s406 = sadd.s32 %s405, 1
      %p409 = scmp.eq.s32.totalorder %s22, 1
      %p410 = scmp.ne.s32.totalorder %s405, %s407
      %p411 = scmp.eq.s32.totalorder %s22, 0
      %p412 = por %p410, %p411
      %p413 = scmp.ne.s32.totalorder %s405, %s407
      %p414 = scmp.eq.s32.totalorder %s27, 1
      %p415 = por %p413, %p414
      %p416 = scmp.ne.s32.totalorder %s407, %s408
      %p417 = scmp.eq.s32.totalorder %s27, 0
      %p418 = por %p416, %p417
      %p419 = scmp.ne.s32.totalorder %s407, %s408
      %p420 = scmp.eq.s32.totalorder %s28, 1
      %p421 = por %p419, %p420
      %p423 = scmp.ne.s32.totalorder %s408, %s422
      %p424 = scmp.eq.s32.totalorder %s28, 0
      %p425 = por %p423, %p424
      %p426 = scmp.le.s32.totalorder 1, %s22
      %p427 = scmp.lt.s32.totalorder %s22, 3
      %p428 = pnand %p426, %p427
      %p429 = pneg %p428
      // Predicated region
      $region9: #{_lambda_.3} parent=5 // pred_check
        _
      $region10: #{_lambda_.3} parent=5 // pred_check_branch
        %431 = sbr.rel (%p428) target = $region12
      $region11: #{_lambda_.3} parent=5 // pred_region
        %s432 = ssub.s32 %s22, 1
        // Predicated region
        $region13: #{_lambda_.3} parent=11 // pred_check
          %p433 = pneg %p43
        $region14: #{_lambda_.3} parent=11 // pred_check_branch
          %435 = sbr.rel (%p433) target = $region16
        $region15: #{_lambda_.3} parent=11 // pred_region
          _
        $region16: #{_lambda_.3} parent=11 // pred_fallthru
          _
        // Predicated region
        $region17: #{_lambda_.3} parent=11 // pred_check
          %p436 = pneg %p376
        $region18: #{_lambda_.3} parent=11 // pred_check_branch
          %438 = sbr.rel (%p436) target = $region20
        $region19: #{_lambda_.3} parent=11 // pred_region
          _
        $region20: #{_lambda_.3} parent=11 // pred_fallthru
          _
        // Predicated region
        $region21: #{_lambda_.3} parent=11 // pred_check
          %p439 = pneg %p397
        $region22: #{_lambda_.3} parent=11 // pred_check_branch
          %441 = sbr.rel (%p439) target = $region24
        $region23: #{_lambda_.3} parent=11 // pred_region
          _
        $region24: #{_lambda_.3} parent=11 // pred_fallthru
          _
      $region12: #{_lambda_.3} parent=5 // pred_fallthru
        _
      %p442 = scmp.lt.s32.totalorder %s22, 2
      // Predicated region
      $region25: #{_lambda_.3} parent=5 // pred_check
        %p443 = pneg %p442
      $region26: #{_lambda_.3} parent=5 // pred_check_branch
        %445 = sbr.rel (%p443) target = $region28
      $region27: #{_lambda_.3} parent=5 // pred_region
        // Predicated region
        $region29: #{_lambda_.3} parent=27 // pred_check
          %p446 = pneg %p63
        $region30: #{_lambda_.3} parent=27 // pred_check_branch
          %448 = sbr.rel (%p446) target = $region32
        $region31: #{_lambda_.3} parent=27 // pred_region
          %p449 = scmp.lt.s32.totalorder %s22, 1
          %s450 = scalar_select %p449, %s22, 1
          %s451 = smul.addr %s450, 16
          %s452 = smul.addr %s451, 4
          %s453 = scalar_lea.vmem %s1, %s452
        $region32: #{_lambda_.3} parent=27 // pred_fallthru
          _
        // Predicated region
        $region33: #{_lambda_.3} parent=27 // pred_check
          %p454 = pneg %p89
        $region34: #{_lambda_.3} parent=27 // pred_check_branch
          %456 = sbr.rel (%p454) target = $region36
        $region35: #{_lambda_.3} parent=27 // pred_region
          %p457 = scmp.lt.s32.totalorder %s22, 1
          %s458 = scalar_select %p457, %s22, 1
          %s459 = smul.addr %s458, 2
          %s460 = scalar_lea.vmem %s2, %s459
        $region36: #{_lambda_.3} parent=27 // pred_fallthru
          _
        // Predicated region
        $region37: #{_lambda_.3} parent=27 // pred_check
          %p461 = pneg %p115
        $region38: #{_lambda_.3} parent=27 // pred_check_branch
          %463 = sbr.rel (%p461) target = $region40
        $region39: #{_lambda_.3} parent=27 // pred_region
          %p464 = scmp.lt.s32.totalorder %s22, 1
          %s465 = scalar_select %p464, %s22, 1
          %s466 = smul.addr %s465, 8
          %s467 = smul.addr %s466, 4
          %s468 = scalar_lea.vmem %s3, %s467
        $region40: #{_lambda_.3} parent=27 // pred_fallthru
          _
        // Predicated region
        $region41: #{_lambda_.3} parent=27 // pred_check
          %p469 = pneg %p141
        $region42: #{_lambda_.3} parent=27 // pred_check_branch
          %471 = sbr.rel (%p469) target = $region44
        $region43: #{_lambda_.3} parent=27 // pred_region
          %p472 = scmp.lt.s32.totalorder %s22, 1
          %s473 = scalar_select %p472, %s22, 1
          %s474 = scalar_lea.vmem %s4, %s473
        $region44: #{_lambda_.3} parent=27 // pred_fallthru
          _
        // Predicated region
        $region45: #{_lambda_.3} parent=27 // pred_check
          %p475 = pneg %p167
        $region46: #{_lambda_.3} parent=27 // pred_check_branch
          %477 = sbr.rel (%p475) target = $region48
        $region47: #{_lambda_.3} parent=27 // pred_region
          %p478 = scmp.lt.s32.totalorder %s22, 1
          %s479 = scalar_select %p478, %s22, 1
          %s480 = scalar_lea.vmem %s5, %s479
        $region48: #{_lambda_.3} parent=27 // pred_fallthru
          _
        // Predicated region
        $region49: #{_lambda_.3} parent=27 // pred_check
          %p481 = pneg %p193
        $region50: #{_lambda_.3} parent=27 // pred_check_branch
          %483 = sbr.rel (%p481) target = $region52
        $region51: #{_lambda_.3} parent=27 // pred_region
          %p484 = scmp.lt.s32.totalorder %s22, 1
          %s485 = scalar_select %p484, %s22, 1
          %s486 = scalar_lea.vmem %s6, %s485
        $region52: #{_lambda_.3} parent=27 // pred_fallthru
          _
        // Predicated region
        $region53: #{_lambda_.3} parent=27 // pred_check
          %p487 = pneg %p219
        $region54: #{_lambda_.3} parent=27 // pred_check_branch
          %489 = sbr.rel (%p487) target = $region56
        $region55: #{_lambda_.3} parent=27 // pred_region
          %p490 = scmp.lt.s32.totalorder %s22, 1
          %s491 = scalar_select %p490, %s22, 1
          %s492 = smul.addr %s491, 16
          %s493 = smul.addr %s492, 4
          %s494 = scalar_lea.vmem %s7, %s493
        $region56: #{_lambda_.3} parent=27 // pred_fallthru
          _
        // Predicated region
        $region57: #{_lambda_.3} parent=27 // pred_check
          %p495 = pneg %p245
        $region58: #{_lambda_.3} parent=27 // pred_check_branch
          %497 = sbr.rel (%p495) target = $region60
        $region59: #{_lambda_.3} parent=27 // pred_region
          %p498 = scmp.lt.s32.totalorder %s22, 1
          %s499 = scalar_select %p498, %s22, 1
          %s500 = smul.addr %s499, 2
          %s501 = scalar_lea.vmem %s8, %s500
        $region60: #{_lambda_.3} parent=27 // pred_fallthru
          _
        // Predicated region
        $region61: #{_lambda_.3} parent=27 // pred_check
          %p502 = pneg %p271
        $region62: #{_lambda_.3} parent=27 // pred_check_branch
          %504 = sbr.rel (%p502) target = $region64
        $region63: #{_lambda_.3} parent=27 // pred_region
          %p505 = scmp.lt.s32.totalorder %s22, 1
          %s506 = scalar_select %p505, %s22, 1
          %s507 = smul.addr %s506, 32
          %s508 = smul.addr %s507, 4
          %s509 = scalar_lea.vmem %s9, %s508
        $region64: #{_lambda_.3} parent=27 // pred_fallthru
          _
        // Predicated region
        $region65: #{_lambda_.3} parent=27 // pred_check
          %p510 = pneg %p297
        $region66: #{_lambda_.3} parent=27 // pred_check_branch
          %512 = sbr.rel (%p510) target = $region68
        $region67: #{_lambda_.3} parent=27 // pred_region
          %p513 = scmp.lt.s32.totalorder %s22, 1
          %s514 = scalar_select %p513, %s22, 1
          %s515 = scalar_lea.vmem %s10, %s514
        $region68: #{_lambda_.3} parent=27 // pred_fallthru
          _
        // Predicated region
        $region69: #{_lambda_.3} parent=27 // pred_check
          %p516 = pneg %p323
        $region70: #{_lambda_.3} parent=27 // pred_check_branch
          %518 = sbr.rel (%p516) target = $region72
        $region71: #{_lambda_.3} parent=27 // pred_region
          %p519 = scmp.lt.s32.totalorder %s22, 1
          %s520 = scalar_select %p519, %s22, 1
          %s521 = scalar_lea.vmem %s11, %s520
        $region72: #{_lambda_.3} parent=27 // pred_fallthru
          _
        // Predicated region
        $region73: #{_lambda_.3} parent=27 // pred_check
          %p522 = pneg %p349
        $region74: #{_lambda_.3} parent=27 // pred_check_branch
          %524 = sbr.rel (%p522) target = $region76
        $region75: #{_lambda_.3} parent=27 // pred_region
          %p525 = scmp.lt.s32.totalorder %s22, 1
          %s526 = scalar_select %p525, %s22, 1
          %s527 = scalar_lea.vmem %s12, %s526
        $region76: #{_lambda_.3} parent=27 // pred_fallthru
          _
      $region28: #{_lambda_.3} parent=5 // pred_fallthru
        _
      %p528 = scmp.le.s32.totalorder 1, %s22
      %p529 = scmp.lt.s32.totalorder %s22, 3
      %p530 = pnand %p528, %p529
      %p531 = pneg %p530
      // Predicated region
      $region77: #{_lambda_.3} parent=5 // pred_check
        _
      $region78: #{_lambda_.3} parent=5 // pred_check_branch
        %533 = sbr.rel (%p530) target = $region80
      $region79: #{_lambda_.3} parent=5 // pred_region
        %s534 = ssub.s32 %s22, 1
        %p535 = pneg %p43
        %p536 = pneg %p40
        %p537 = scmp.lt.s32.totalorder %s27, 1
        %s538 = scalar_select %p537, %s27, 1
        %s539 = smul.addr %s538, 16
        %s540 = smul.addr %s539, 4
        %s541 = scalar_lea.vmem %s1, %s540
        %p542 = pneg %p69
        %p543 = pneg %p66
        %p544 = scmp.lt.s32.totalorder %s27, 1
        %s545 = scalar_select %p544, %s27, 1
        %s546 = smul.addr %s545, 2
        %s547 = scalar_lea.vmem %s2, %s546
        %p548 = pneg %p95
        %p549 = pneg %p92
        %p550 = scmp.lt.s32.totalorder %s27, 1
        %s551 = scalar_select %p550, %s27, 1
        %s552 = smul.addr %s551, 8
        %s553 = smul.addr %s552, 4
        %s554 = scalar_lea.vmem %s3, %s553
        %p555 = pneg %p121
        %p556 = pneg %p118
        %p557 = scmp.lt.s32.totalorder %s27, 1
        %s558 = scalar_select %p557, %s27, 1
        %s559 = scalar_lea.vmem %s4, %s558
        %p560 = pneg %p147
        %p561 = pneg %p144
        %p562 = scmp.lt.s32.totalorder %s27, 1
        %s563 = scalar_select %p562, %s27, 1
        %s564 = scalar_lea.vmem %s5, %s563
        %p565 = pneg %p173
        %p566 = pneg %p170
        %p567 = scmp.lt.s32.totalorder %s27, 1
        %s568 = scalar_select %p567, %s27, 1
        %s569 = scalar_lea.vmem %s6, %s568
        %p570 = pneg %p199
        %p571 = pneg %p196
        %p572 = scmp.lt.s32.totalorder %s27, 1
        %s573 = scalar_select %p572, %s27, 1
        %s574 = smul.addr %s573, 16
        %s575 = smul.addr %s574, 4
        %s576 = scalar_lea.vmem %s7, %s575
        %p577 = pneg %p225
        %p578 = pneg %p222
        %p579 = scmp.lt.s32.totalorder %s27, 1
        %s580 = scalar_select %p579, %s27, 1
        %s581 = smul.addr %s580, 2
        %s582 = scalar_lea.vmem %s8, %s581
        %p583 = pneg %p251
        %p584 = pneg %p248
        %p585 = scmp.lt.s32.totalorder %s27, 1
        %s586 = scalar_select %p585, %s27, 1
        %s587 = smul.addr %s586, 32
        %s588 = smul.addr %s587, 4
        %s589 = scalar_lea.vmem %s9, %s588
        %p590 = pneg %p277
        %p591 = pneg %p274
        %p592 = scmp.lt.s32.totalorder %s27, 1
        %s593 = scalar_select %p592, %s27, 1
        %s594 = scalar_lea.vmem %s10, %s593
        %p595 = pneg %p303
        %p596 = pneg %p300
        %p597 = scmp.lt.s32.totalorder %s27, 1
        %s598 = scalar_select %p597, %s27, 1
        %s599 = scalar_lea.vmem %s11, %s598
        %p600 = pneg %p329
        %p601 = pneg %p326
        %p602 = scmp.lt.s32.totalorder %s27, 1
        %s603 = scalar_select %p602, %s27, 1
        %s604 = scalar_lea.vmem %s12, %s603
        %p605 = pneg %p355
        %p606 = pneg %p352
        %p607 = pneg %p376
        %p608 = pneg %p373
        %p609 = pneg %p397
        %p610 = pneg %p394
        %p611 = pneg %p418
        %p612 = pneg %p415
        %p613 = scmp.lt.s32.totalorder %s27, 1
        %s614 = scalar_select %p613, %s27, 1
        %s615 = smul.addr %s614, 16
        %s616 = smul.addr %s615, 4
        %s617 = scalar_lea.vmem %s1, %s616
        %p618 = scmp.lt.s32.totalorder %s27, 1
        %s619 = scalar_select %p618, %s27, 1
        %s620 = smul.addr %s619, 2
        %s621 = scalar_lea.vmem %s2, %s620
        %p622 = scmp.lt.s32.totalorder %s27, 1
        %s623 = scalar_select %p622, %s27, 1
        %s624 = smul.addr %s623, 8
        %s625 = smul.addr %s624, 4
        %s626 = scalar_lea.vmem %s3, %s625
        %p627 = scmp.lt.s32.totalorder %s27, 1
        %s628 = scalar_select %p627, %s27, 1
        %s629 = scalar_lea.vmem %s4, %s628
        %p630 = scmp.lt.s32.totalorder %s27, 1
        %s631 = scalar_select %p630, %s27, 1
        %s632 = scalar_lea.vmem %s5, %s631
        %p633 = scmp.lt.s32.totalorder %s27, 1
        %s634 = scalar_select %p633, %s27, 1
        %s635 = scalar_lea.vmem %s6, %s634
        %p636 = scmp.lt.s32.totalorder %s27, 1
        %s637 = scalar_select %p636, %s27, 1
        %s638 = smul.addr %s637, 16
        %s639 = smul.addr %s638, 4
        %s640 = scalar_lea.vmem %s7, %s639
        %p641 = scmp.lt.s32.totalorder %s27, 1
        %s642 = scalar_select %p641, %s27, 1
        %s643 = smul.addr %s642, 2
        %s644 = scalar_lea.vmem %s8, %s643
        %p645 = scmp.lt.s32.totalorder %s27, 1
        %s646 = scalar_select %p645, %s27, 1
        %s647 = smul.addr %s646, 32
        %s648 = smul.addr %s647, 4
        %s649 = scalar_lea.vmem %s9, %s648
        %p650 = scmp.lt.s32.totalorder %s27, 1
        %s651 = scalar_select %p650, %s27, 1
        %s652 = scalar_lea.vmem %s10, %s651
        %p653 = scmp.lt.s32.totalorder %s27, 1
        %s654 = scalar_select %p653, %s27, 1
        %s655 = scalar_lea.vmem %s11, %s654
        %p656 = scmp.lt.s32.totalorder %s27, 1
        %s657 = scalar_select %p656, %s27, 1
        %s658 = scalar_lea.vmem %s12, %s657
        %p660 = scmp.eq.s32.totalorder %s27, 0
        // Predicated region
        $region81: #{_lambda_.3} parent=79 // pred_check
          %p661 = pneg %p660
        $region82: #{_lambda_.3} parent=79 // pred_check_branch
          %663 = sbr.rel (%p661) target = $region84
        $region83: #{_lambda_.3} parent=79 // pred_region
          %v664 = vld [vmem:[%s0] sm:$0xff]
          %v665 = vld [vmem:[%s0 + $0x8] sm:$0x1]
          %v666 = vld [vmem:[%s0 + $0x10] sm:$0xff]
          %v667 = vld [vmem:[%s0 + $0x18] sm:$0x1]
          %vm668 = vcmask 523264
          %669 = vst.msk [vmem:[#allocation2] sm:$0xff] %vm668, %v664
          %vm670 = vcmask 516096
          %671 = vst.msk [vmem:[#allocation2 + $0x8] sm:$0x1] %vm670, %v665
          %672 = vst.msk [vmem:[#allocation2 + $0x10] sm:$0xff] %vm668, %v666
          %673 = vst.msk [vmem:[#allocation2 + $0x18] sm:$0x1] %vm670, %v667
        $region84: #{_lambda_.3} parent=79 // pred_fallthru
          _
        %v674 = vld [vmem:[%s617] sm:$0xff]
        %v675 = vld [vmem:[%s617 + $0x8] sm:$0xff]
        %v676 = vld [vmem:[%s617 + $0x10] sm:$0xff]
        %v677 = vld [vmem:[%s617 + $0x18] sm:$0xff]
        %v678 = vld [vmem:[%s617 + $0x20] sm:$0xff]
        %v679 = vld [vmem:[%s617 + $0x28] sm:$0xff]
        %v680 = vld [vmem:[%s617 + $0x30] sm:$0xff]
        %v681 = vld [vmem:[%s617 + $0x38] sm:$0xff]
        %v682 = vld [vmem:[%s621] sm:$0x3]
        %v683 = vld [vmem:[%s626] sm:$0xf]
        %v684 = vld [vmem:[%s626 + $0x4] sm:$0xf]
        %v685 = vld [vmem:[%s626 + $0x8] sm:$0xf]
        %v686 = vld [vmem:[%s626 + $0xc] sm:$0xf]
        %v687 = vld [vmem:[%s626 + $0x10] sm:$0xf]
        %v688 = vld [vmem:[%s626 + $0x14] sm:$0xf]
        %v689 = vld [vmem:[%s626 + $0x18] sm:$0xf]
        %v690 = vld [vmem:[%s626 + $0x1c] sm:$0xf]
        %v691 = vld [vmem:[%s629] sm:$0x1]
        %v692 = vld [vmem:[%s632] sm:$0x1]
        %v693 = vld [vmem:[%s635] sm:$0x1]
        %v694 = vld [vmem:[%s640] sm:$0xff]
        %v695 = vld [vmem:[%s640 + $0x8] sm:$0xff]
        %v696 = vld [vmem:[%s640 + $0x10] sm:$0xff]
        %v697 = vld [vmem:[%s640 + $0x18] sm:$0xff]
        %v698 = vld [vmem:[%s640 + $0x20] sm:$0xff]
        %v699 = vld [vmem:[%s640 + $0x28] sm:$0xff]
        %v700 = vld [vmem:[%s640 + $0x30] sm:$0xff]
        %v701 = vld [vmem:[%s640 + $0x38] sm:$0xff]
        %v702 = vld [vmem:[%s644] sm:$0x3]
        %v703 = vld [vmem:[%s649] sm:$0xf]
        %v704 = vld [vmem:[%s649 + $0x4] sm:$0xf]
        %v705 = vld [vmem:[%s649 + $0x8] sm:$0xf]
        %v706 = vld [vmem:[%s649 + $0xc] sm:$0xf]
        %v707 = vld [vmem:[%s649 + $0x10] sm:$0xf]
        %v708 = vld [vmem:[%s649 + $0x14] sm:$0xf]
        %v709 = vld [vmem:[%s649 + $0x18] sm:$0xf]
        %v710 = vld [vmem:[%s649 + $0x1c] sm:$0xf]
        %v711 = vld [vmem:[%s649 + $0x20] sm:$0xf]
        %v712 = vld [vmem:[%s649 + $0x24] sm:$0xf]
        %v713 = vld [vmem:[%s649 + $0x28] sm:$0xf]
        %v714 = vld [vmem:[%s649 + $0x2c] sm:$0xf]
        %v715 = vld [vmem:[%s649 + $0x30] sm:$0xf]
        %v716 = vld [vmem:[%s649 + $0x34] sm:$0xf]
        %v717 = vld [vmem:[%s649 + $0x38] sm:$0xf]
        %v718 = vld [vmem:[%s649 + $0x3c] sm:$0xf]
        %v719 = vld [vmem:[%s649 + $0x40] sm:$0xf]
        %v720 = vld [vmem:[%s649 + $0x44] sm:$0xf]
        %v721 = vld [vmem:[%s649 + $0x48] sm:$0xf]
        %v722 = vld [vmem:[%s649 + $0x4c] sm:$0xf]
        %v723 = vld [vmem:[%s649 + $0x50] sm:$0xf]
        %v724 = vld [vmem:[%s649 + $0x54] sm:$0xf]
        %v725 = vld [vmem:[%s649 + $0x58] sm:$0xf]
        %v726 = vld [vmem:[%s649 + $0x5c] sm:$0xf]
        %v727 = vld [vmem:[%s649 + $0x60] sm:$0xf]
        %v728 = vld [vmem:[%s649 + $0x64] sm:$0xf]
        %v729 = vld [vmem:[%s649 + $0x68] sm:$0xf]
        %v730 = vld [vmem:[%s649 + $0x6c] sm:$0xf]
        %v731 = vld [vmem:[%s649 + $0x70] sm:$0xf]
        %v732 = vld [vmem:[%s649 + $0x74] sm:$0xf]
        %v733 = vld [vmem:[%s649 + $0x78] sm:$0xf]
        %v734 = vld [vmem:[%s649 + $0x7c] sm:$0xf]
        %v735 = vld [vmem:[%s652] sm:$0x1]
        %v736 = vld [vmem:[%s655] sm:$0x1]
        %v737 = vld [vmem:[%s658] sm:$0x1]
        %v738 = vld [vmem:[#allocation2] sm:$0xff]
        %v739 = vld [vmem:[#allocation2 + $0x8] sm:$0x1]
        %v740 = vpack.c.bf16 %v739, %v738
        %v742 = vperm.slane %v682, 0
        %v743 = vperm.slane %v682, 1
        %v754 = vunpack.c.l.b16 %v674
        %v755 = vunpack.c.h.b16 %v674
        %v756 = vunpack.c.l.b16 %v675
        %v757 = vunpack.c.h.b16 %v675
        %v758 = vunpack.c.l.b16 %v676
        %v759 = vunpack.c.h.b16 %v676
        %v760 = vunpack.c.l.b16 %v677
        %v761 = vunpack.c.h.b16 %v677
        %v762 = vunpack.c.l.b16 %v678
        %v763 = vunpack.c.h.b16 %v678
        %v764 = vunpack.c.l.b16 %v679
        %v765 = vunpack.c.h.b16 %v679
        %v766 = vunpack.c.l.b16 %v680
        %v767 = vunpack.c.h.b16 %v680
        %v768 = vunpack.c.l.b16 %v681
        %v769 = vunpack.c.h.b16 %v681
        %v770 = vpack.c.b16 %v756, %v754
        %v771 = vpack.c.b16 %v757, %v755
        %v772 = vpack.c.b16 %v760, %v758
        %v773 = vpack.c.b16 %v761, %v759
        %v774 = vpack.c.b16 %v764, %v762
        %v775 = vpack.c.b16 %v765, %v763
        %v776 = vpack.c.b16 %v768, %v766
        %v777 = vpack.c.b16 %v769, %v767
        %vm786 = vcmask 523264
        %v788 = vsel %vm786, %v740, 0
        %790 = vmatpush.bf16.msra.mxu0 0
        %791 = vmatpush.bf16.msra.mxu0 0
        %792 = vmatpush.bf16.msra.mxu0 0
        %793 = vmatpush.bf16.msra.mxu0 0
        %794 = vmatpush.bf16.msra.mxu0 %v776
        %795 = vmatpush.bf16.msra.mxu0 %v774
        %796 = vmatpush.bf16.msra.mxu0 %v772
        %797 = vmatpush.bf16.msra.mxu0 %v770
        %798 = vmatmul.bf16.gmra.mxu0 %v788
        %v799 = vpop.f32.mrf.mxu0
        %v800 = vadd.f32 %v742, %v799
        %v801 = vpop.f32.mrf.mxu0
        %v802 = vadd.f32 %v742, %v801
        %803 = vdwg.mxu0
        %804 = vmatpush.bf16.msra.mxu0 0
        %805 = vmatpush.bf16.msra.mxu0 0
        %806 = vmatpush.bf16.msra.mxu0 0
        %807 = vmatpush.bf16.msra.mxu0 0
        %808 = vmatpush.bf16.msra.mxu0 %v777
        %809 = vmatpush.bf16.msra.mxu0 %v775
        %810 = vmatpush.bf16.msra.mxu0 %v773
        %811 = vmatpush.bf16.msra.mxu0 %v771
        %812 = vmatmul.bf16.gmra.mxu0 %v788
        %v813 = vpop.f32.mrf.mxu0
        %v814 = vadd.f32 %v743, %v813
        %v815 = vpop.f32.mrf.mxu0
        %v816 = vadd.f32 %v743, %v815
        %817 = vdwg.mxu0
        %820 = vrot.lane.b32.xlu0 %v800, 64
        %v821 = vpop.permute.xlu0 %820
        %822 = vrot.lane.b32.xlu0 %v802, 64
        %v823 = vpop.permute.xlu0 %822
        %vm824 = vcmask 130048
        %v825 = vsel %vm824, %v800, 0
        %v827 = vsel %vm824, %v802, 0
        %v829 = vsel %vm824, %v821, 0
        %v831 = vsel %vm824, %v823, 0
        %833 = vmatpush.xpose.msra.mxu0 0.0
        %834 = vmatpush.xpose.msra.mxu0 0.0
        %835 = vmatpush.xpose.msra.mxu0 0.0
        %836 = vmatpush.xpose.msra.mxu0 0.0
        %837 = vmatpush.xpose.msra.mxu0 0.0
        %838 = vmatpush.xpose.msra.mxu0 0.0
        %839 = vmatpush.xpose.msra.mxu0 0.0
        %840 = vmatpush.xpose.msra.mxu0 0.0
        %841 = vmatpush.xpose.msra.mxu0 0.0
        %842 = vmatpush.xpose.msra.mxu0 0.0
        %843 = vmatpush.xpose.msra.mxu0 0.0
        %844 = vmatpush.xpose.msra.mxu0 0.0
        %845 = vmatpush.xpose.msra.mxu0 0.0
        %846 = vmatpush.xpose.msra.mxu0 0.0
        %847 = vmatpush.xpose.msra.mxu0 %v831
        %848 = vmatpush.xpose.msra.mxu0 %v829
        %849 = vmatmul.f32.gmra.mxu0 %v825
        %v850 = vpop.f32.mrf.mxu0
        %v851 = vadd.f32 0.0, %v850
        %852 = vmatmul.f32.gmra.mxu0 %v827
        %v853 = vpop.f32.mrf.mxu0
        %v854 = vadd.f32 0.0, %v853
        %855 = vdwg.mxu0
        %v856 = vmul.f32 %v851, 0.25
        %v857 = vmul.f32 %v854, 0.25
        %vm858 = vcmask 72704
        %v859 = vsel %vm858, %v856, -inf
        %860 = vmax.xlane.f32.xlu0 %v859
        %v861 = vpop.xlane.xlu0 %860
        %vm862 = vcmask 65536
        %v863 = vsel %vm862, %v857, -inf
        %864 = vmax.xlane.f32.xlu0 %v863
        %v865 = vpop.xlane.xlu0 %864
        %v866 = vsub.f32 %v856, %v861
        %v867 = vsub.f32 %v857, %v865
        %v868 = vmul.f32 %v866, 1.442695
        %v869 = vpow.pop %v868
        %v870 = vmul.f32 %v867, 1.442695
        %v871 = vpow.pop %v870
        %v872 = vsel %vm858, %v869, 0.0
        %873 = vadd.xlane.f32.xlu0 %v872
        %v874 = vpop.xlane.xlu0 %873
        %v875 = vsel %vm862, %v871, 0.0
        %876 = vadd.xlane.f32.xlu0 %v875
        %v877 = vpop.xlane.xlu0 %876
        %v878 = vrcp.pop %v874
        %v879 = vrcp.pop %v877
        %v880 = vmul.f32 %v869, %v878
        %v881 = vmul.f32 %v871, %v879
        %v883 = vsel %vm858, %v880, 0
        %v886 = vsel %vm858, %v881, 0
        %vm888 = vcmask 1040384
        %v890 = vsel %vm888, %v816, 0
        %892 = vmatpush.msra.mxu0 0.0
        %893 = vmatpush.msra.mxu0 0.0
        %894 = vmatpush.msra.mxu0 0.0
        %895 = vmatpush.msra.mxu0 0.0
        %896 = vmatpush.msra.mxu0 0.0
        %897 = vmatpush.msra.mxu0 0.0
        %898 = vmatpush.msra.mxu0 0.0
        %899 = vmatpush.msra.mxu0 0.0
        %900 = vmatpush.msra.mxu0 0.0
        %901 = vmatpush.msra.mxu0 0.0
        %902 = vmatpush.msra.mxu0 0.0
        %903 = vmatpush.msra.mxu0 0.0
        %904 = vmatpush.msra.mxu0 0.0
        %905 = vmatpush.msra.mxu0 0.0
        %906 = vmatpush.msra.mxu0 %v890
        %907 = vmatpush.msra.mxu0 %v814
        %908 = vmatmul.f32.gmra.mxu0 %v883
        %v909 = vpop.f32.mrf.mxu0
        %v910 = vadd.f32 0.0, %v909
        %911 = vmatmul.f32.gmra.mxu0 %v886
        %v912 = vpop.f32.mrf.mxu0
        %v913 = vadd.f32 0.0, %v912
        %914 = vdwg.mxu0
        %v915 = vpack.c.bf16 %v913, %v910
        %916 = vrot.lane.b32.xlu0 %v800, 112
        %v917 = vpop.permute.xlu0 %916
        %918 = vrot.lane.b32.xlu0 %v802, 112
        %v919 = vpop.permute.xlu0 %918
        %920 = vrot.lane.b32.xlu0 %v800, 48
        %v921 = vpop.permute.xlu0 %920
        %922 = vrot.lane.b32.xlu0 %v802, 48
        %v923 = vpop.permute.xlu0 %922
        %v924 = vsel %vm824, %v917, 0
        %v926 = vsel %vm824, %v919, 0
        %v928 = vsel %vm824, %v921, 0
        %v930 = vsel %vm824, %v923, 0
        %932 = vmatpush.xpose.msra.mxu0 0.0
        %933 = vmatpush.xpose.msra.mxu0 0.0
        %934 = vmatpush.xpose.msra.mxu0 0.0
        %935 = vmatpush.xpose.msra.mxu0 0.0
        %936 = vmatpush.xpose.msra.mxu0 0.0
        %937 = vmatpush.xpose.msra.mxu0 0.0
        %938 = vmatpush.xpose.msra.mxu0 0.0
        %939 = vmatpush.xpose.msra.mxu0 0.0
        %940 = vmatpush.xpose.msra.mxu0 0.0
        %941 = vmatpush.xpose.msra.mxu0 0.0
        %942 = vmatpush.xpose.msra.mxu0 0.0
        %943 = vmatpush.xpose.msra.mxu0 0.0
        %944 = vmatpush.xpose.msra.mxu0 0.0
        %945 = vmatpush.xpose.msra.mxu0 0.0
        %946 = vmatpush.xpose.msra.mxu0 %v930
        %947 = vmatpush.xpose.msra.mxu0 %v928
        %948 = vmatmul.f32.gmra.mxu0 %v924
        %v949 = vpop.f32.mrf.mxu0
        %v950 = vadd.f32 0.0, %v949
        %951 = vmatmul.f32.gmra.mxu0 %v926
        %v952 = vpop.f32.mrf.mxu0
        %v953 = vadd.f32 0.0, %v952
        %954 = vdwg.mxu0
        %v955 = vmul.f32 %v950, 0.25
        %v956 = vmul.f32 %v953, 0.25
        %v957 = vsel %vm858, %v955, -inf
        %958 = vmax.xlane.f32.xlu0 %v957
        %v959 = vpop.xlane.xlu0 %958
        %v960 = vsel %vm862, %v956, -inf
        %961 = vmax.xlane.f32.xlu0 %v960
        %v962 = vpop.xlane.xlu0 %961
        %v963 = vsub.f32 %v955, %v959
        %v964 = vsub.f32 %v956, %v962
        %v965 = vmul.f32 %v963, 1.442695
        %v966 = vpow.pop %v965
        %v967 = vmul.f32 %v964, 1.442695
        %v968 = vpow.pop %v967
        %v969 = vsel %vm858, %v966, 0.0
        %970 = vadd.xlane.f32.xlu0 %v969
        %v971 = vpop.xlane.xlu0 %970
        %v972 = vsel %vm862, %v968, 0.0
        %973 = vadd.xlane.f32.xlu0 %v972
        %v974 = vpop.xlane.xlu0 %973
        %v975 = vrcp.pop %v971
        %v976 = vrcp.pop %v974
        %v977 = vmul.f32 %v966, %v975
        %v978 = vmul.f32 %v968, %v976
        %980 = vrot.lane.b32.xlu0 %v814, 112
        %v981 = vpop.permute.xlu0 %980
        %982 = vrot.lane.b32.xlu0 %v816, 112
        %v983 = vpop.permute.xlu0 %982
        %v986 = vsel %vm858, %v977, 0
        %v989 = vsel %vm858, %v978, 0
        %v991 = vsel %vm888, %v983, 0
        %993 = vmatpush.msra.mxu0 0.0
        %994 = vmatpush.msra.mxu0 0.0
        %995 = vmatpush.msra.mxu0 0.0
        %996 = vmatpush.msra.mxu0 0.0
        %997 = vmatpush.msra.mxu0 0.0
        %998 = vmatpush.msra.mxu0 0.0
        %999 = vmatpush.msra.mxu0 0.0
        %1000 = vmatpush.msra.mxu0 0.0
        %1001 = vmatpush.msra.mxu0 0.0
        %1002 = vmatpush.msra.mxu0 0.0
        %1003 = vmatpush.msra.mxu0 0.0
        %1004 = vmatpush.msra.mxu0 0.0
        %1005 = vmatpush.msra.mxu0 0.0
        %1006 = vmatpush.msra.mxu0 0.0
        %1007 = vmatpush.msra.mxu0 %v991
        %1008 = vmatpush.msra.mxu0 %v981
        %1009 = vmatmul.f32.gmra.mxu0 %v986
        %v1010 = vpop.f32.mrf.mxu0
        %v1011 = vadd.f32 0.0, %v1010
        %1012 = vmatmul.f32.gmra.mxu0 %v989
        %v1013 = vpop.f32.mrf.mxu0
        %v1014 = vadd.f32 0.0, %v1013
        %1015 = vdwg.mxu0
        %v1016 = vpack.c.bf16 %v1014, %v1011
        %v1019 = vunpack.c.l.b16 %v685
        %v1020 = vunpack.c.l.b16 %v686
        %v1021 = vpack.c.b16 %v1020, %v1019
        %v1024 = vsel %vm824, %v1016, 0
        %1026 = vmatpush.bf16.msra.mxu0 0
        %1027 = vmatpush.bf16.msra.mxu0 0
        %1028 = vmatpush.bf16.msra.mxu0 0
        %1029 = vmatpush.bf16.msra.mxu0 0
        %1030 = vmatpush.bf16.msra.mxu0 0
        %1031 = vmatpush.bf16.msra.mxu0 0
        %1032 = vmatpush.bf16.msra.mxu0 0
        %1033 = vmatpush.bf16.msra.mxu0 %v1021
        %1034 = vmatmul.bf16.gmra.mxu0 %v1024
        %v1035 = vpop.f32.mrf.mxu0
        %v1036 = vadd.f32 0.0, %v1035
        %v1037 = vpop.f32.mrf.mxu0
        %v1038 = vadd.f32 0.0, %v1037
        %1039 = vdwg.mxu0
        %v1042 = vunpack.c.l.b16 %v683
        %v1043 = vunpack.c.l.b16 %v684
        %v1044 = vpack.c.b16 %v1043, %v1042
        %v1047 = vsel %vm824, %v915, 0
        %1049 = vmatpush.bf16.msra.mxu0 0
        %1050 = vmatpush.bf16.msra.mxu0 0
        %1051 = vmatpush.bf16.msra.mxu0 0
        %1052 = vmatpush.bf16.msra.mxu0 0
        %1053 = vmatpush.bf16.msra.mxu0 0
        %1054 = vmatpush.bf16.msra.mxu0 0
        %1055 = vmatpush.bf16.msra.mxu0 0
        %1056 = vmatpush.bf16.msra.mxu0 %v1044
        %1057 = vmatmul.bf16.gmra.mxu0 %v1047
        %v1058 = vpop.f32.mrf.mxu0
        %v1059 = vadd.f32 %v1036, %v1058
        %v1060 = vpop.f32.mrf.mxu0
        %v1061 = vadd.f32 %v1038, %v1060
        %1062 = vdwg.mxu0
        %1063 = vrot.lane.b32.xlu0 %v800, 96
        %v1064 = vpop.permute.xlu0 %1063
        %1065 = vrot.lane.b32.xlu0 %v802, 96
        %v1066 = vpop.permute.xlu0 %1065
        %1067 = vrot.lane.b32.xlu0 %v800, 32
        %v1068 = vpop.permute.xlu0 %1067
        %1069 = vrot.lane.b32.xlu0 %v802, 32
        %v1070 = vpop.permute.xlu0 %1069
        %v1071 = vsel %vm824, %v1064, 0
        %v1073 = vsel %vm824, %v1066, 0
        %v1075 = vsel %vm824, %v1068, 0
        %v1077 = vsel %vm824, %v1070, 0
        %1079 = vmatpush.xpose.msra.mxu0 0.0
        %1080 = vmatpush.xpose.msra.mxu0 0.0
        %1081 = vmatpush.xpose.msra.mxu0 0.0
        %1082 = vmatpush.xpose.msra.mxu0 0.0
        %1083 = vmatpush.xpose.msra.mxu0 0.0
        %1084 = vmatpush.xpose.msra.mxu0 0.0
        %1085 = vmatpush.xpose.msra.mxu0 0.0
        %1086 = vmatpush.xpose.msra.mxu0 0.0
        %1087 = vmatpush.xpose.msra.mxu0 0.0
        %1088 = vmatpush.xpose.msra.mxu0 0.0
        %1089 = vmatpush.xpose.msra.mxu0 0.0
        %1090 = vmatpush.xpose.msra.mxu0 0.0
        %1091 = vmatpush.xpose.msra.mxu0 0.0
        %1092 = vmatpush.xpose.msra.mxu0 0.0
        %1093 = vmatpush.xpose.msra.mxu0 %v1077
        %1094 = vmatpush.xpose.msra.mxu0 %v1075
        %1095 = vmatmul.f32.gmra.mxu0 %v1071
        %v1096 = vpop.f32.mrf.mxu0
        %v1097 = vadd.f32 0.0, %v1096
        %1098 = vmatmul.f32.gmra.mxu0 %v1073
        %v1099 = vpop.f32.mrf.mxu0
        %v1100 = vadd.f32 0.0, %v1099
        %1101 = vdwg.mxu0
        %v1102 = vmul.f32 %v1097, 0.25
        %v1103 = vmul.f32 %v1100, 0.25
        %v1104 = vsel %vm858, %v1102, -inf
        %1105 = vmax.xlane.f32.xlu0 %v1104
        %v1106 = vpop.xlane.xlu0 %1105
        %v1107 = vsel %vm862, %v1103, -inf
        %1108 = vmax.xlane.f32.xlu0 %v1107
        %v1109 = vpop.xlane.xlu0 %1108
        %v1110 = vsub.f32 %v1102, %v1106
        %v1111 = vsub.f32 %v1103, %v1109
        %v1112 = vmul.f32 %v1110, 1.442695
        %v1113 = vpow.pop %v1112
        %v1114 = vmul.f32 %v1111, 1.442695
        %v1115 = vpow.pop %v1114
        %v1116 = vsel %vm858, %v1113, 0.0
        %1117 = vadd.xlane.f32.xlu0 %v1116
        %v1118 = vpop.xlane.xlu0 %1117
        %v1119 = vsel %vm862, %v1115, 0.0
        %1120 = vadd.xlane.f32.xlu0 %v1119
        %v1121 = vpop.xlane.xlu0 %1120
        %v1122 = vrcp.pop %v1118
        %v1123 = vrcp.pop %v1121
        %v1124 = vmul.f32 %v1113, %v1122
        %v1125 = vmul.f32 %v1115, %v1123
        %1126 = vrot.lane.b32.xlu0 %v814, 96
        %v1127 = vpop.permute.xlu0 %1126
        %1128 = vrot.lane.b32.xlu0 %v816, 96
        %v1129 = vpop.permute.xlu0 %1128
        %v1132 = vsel %vm858, %v1124, 0
        %v1135 = vsel %vm858, %v1125, 0
        %v1137 = vsel %vm888, %v1129, 0
        %1139 = vmatpush.msra.mxu0 0.0
        %1140 = vmatpush.msra.mxu0 0.0
        %1141 = vmatpush.msra.mxu0 0.0
        %1142 = vmatpush.msra.mxu0 0.0
        %1143 = vmatpush.msra.mxu0 0.0
        %1144 = vmatpush.msra.mxu0 0.0
        %1145 = vmatpush.msra.mxu0 0.0
        %1146 = vmatpush.msra.mxu0 0.0
        %1147 = vmatpush.msra.mxu0 0.0
        %1148 = vmatpush.msra.mxu0 0.0
        %1149 = vmatpush.msra.mxu0 0.0
        %1150 = vmatpush.msra.mxu0 0.0
        %1151 = vmatpush.msra.mxu0 0.0
        %1152 = vmatpush.msra.mxu0 0.0
        %1153 = vmatpush.msra.mxu0 %v1137
        %1154 = vmatpush.msra.mxu0 %v1127
        %1155 = vmatmul.f32.gmra.mxu0 %v1132
        %v1156 = vpop.f32.mrf.mxu0
        %v1157 = vadd.f32 0.0, %v1156
        %1158 = vmatmul.f32.gmra.mxu0 %v1135
        %v1159 = vpop.f32.mrf.mxu0
        %v1160 = vadd.f32 0.0, %v1159
        %1161 = vdwg.mxu0
        %v1162 = vpack.c.bf16 %v1160, %v1157
        %v1165 = vunpack.c.l.b16 %v687
        %v1166 = vunpack.c.l.b16 %v688
        %v1167 = vpack.c.b16 %v1166, %v1165
        %v1170 = vsel %vm824, %v1162, 0
        %1172 = vmatpush.bf16.msra.mxu0 0
        %1173 = vmatpush.bf16.msra.mxu0 0
        %1174 = vmatpush.bf16.msra.mxu0 0
        %1175 = vmatpush.bf16.msra.mxu0 0
        %1176 = vmatpush.bf16.msra.mxu0 0
        %1177 = vmatpush.bf16.msra.mxu0 0
        %1178 = vmatpush.bf16.msra.mxu0 0
        %1179 = vmatpush.bf16.msra.mxu0 %v1167
        %1180 = vmatmul.bf16.gmra.mxu0 %v1170
        %v1181 = vpop.f32.mrf.mxu0
        %v1182 = vadd.f32 0.0, %v1181
        %v1183 = vpop.f32.mrf.mxu0
        %v1184 = vadd.f32 0.0, %v1183
        %1185 = vdwg.mxu0
        %v1186 = vadd.f32 %v1059, %v1182
        %v1187 = vadd.f32 %v1061, %v1184
        %1188 = vrot.lane.b32.xlu0 %v800, 80
        %v1189 = vpop.permute.xlu0 %1188
        %1190 = vrot.lane.b32.xlu0 %v802, 80
        %v1191 = vpop.permute.xlu0 %1190
        %1192 = vrot.lane.b32.xlu0 %v800, 16
        %v1193 = vpop.permute.xlu0 %1192
        %1194 = vrot.lane.b32.xlu0 %v802, 16
        %v1195 = vpop.permute.xlu0 %1194
        %v1196 = vsel %vm824, %v1189, 0
        %v1198 = vsel %vm824, %v1191, 0
        %v1200 = vsel %vm824, %v1193, 0
        %v1202 = vsel %vm824, %v1195, 0
        %1204 = vmatpush.xpose.msra.mxu0 0.0
        %1205 = vmatpush.xpose.msra.mxu0 0.0
        %1206 = vmatpush.xpose.msra.mxu0 0.0
        %1207 = vmatpush.xpose.msra.mxu0 0.0
        %1208 = vmatpush.xpose.msra.mxu0 0.0
        %1209 = vmatpush.xpose.msra.mxu0 0.0
        %1210 = vmatpush.xpose.msra.mxu0 0.0
        %1211 = vmatpush.xpose.msra.mxu0 0.0
        %1212 = vmatpush.xpose.msra.mxu0 0.0
        %1213 = vmatpush.xpose.msra.mxu0 0.0
        %1214 = vmatpush.xpose.msra.mxu0 0.0
        %1215 = vmatpush.xpose.msra.mxu0 0.0
        %1216 = vmatpush.xpose.msra.mxu0 0.0
        %1217 = vmatpush.xpose.msra.mxu0 0.0
        %1218 = vmatpush.xpose.msra.mxu0 %v1202
        %1219 = vmatpush.xpose.msra.mxu0 %v1200
        %1220 = vmatmul.f32.gmra.mxu0 %v1196
        %v1221 = vpop.f32.mrf.mxu0
        %v1222 = vadd.f32 0.0, %v1221
        %1223 = vmatmul.f32.gmra.mxu0 %v1198
        %v1224 = vpop.f32.mrf.mxu0
        %v1225 = vadd.f32 0.0, %v1224
        %1226 = vdwg.mxu0
        %v1227 = vmul.f32 %v1222, 0.25
        %v1228 = vmul.f32 %v1225, 0.25
        %v1229 = vsel %vm858, %v1227, -inf
        %1230 = vmax.xlane.f32.xlu0 %v1229
        %v1231 = vpop.xlane.xlu0 %1230
        %v1232 = vsel %vm862, %v1228, -inf
        %1233 = vmax.xlane.f32.xlu0 %v1232
        %v1234 = vpop.xlane.xlu0 %1233
        %v1235 = vsub.f32 %v1227, %v1231
        %v1236 = vsub.f32 %v1228, %v1234
        %v1237 = vmul.f32 %v1235, 1.442695
        %v1238 = vpow.pop %v1237
        %v1239 = vmul.f32 %v1236, 1.442695
        %v1240 = vpow.pop %v1239
        %v1241 = vsel %vm858, %v1238, 0.0
        %1242 = vadd.xlane.f32.xlu0 %v1241
        %v1243 = vpop.xlane.xlu0 %1242
        %v1244 = vsel %vm862, %v1240, 0.0
        %1245 = vadd.xlane.f32.xlu0 %v1244
        %v1246 = vpop.xlane.xlu0 %1245
        %v1247 = vrcp.pop %v1243
        %v1248 = vrcp.pop %v1246
        %v1249 = vmul.f32 %v1238, %v1247
        %v1250 = vmul.f32 %v1240, %v1248
        %1251 = vrot.lane.b32.xlu0 %v814, 80
        %v1252 = vpop.permute.xlu0 %1251
        %1253 = vrot.lane.b32.xlu0 %v816, 80
        %v1254 = vpop.permute.xlu0 %1253
        %v1257 = vsel %vm858, %v1249, 0
        %v1260 = vsel %vm858, %v1250, 0
        %v1262 = vsel %vm888, %v1254, 0
        %1264 = vmatpush.msra.mxu0 0.0
        %1265 = vmatpush.msra.mxu0 0.0
        %1266 = vmatpush.msra.mxu0 0.0
        %1267 = vmatpush.msra.mxu0 0.0
        %1268 = vmatpush.msra.mxu0 0.0
        %1269 = vmatpush.msra.mxu0 0.0
        %1270 = vmatpush.msra.mxu0 0.0
        %1271 = vmatpush.msra.mxu0 0.0
        %1272 = vmatpush.msra.mxu0 0.0
        %1273 = vmatpush.msra.mxu0 0.0
        %1274 = vmatpush.msra.mxu0 0.0
        %1275 = vmatpush.msra.mxu0 0.0
        %1276 = vmatpush.msra.mxu0 0.0
        %1277 = vmatpush.msra.mxu0 0.0
        %1278 = vmatpush.msra.mxu0 %v1262
        %1279 = vmatpush.msra.mxu0 %v1252
        %1280 = vmatmul.f32.gmra.mxu0 %v1257
        %v1281 = vpop.f32.mrf.mxu0
        %v1282 = vadd.f32 0.0, %v1281
        %1283 = vmatmul.f32.gmra.mxu0 %v1260
        %v1284 = vpop.f32.mrf.mxu0
        %v1285 = vadd.f32 0.0, %v1284
        %1286 = vdwg.mxu0
        %v1287 = vpack.c.bf16 %v1285, %v1282
        %v1290 = vunpack.c.l.b16 %v689
        %v1291 = vunpack.c.l.b16 %v690
        %v1292 = vpack.c.b16 %v1291, %v1290
        %v1295 = vsel %vm824, %v1287, 0
        %1297 = vmatpush.bf16.msra.mxu0 0
        %1298 = vmatpush.bf16.msra.mxu0 0
        %1299 = vmatpush.bf16.msra.mxu0 0
        %1300 = vmatpush.bf16.msra.mxu0 0
        %1301 = vmatpush.bf16.msra.mxu0 0
        %1302 = vmatpush.bf16.msra.mxu0 0
        %1303 = vmatpush.bf16.msra.mxu0 0
        %1304 = vmatpush.bf16.msra.mxu0 %v1292
        %1305 = vmatmul.bf16.gmra.mxu0 %v1295
        %v1306 = vpop.f32.mrf.mxu0
        %v1307 = vadd.f32 0.0, %v1306
        %v1308 = vpop.f32.mrf.mxu0
        %v1309 = vadd.f32 0.0, %v1308
        %1310 = vdwg.mxu0
        %v1311 = vadd.f32 %v1186, %v1307
        %v1312 = vadd.f32 %v1187, %v1309
        %v1314 = vperm.slane %v691, 0
        %v1316 = vadd.f32 %v1311, %v1314
        %v1317 = vadd.f32 %v1312, %v1314
        %v1318 = vadd.f32 %v1316, %v738
        %v1319 = vadd.f32 %v1317, %v739
        %v1320 = vsel %vm786, %v1318, 0.0
        %1321 = vadd.xlane.f32.xlu0 %v1320
        %v1322 = vpop.xlane.xlu0 %1321
        %vm1323 = vcmask 516096
        %v1324 = vsel %vm1323, %v1319, 0.0
        %1325 = vadd.xlane.f32.xlu0 %v1324
        %v1326 = vpop.xlane.xlu0 %1325
        %v1327 = vrcp.pop 64.0
        %v1328 = vmul.f32 64.0, %v1327
        %v1329 = vsub.f32 1.0, %v1328
        %v1330 = vmul.f32 %v1327, %v1329
        %v1331 = vadd.f32 %v1327, %v1330
        %vm1332 = vweird.f32 %v1327
        %v1333 = vsel %vm1332, %v1327, %v1331
        %v1334 = vmul.f32 %v1322, %v1333
        %v1335 = vmul.f32 %v1326, %v1333
        %v1336 = vsub.f32 %v1318, %v1334
        %v1337 = vsub.f32 %v1319, %v1335
        %v1338 = vmul.f32 %v1336, %v1336
        %v1339 = vmul.f32 %v1337, %v1337
        %v1340 = vsel %vm786, %v1338, 0.0
        %1341 = vadd.xlane.f32.xlu0 %v1340
        %v1342 = vpop.xlane.xlu0 %1341
        %v1343 = vsel %vm1323, %v1339, 0.0
        %1344 = vadd.xlane.f32.xlu0 %v1343
        %v1345 = vpop.xlane.xlu0 %1344
        %v1346 = vmul.f32 %v1342, %v1333
        %v1347 = vmul.f32 %v1345, %v1333
        %v1348 = vadd.f32 %v1346, 1e-12
        %v1349 = vadd.f32 %v1347, 1e-12
        %v1350 = vrsqrt.pop %v1348
        %v1351 = vmul.f32 %v1350, %v1348
        %v1352 = vmul.f32 %v1351, %v1350
        %v1353 = vmul.f32 0.5, %v1352
        %v1354 = vsub.f32 1.5, %v1353
        %v1355 = vmul.f32 %v1350, %v1354
        %vm1356 = vweird.f32 %v1348
        %vm1357 = vweird.f32 %v1350
        %vm1358 = vmor %vm1356, %vm1357
        %v1359 = vsel %vm1358, %v1350, %v1355
        %v1360 = vrsqrt.pop %v1349
        %v1361 = vmul.f32 %v1360, %v1349
        %v1362 = vmul.f32 %v1361, %v1360
        %v1363 = vmul.f32 0.5, %v1362
        %v1364 = vsub.f32 1.5, %v1363
        %v1365 = vmul.f32 %v1360, %v1364
        %vm1366 = vweird.f32 %v1349
        %vm1367 = vweird.f32 %v1360
        %vm1368 = vmor %vm1366, %vm1367
        %v1369 = vsel %vm1368, %v1360, %v1365
        %v1370 = vmul.f32 %v1336, %v1359
        %v1371 = vmul.f32 %v1337, %v1369
        %v1373 = vperm.slane %v692, 0
        %v1375 = vmul.f32 %v1370, %v1373
        %v1376 = vmul.f32 %v1371, %v1373
        %v1378 = vperm.slane %v693, 0
        %v1380 = vadd.f32 %v1375, %v1378
        %v1381 = vadd.f32 %v1376, %v1378
        %v1382 = vpack.c.bf16 %v1381, %v1380
        %v1384 = vperm.slane %v702, 0
        %v1385 = vperm.slane %v702, 1
        %v1396 = vunpack.c.l.b16 %v694
        %v1397 = vunpack.c.h.b16 %v694
        %v1398 = vunpack.c.l.b16 %v695
        %v1399 = vunpack.c.h.b16 %v695
        %v1400 = vunpack.c.l.b16 %v696
        %v1401 = vunpack.c.h.b16 %v696
        %v1402 = vunpack.c.l.b16 %v697
        %v1403 = vunpack.c.h.b16 %v697
        %v1404 = vunpack.c.l.b16 %v698
        %v1405 = vunpack.c.h.b16 %v698
        %v1406 = vunpack.c.l.b16 %v699
        %v1407 = vunpack.c.h.b16 %v699
        %v1408 = vunpack.c.l.b16 %v700
        %v1409 = vunpack.c.h.b16 %v700
        %v1410 = vunpack.c.l.b16 %v701
        %v1411 = vunpack.c.h.b16 %v701
        %v1412 = vpack.c.b16 %v1398, %v1396
        %v1413 = vpack.c.b16 %v1399, %v1397
        %v1414 = vpack.c.b16 %v1402, %v1400
        %v1415 = vpack.c.b16 %v1403, %v1401
        %v1416 = vpack.c.b16 %v1406, %v1404
        %v1417 = vpack.c.b16 %v1407, %v1405
        %v1418 = vpack.c.b16 %v1410, %v1408
        %v1419 = vpack.c.b16 %v1411, %v1409
        %v1429 = vsel %vm786, %v1382, 0
        %1431 = vmatpush.bf16.msra.mxu0 0
        %1432 = vmatpush.bf16.msra.mxu0 0
        %1433 = vmatpush.bf16.msra.mxu0 0
        %1434 = vmatpush.bf16.msra.mxu0 0
        %1435 = vmatpush.bf16.msra.mxu0 %v1418
        %1436 = vmatpush.bf16.msra.mxu0 %v1416
        %1437 = vmatpush.bf16.msra.mxu0 %v1414
        %1438 = vmatpush.bf16.msra.mxu0 %v1412
        %1439 = vmatmul.bf16.gmra.mxu0 %v1429
        %v1440 = vpop.f32.mrf.mxu0
        %v1441 = vadd.f32 %v1384, %v1440
        %v1442 = vpop.f32.mrf.mxu0
        %v1443 = vadd.f32 %v1384, %v1442
        %1444 = vdwg.mxu0
        %1445 = vmatpush.bf16.msra.mxu0 0
        %1446 = vmatpush.bf16.msra.mxu0 0
        %1447 = vmatpush.bf16.msra.mxu0 0
        %1448 = vmatpush.bf16.msra.mxu0 0
        %1449 = vmatpush.bf16.msra.mxu0 %v1419
        %1450 = vmatpush.bf16.msra.mxu0 %v1417
        %1451 = vmatpush.bf16.msra.mxu0 %v1415
        %1452 = vmatpush.bf16.msra.mxu0 %v1413
        %1453 = vmatmul.bf16.gmra.mxu0 %v1429
        %v1454 = vpop.f32.mrf.mxu0
        %v1455 = vadd.f32 %v1385, %v1454
        %v1456 = vpop.f32.mrf.mxu0
        %v1457 = vadd.f32 %v1385, %v1456
        %1458 = vdwg.mxu0
        %v1459 = vmul.f32 %v1441, 0.5
        %v1460 = vmul.f32 %v1455, 0.5
        %v1461 = vmul.f32 %v1443, 0.5
        %v1462 = vmul.f32 %v1457, 0.5
        %v1463 = vmul.f32 %v1441, 0.70710677
        %v1464 = vmul.f32 %v1455, 0.70710677
        %v1465 = vmul.f32 %v1443, 0.70710677
        %v1466 = vmul.f32 %v1457, 0.70710677
        %v1467 = vand.u32 2147483647, %v1463
        %v1468 = vand.u32 2147483647, %v1464
        %v1469 = vand.u32 2147483647, %v1465
        %v1470 = vand.u32 2147483647, %v1466
        %v1471 = vmul.f32 %v1467, 0.3275911
        %v1472 = vmul.f32 %v1468, 0.3275911
        %v1473 = vmul.f32 %v1469, 0.3275911
        %v1474 = vmul.f32 %v1470, 0.3275911
        %v1475 = vadd.f32 %v1471, 1.0
        %v1476 = vadd.f32 %v1472, 1.0
        %v1477 = vadd.f32 %v1473, 1.0
        %v1478 = vadd.f32 %v1474, 1.0
        %v1479 = vrcp.pop %v1475
        %v1480 = vmul.f32 %v1475, %v1479
        %v1481 = vsub.f32 1.0, %v1480
        %v1482 = vmul.f32 %v1479, %v1481
        %v1483 = vadd.f32 %v1479, %v1482
        %vm1484 = vweird.f32 %v1475
        %vm1485 = vweird.f32 %v1479
        %vm1486 = vmor %vm1484, %vm1485
        %v1487 = vsel %vm1486, %v1479, %v1483
        %v1488 = vand.u32 2147483647, %v1475
        %vm1489 = vcmp.eq.f32.partialorder %v1488, 8.507059e+37
        %v1490 = vand.u32 %v1475, 2147483648
        %v1491 = vor.u32 1.1754944e-38, %v1490
        %v1492 = vsel %vm1489, %v1491, %v1487
        %v1493 = vmul.f32 1.0, %v1492
        %v1494 = vrcp.pop %v1476
        %v1495 = vmul.f32 %v1476, %v1494
        %v1496 = vsub.f32 1.0, %v1495
        %v1497 = vmul.f32 %v1494, %v1496
        %v1498 = vadd.f32 %v1494, %v1497
        %vm1499 = vweird.f32 %v1476
        %vm1500 = vweird.f32 %v1494
        %vm1501 = vmor %vm1499, %vm1500
        %v1502 = vsel %vm1501, %v1494, %v1498
        %v1503 = vand.u32 2147483647, %v1476
        %vm1504 = vcmp.eq.f32.partialorder %v1503, 8.507059e+37
        %v1505 = vand.u32 %v1476, 2147483648
        %v1506 = vor.u32 1.1754944e-38, %v1505
        %v1507 = vsel %vm1504, %v1506, %v1502
        %v1508 = vmul.f32 1.0, %v1507
        %v1509 = vrcp.pop %v1477
        %v1510 = vmul.f32 %v1477, %v1509
        %v1511 = vsub.f32 1.0, %v1510
        %v1512 = vmul.f32 %v1509, %v1511
        %v1513 = vadd.f32 %v1509, %v1512
        %vm1514 = vweird.f32 %v1477
        %vm1515 = vweird.f32 %v1509
        %vm1516 = vmor %vm1514, %vm1515
        %v1517 = vsel %vm1516, %v1509, %v1513
        %v1518 = vand.u32 2147483647, %v1477
        %vm1519 = vcmp.eq.f32.partialorder %v1518, 8.507059e+37
        %v1520 = vand.u32 %v1477, 2147483648
        %v1521 = vor.u32 1.1754944e-38, %v1520
        %v1522 = vsel %vm1519, %v1521, %v1517
        %v1523 = vmul.f32 1.0, %v1522
        %v1524 = vrcp.pop %v1478
        %v1525 = vmul.f32 %v1478, %v1524
        %v1526 = vsub.f32 1.0, %v1525
        %v1527 = vmul.f32 %v1524, %v1526
        %v1528 = vadd.f32 %v1524, %v1527
        %vm1529 = vweird.f32 %v1478
        %vm1530 = vweird.f32 %v1524
        %vm1531 = vmor %vm1529, %vm1530
        %v1532 = vsel %vm1531, %v1524, %v1528
        %v1533 = vand.u32 2147483647, %v1478
        %vm1534 = vcmp.eq.f32.partialorder %v1533, 8.507059e+37
        %v1535 = vand.u32 %v1478, 2147483648
        %v1536 = vor.u32 1.1754944e-38, %v1535
        %v1537 = vsel %vm1534, %v1536, %v1532
        %v1538 = vmul.f32 1.0, %v1537
        %v1539 = vmul.f32 %v1493, 1.0614054
        %v1540 = vmul.f32 %v1508, 1.0614054
        %v1541 = vmul.f32 %v1523, 1.0614054
        %v1542 = vmul.f32 %v1538, 1.0614054
        %v1543 = vadd.f32 %v1539, -1.4531521
        %v1544 = vadd.f32 %v1540, -1.4531521
        %v1545 = vadd.f32 %v1541, -1.4531521
        %v1546 = vadd.f32 %v1542, -1.4531521
        %v1547 = vmul.f32 %v1493, %v1543
        %v1548 = vmul.f32 %v1508, %v1544
        %v1549 = vmul.f32 %v1523, %v1545
        %v1550 = vmul.f32 %v1538, %v1546
        %v1551 = vadd.f32 %v1547, 1.4214138
        %v1552 = vadd.f32 %v1548, 1.4214138
        %v1553 = vadd.f32 %v1549, 1.4214138
        %v1554 = vadd.f32 %v1550, 1.4214138
        %v1555 = vmul.f32 %v1493, %v1551
        %v1556 = vmul.f32 %v1508, %v1552
        %v1557 = vmul.f32 %v1523, %v1553
        %v1558 = vmul.f32 %v1538, %v1554
        %v1559 = vadd.f32 %v1555, -0.28449672
        %v1560 = vadd.f32 %v1556, -0.28449672
        %v1561 = vadd.f32 %v1557, -0.28449672
        %v1562 = vadd.f32 %v1558, -0.28449672
        %v1563 = vmul.f32 %v1493, %v1559
        %v1564 = vmul.f32 %v1508, %v1560
        %v1565 = vmul.f32 %v1523, %v1561
        %v1566 = vmul.f32 %v1538, %v1562
        %v1567 = vadd.f32 %v1563, 0.2548296
        %v1568 = vadd.f32 %v1564, 0.2548296
        %v1569 = vadd.f32 %v1565, 0.2548296
        %v1570 = vadd.f32 %v1566, 0.2548296
        %v1571 = vmul.f32 %v1493, %v1567
        %v1572 = vmul.f32 %v1508, %v1568
        %v1573 = vmul.f32 %v1523, %v1569
        %v1574 = vmul.f32 %v1538, %v1570
        %v1575 = vsub.f32 0.0, %v1463
        %v1576 = vsub.f32 0.0, %v1464
        %v1577 = vsub.f32 0.0, %v1465
        %v1578 = vsub.f32 0.0, %v1466
        %v1579 = vmul.f32 %v1575, %v1463
        %v1580 = vmul.f32 %v1576, %v1464
        %v1581 = vmul.f32 %v1577, %v1465
        %v1582 = vmul.f32 %v1578, %v1466
        %v1583 = vmul.f32 %v1579, 1.442695
        %v1584 = vpow.pop %v1583
        %v1585 = vmul.f32 %v1580, 1.442695
        %v1586 = vpow.pop %v1585
        %v1587 = vmul.f32 %v1581, 1.442695
        %v1588 = vpow.pop %v1587
        %v1589 = vmul.f32 %v1582, 1.442695
        %v1590 = vpow.pop %v1589
        %v1591 = vmul.f32 %v1571, %v1584
        %v1592 = vmul.f32 %v1572, %v1586
        %v1593 = vmul.f32 %v1573, %v1588
        %v1594 = vmul.f32 %v1574, %v1590
        %v1595 = vsub.f32 1.0, %v1591
        %v1596 = vsub.f32 1.0, %v1592
        %v1597 = vsub.f32 1.0, %v1593
        %v1598 = vsub.f32 1.0, %v1594
        %vm1599 = vcmp.ge.f32.partialorder %v1463, 0.0
        %vm1600 = vcmp.ge.f32.partialorder %v1464, 0.0
        %vm1601 = vcmp.ge.f32.partialorder %v1465, 0.0
        %vm1602 = vcmp.ge.f32.partialorder %v1466, 0.0
        %v1603 = vsub.f32 0.0, %v1595
        %v1604 = vsub.f32 0.0, %v1596
        %v1605 = vsub.f32 0.0, %v1597
        %v1606 = vsub.f32 0.0, %v1598
        %v1607 = vsel %vm1599, %v1595, %v1603
        %v1608 = vsel %vm1600, %v1596, %v1604
        %v1609 = vsel %vm1601, %v1597, %v1605
        %v1610 = vsel %vm1602, %v1598, %v1606
        %v1611 = vadd.f32 %v1607, 1.0
        %v1612 = vadd.f32 %v1608, 1.0
        %v1613 = vadd.f32 %v1609, 1.0
        %v1614 = vadd.f32 %v1610, 1.0
        %v1615 = vmul.f32 %v1459, %v1611
        %v1616 = vmul.f32 %v1460, %v1612
        %v1617 = vmul.f32 %v1461, %v1613
        %v1618 = vmul.f32 %v1462, %v1614
        %v1619 = vpack.c.bf16 %v1617, %v1615
        %v1620 = vpack.c.bf16 %v1618, %v1616
        %v1622 = vperm.slane %v735, 0
        %v1656 = vunpack.c.l.b16 %v703
        %v1657 = vunpack.c.l.b16 %v704
        %v1658 = vunpack.c.l.b16 %v705
        %v1659 = vunpack.c.l.b16 %v706
        %v1660 = vunpack.c.l.b16 %v707
        %v1661 = vunpack.c.l.b16 %v708
        %v1662 = vunpack.c.l.b16 %v709
        %v1663 = vunpack.c.l.b16 %v710
        %v1664 = vunpack.c.l.b16 %v711
        %v1665 = vunpack.c.l.b16 %v712
        %v1666 = vunpack.c.l.b16 %v713
        %v1667 = vunpack.c.l.b16 %v714
        %v1668 = vunpack.c.l.b16 %v715
        %v1669 = vunpack.c.l.b16 %v716
        %v1670 = vunpack.c.l.b16 %v717
        %v1671 = vunpack.c.l.b16 %v718
        %v1672 = vunpack.c.l.b16 %v719
        %v1673 = vunpack.c.l.b16 %v720
        %v1674 = vunpack.c.l.b16 %v721
        %v1675 = vunpack.c.l.b16 %v722
        %v1676 = vunpack.c.l.b16 %v723
        %v1677 = vunpack.c.l.b16 %v724
        %v1678 = vunpack.c.l.b16 %v725
        %v1679 = vunpack.c.l.b16 %v726
        %v1680 = vunpack.c.l.b16 %v727
        %v1681 = vunpack.c.l.b16 %v728
        %v1682 = vunpack.c.l.b16 %v729
        %v1683 = vunpack.c.l.b16 %v730
        %v1684 = vunpack.c.l.b16 %v731
        %v1685 = vunpack.c.l.b16 %v732
        %v1686 = vunpack.c.l.b16 %v733
        %v1687 = vunpack.c.l.b16 %v734
        %v1688 = vpack.c.b16 %v1657, %v1656
        %v1689 = vpack.c.b16 %v1659, %v1658
        %v1690 = vpack.c.b16 %v1661, %v1660
        %v1691 = vpack.c.b16 %v1663, %v1662
        %v1692 = vpack.c.b16 %v1665, %v1664
        %v1693 = vpack.c.b16 %v1667, %v1666
        %v1694 = vpack.c.b16 %v1669, %v1668
        %v1695 = vpack.c.b16 %v1671, %v1670
        %v1696 = vpack.c.b16 %v1673, %v1672
        %v1697 = vpack.c.b16 %v1675, %v1674
        %v1698 = vpack.c.b16 %v1677, %v1676
        %v1699 = vpack.c.b16 %v1679, %v1678
        %v1700 = vpack.c.b16 %v1681, %v1680
        %v1701 = vpack.c.b16 %v1683, %v1682
        %v1702 = vpack.c.b16 %v1685, %v1684
        %v1703 = vpack.c.b16 %v1687, %v1686
        %1720 = vmatpush.bf16.msra.mxu0 %v1695
        %1721 = vmatpush.bf16.msra.mxu0 %v1694
        %1722 = vmatpush.bf16.msra.mxu0 %v1693
        %1723 = vmatpush.bf16.msra.mxu0 %v1692
        %1724 = vmatpush.bf16.msra.mxu0 %v1691
        %1725 = vmatpush.bf16.msra.mxu0 %v1690
        %1726 = vmatpush.bf16.msra.mxu0 %v1689
        %1727 = vmatpush.bf16.msra.mxu0 %v1688
        %1728 = vmatmul.bf16.gmra.mxu0 %v1619
        %v1729 = vpop.f32.mrf.mxu0
        %v1730 = vadd.f32 %v1622, %v1729
        %v1731 = vpop.f32.mrf.mxu0
        %v1732 = vadd.f32 %v1622, %v1731
        %1733 = vdwg.mxu0
        %1734 = vmatpush.bf16.msra.mxu0 %v1703
        %1735 = vmatpush.bf16.msra.mxu0 %v1702
        %1736 = vmatpush.bf16.msra.mxu0 %v1701
        %1737 = vmatpush.bf16.msra.mxu0 %v1700
        %1738 = vmatpush.bf16.msra.mxu0 %v1699
        %1739 = vmatpush.bf16.msra.mxu0 %v1698
        %1740 = vmatpush.bf16.msra.mxu0 %v1697
        %1741 = vmatpush.bf16.msra.mxu0 %v1696
        %1742 = vmatmul.bf16.gmra.mxu0 %v1620
        %v1743 = vpop.f32.mrf.mxu0
        %v1744 = vadd.f32 %v1730, %v1743
        %v1745 = vpop.f32.mrf.mxu0
        %v1746 = vadd.f32 %v1732, %v1745
        %1747 = vdwg.mxu0
        %v1748 = vadd.f32 %v1744, %v1380
        %v1749 = vadd.f32 %v1746, %v1381
        %v1750 = vsel %vm786, %v1748, 0.0
        %1751 = vadd.xlane.f32.xlu0 %v1750
        %v1752 = vpop.xlane.xlu0 %1751
        %v1753 = vsel %vm1323, %v1749, 0.0
        %1754 = vadd.xlane.f32.xlu0 %v1753
        %v1755 = vpop.xlane.xlu0 %1754
        %v1756 = vmul.f32 %v1752, %v1333
        %v1757 = vmul.f32 %v1755, %v1333
        %v1758 = vsub.f32 %v1748, %v1756
        %v1759 = vsub.f32 %v1749, %v1757
        %v1760 = vmul.f32 %v1758, %v1758
        %v1761 = vmul.f32 %v1759, %v1759
        %v1762 = vsel %vm786, %v1760, 0.0
        %1763 = vadd.xlane.f32.xlu0 %v1762
        %v1764 = vpop.xlane.xlu0 %1763
        %v1765 = vsel %vm1323, %v1761, 0.0
        %1766 = vadd.xlane.f32.xlu0 %v1765
        %v1767 = vpop.xlane.xlu0 %1766
        %v1768 = vmul.f32 %v1764, %v1333
        %v1769 = vmul.f32 %v1767, %v1333
        %v1770 = vadd.f32 %v1768, 1e-12
        %v1771 = vadd.f32 %v1769, 1e-12
        %v1772 = vrsqrt.pop %v1770
        %v1773 = vmul.f32 %v1772, %v1770
        %v1774 = vmul.f32 %v1773, %v1772
        %v1775 = vmul.f32 0.5, %v1774
        %v1776 = vsub.f32 1.5, %v1775
        %v1777 = vmul.f32 %v1772, %v1776
        %vm1778 = vweird.f32 %v1770
        %vm1779 = vweird.f32 %v1772
        %vm1780 = vmor %vm1778, %vm1779
        %v1781 = vsel %vm1780, %v1772, %v1777
        %v1782 = vrsqrt.pop %v1771
        %v1783 = vmul.f32 %v1782, %v1771
        %v1784 = vmul.f32 %v1783, %v1782
        %v1785 = vmul.f32 0.5, %v1784
        %v1786 = vsub.f32 1.5, %v1785
        %v1787 = vmul.f32 %v1782, %v1786
        %vm1788 = vweird.f32 %v1771
        %vm1789 = vweird.f32 %v1782
        %vm1790 = vmor %vm1788, %vm1789
        %v1791 = vsel %vm1790, %v1782, %v1787
        %v1792 = vmul.f32 %v1758, %v1781
        %v1793 = vmul.f32 %v1759, %v1791
        %v1795 = vperm.slane %v736, 0
        %v1797 = vmul.f32 %v1792, %v1795
        %v1798 = vmul.f32 %v1793, %v1795
        %v1800 = vperm.slane %v737, 0
        %v1802 = vadd.f32 %v1797, %v1800
        %v1803 = vadd.f32 %v1798, %v1800
        %1804 = vst.msk [vmem:[#allocation2] sm:$0xff] %vm786, %v1802
        %1805 = vst.msk [vmem:[#allocation2 + $0x8] sm:$0x1] %vm1323, %v1803
        %p1806 = scmp.eq.s32.totalorder %s27, 1
        // Predicated region
        $region85: #{_lambda_.3} parent=79 // pred_check
          %p1807 = pneg %p1806
        $region86: #{_lambda_.3} parent=79 // pred_check_branch
          %1809 = sbr.rel (%p1807) target = $region88
        $region87: #{_lambda_.3} parent=79 // pred_region
          %v1810 = vpack.c.bf16 %v1803, %v1803
          %v1811 = vld [vmem:[%s13] sm:$0xf]
          %v1812 = vld [vmem:[%s13 + $0x4] sm:$0xf]
          %v1813 = vld [vmem:[%s13 + $0x8] sm:$0xf]
          %v1814 = vld [vmem:[%s13 + $0xc] sm:$0xf]
          %v1815 = vld [vmem:[%s13 + $0x10] sm:$0xf]
          %v1816 = vld [vmem:[%s13 + $0x14] sm:$0xf]
          %v1817 = vld [vmem:[%s13 + $0x18] sm:$0xf]
          %v1818 = vld [vmem:[%s13 + $0x1c] sm:$0xf]
          %v1819 = vld [vmem:[%s14] sm:$0x1]
          %v1828 = vunpack.c.l.b16 %v1811
          %v1829 = vunpack.c.l.b16 %v1812
          %v1830 = vunpack.c.l.b16 %v1813
          %v1831 = vunpack.c.l.b16 %v1814
          %v1832 = vunpack.c.l.b16 %v1815
          %v1833 = vunpack.c.l.b16 %v1816
          %v1834 = vunpack.c.l.b16 %v1817
          %v1835 = vunpack.c.l.b16 %v1818
          %v1836 = vpack.c.b16 %v1829, %v1828
          %v1837 = vpack.c.b16 %v1831, %v1830
          %v1838 = vpack.c.b16 %v1833, %v1832
          %v1839 = vpack.c.b16 %v1835, %v1834
          %v1845 = vsel %vm786, %v1810, 0
          %1847 = vmatpush.bf16.msra.mxu0 0
          %1848 = vmatpush.bf16.msra.mxu0 0
          %1849 = vmatpush.bf16.msra.mxu0 0
          %1850 = vmatpush.bf16.msra.mxu0 0
          %1851 = vmatpush.bf16.msra.mxu0 %v1839
          %1852 = vmatpush.bf16.msra.mxu0 %v1838
          %1853 = vmatpush.bf16.msra.mxu0 %v1837
          %1854 = vmatpush.bf16.msra.mxu0 %v1836
          %1855 = vmatmul.bf16.gmra.mxu0 %v1845
          %v1856 = vpop.f32.mrf.mxu0
          %v1857 = vadd.f32 %v1819, %v1856
          %v1858 = vpop.f32.mrf.mxu0
          %1859 = vdwg.mxu0
          %vm1860 = vcmask 16384
          %1861 = vst.msk [vmem:[#allocation3] sm:$0x1] %vm1860, %v1857
        $region88: #{_lambda_.3} parent=79 // pred_fallthru
          _
        %s1862 = scalar_lea.vmem [#allocation2], 16
        %v1863 = vld [vmem:[%s1862] sm:$0xff]
        %v1864 = vld [vmem:[%s1862 + $0x8] sm:$0x1]
        %v1865 = vpack.c.bf16 %v1864, %v1863
        %v1867 = vsel %vm786, %v1865, 0
        %1869 = vmatpush.bf16.msra.mxu0 0
        %1870 = vmatpush.bf16.msra.mxu0 0
        %1871 = vmatpush.bf16.msra.mxu0 0
        %1872 = vmatpush.bf16.msra.mxu0 0
        %1873 = vmatpush.bf16.msra.mxu0 %v776
        %1874 = vmatpush.bf16.msra.mxu0 %v774
        %1875 = vmatpush.bf16.msra.mxu0 %v772
        %1876 = vmatpush.bf16.msra.mxu0 %v770
        %1877 = vmatmul.bf16.gmra.mxu0 %v1867
        %v1878 = vpop.f32.mrf.mxu0
        %v1879 = vadd.f32 %v742, %v1878
        %v1880 = vpop.f32.mrf.mxu0
        %v1881 = vadd.f32 %v742, %v1880
        %1882 = vdwg.mxu0
        %1883 = vmatpush.bf16.msra.mxu0 0
        %1884 = vmatpush.bf16.msra.mxu0 0
        %1885 = vmatpush.bf16.msra.mxu0 0
        %1886 = vmatpush.bf16.msra.mxu0 0
        %1887 = vmatpush.bf16.msra.mxu0 %v777
        %1888 = vmatpush.bf16.msra.mxu0 %v775
        %1889 = vmatpush.bf16.msra.mxu0 %v773
        %1890 = vmatpush.bf16.msra.mxu0 %v771
        %1891 = vmatmul.bf16.gmra.mxu0 %v1867
        %v1892 = vpop.f32.mrf.mxu0
        %v1893 = vadd.f32 %v743, %v1892
        %v1894 = vpop.f32.mrf.mxu0
        %v1895 = vadd.f32 %v743, %v1894
        %1896 = vdwg.mxu0
        %1899 = vrot.lane.b32.xlu0 %v1879, 64
        %v1900 = vpop.permute.xlu0 %1899
        %1901 = vrot.lane.b32.xlu0 %v1881, 64
        %v1902 = vpop.permute.xlu0 %1901
        %v1903 = vsel %vm824, %v1879, 0
        %v1905 = vsel %vm824, %v1881, 0
        %v1907 = vsel %vm824, %v1900, 0
        %v1909 = vsel %vm824, %v1902, 0
        %1911 = vmatpush.xpose.msra.mxu0 0.0
        %1912 = vmatpush.xpose.msra.mxu0 0.0
        %1913 = vmatpush.xpose.msra.mxu0 0.0
        %1914 = vmatpush.xpose.msra.mxu0 0.0
        %1915 = vmatpush.xpose.msra.mxu0 0.0
        %1916 = vmatpush.xpose.msra.mxu0 0.0
        %1917 = vmatpush.xpose.msra.mxu0 0.0
        %1918 = vmatpush.xpose.msra.mxu0 0.0
        %1919 = vmatpush.xpose.msra.mxu0 0.0
        %1920 = vmatpush.xpose.msra.mxu0 0.0
        %1921 = vmatpush.xpose.msra.mxu0 0.0
        %1922 = vmatpush.xpose.msra.mxu0 0.0
        %1923 = vmatpush.xpose.msra.mxu0 0.0
        %1924 = vmatpush.xpose.msra.mxu0 0.0
        %1925 = vmatpush.xpose.msra.mxu0 %v1909
        %1926 = vmatpush.xpose.msra.mxu0 %v1907
        %1927 = vmatmul.f32.gmra.mxu0 %v1903
        %v1928 = vpop.f32.mrf.mxu0
        %v1929 = vadd.f32 0.0, %v1928
        %1930 = vmatmul.f32.gmra.mxu0 %v1905
        %v1931 = vpop.f32.mrf.mxu0
        %v1932 = vadd.f32 0.0, %v1931
        %1933 = vdwg.mxu0
        %v1934 = vmul.f32 %v1929, 0.25
        %v1935 = vmul.f32 %v1932, 0.25
        %v1936 = vsel %vm858, %v1934, -inf
        %1937 = vmax.xlane.f32.xlu0 %v1936
        %v1938 = vpop.xlane.xlu0 %1937
        %v1939 = vsel %vm862, %v1935, -inf
        %1940 = vmax.xlane.f32.xlu0 %v1939
        %v1941 = vpop.xlane.xlu0 %1940
        %v1942 = vsub.f32 %v1934, %v1938
        %v1943 = vsub.f32 %v1935, %v1941
        %v1944 = vmul.f32 %v1942, 1.442695
        %v1945 = vpow.pop %v1944
        %v1946 = vmul.f32 %v1943, 1.442695
        %v1947 = vpow.pop %v1946
        %v1948 = vsel %vm858, %v1945, 0.0
        %1949 = vadd.xlane.f32.xlu0 %v1948
        %v1950 = vpop.xlane.xlu0 %1949
        %v1951 = vsel %vm862, %v1947, 0.0
        %1952 = vadd.xlane.f32.xlu0 %v1951
        %v1953 = vpop.xlane.xlu0 %1952
        %v1954 = vrcp.pop %v1950
        %v1955 = vrcp.pop %v1953
        %v1956 = vmul.f32 %v1945, %v1954
        %v1957 = vmul.f32 %v1947, %v1955
        %v1959 = vsel %vm858, %v1956, 0
        %v1962 = vsel %vm858, %v1957, 0
        %v1965 = vsel %vm888, %v1895, 0
        %1967 = vmatpush.msra.mxu0 0.0
        %1968 = vmatpush.msra.mxu0 0.0
        %1969 = vmatpush.msra.mxu0 0.0
        %1970 = vmatpush.msra.mxu0 0.0
        %1971 = vmatpush.msra.mxu0 0.0
        %1972 = vmatpush.msra.mxu0 0.0
        %1973 = vmatpush.msra.mxu0 0.0
        %1974 = vmatpush.msra.mxu0 0.0
        %1975 = vmatpush.msra.mxu0 0.0
        %1976 = vmatpush.msra.mxu0 0.0
        %1977 = vmatpush.msra.mxu0 0.0
        %1978 = vmatpush.msra.mxu0 0.0
        %1979 = vmatpush.msra.mxu0 0.0
        %1980 = vmatpush.msra.mxu0 0.0
        %1981 = vmatpush.msra.mxu0 %v1965
        %1982 = vmatpush.msra.mxu0 %v1893
        %1983 = vmatmul.f32.gmra.mxu0 %v1959
        %v1984 = vpop.f32.mrf.mxu0
        %v1985 = vadd.f32 0.0, %v1984
        %1986 = vmatmul.f32.gmra.mxu0 %v1962
        %v1987 = vpop.f32.mrf.mxu0
        %v1988 = vadd.f32 0.0, %v1987
        %1989 = vdwg.mxu0
        %v1990 = vpack.c.bf16 %v1988, %v1985
        %1991 = vrot.lane.b32.xlu0 %v1879, 112
        %v1992 = vpop.permute.xlu0 %1991
        %1993 = vrot.lane.b32.xlu0 %v1881, 112
        %v1994 = vpop.permute.xlu0 %1993
        %1995 = vrot.lane.b32.xlu0 %v1879, 48
        %v1996 = vpop.permute.xlu0 %1995
        %1997 = vrot.lane.b32.xlu0 %v1881, 48
        %v1998 = vpop.permute.xlu0 %1997
        %v1999 = vsel %vm824, %v1992, 0
        %v2001 = vsel %vm824, %v1994, 0
        %v2003 = vsel %vm824, %v1996, 0
        %v2005 = vsel %vm824, %v1998, 0
        %2007 = vmatpush.xpose.msra.mxu0 0.0
        %2008 = vmatpush.xpose.msra.mxu0 0.0
        %2009 = vmatpush.xpose.msra.mxu0 0.0
        %2010 = vmatpush.xpose.msra.mxu0 0.0
        %2011 = vmatpush.xpose.msra.mxu0 0.0
        %2012 = vmatpush.xpose.msra.mxu0 0.0
        %2013 = vmatpush.xpose.msra.mxu0 0.0
        %2014 = vmatpush.xpose.msra.mxu0 0.0
        %2015 = vmatpush.xpose.msra.mxu0 0.0
        %2016 = vmatpush.xpose.msra.mxu0 0.0
        %2017 = vmatpush.xpose.msra.mxu0 0.0
        %2018 = vmatpush.xpose.msra.mxu0 0.0
        %2019 = vmatpush.xpose.msra.mxu0 0.0
        %2020 = vmatpush.xpose.msra.mxu0 0.0
        %2021 = vmatpush.xpose.msra.mxu0 %v2005
        %2022 = vmatpush.xpose.msra.mxu0 %v2003
        %2023 = vmatmul.f32.gmra.mxu0 %v1999
        %v2024 = vpop.f32.mrf.mxu0
        %v2025 = vadd.f32 0.0, %v2024
        %2026 = vmatmul.f32.gmra.mxu0 %v2001
        %v2027 = vpop.f32.mrf.mxu0
        %v2028 = vadd.f32 0.0, %v2027
        %2029 = vdwg.mxu0
        %v2030 = vmul.f32 %v2025, 0.25
        %v2031 = vmul.f32 %v2028, 0.25
        %v2032 = vsel %vm858, %v2030, -inf
        %2033 = vmax.xlane.f32.xlu0 %v2032
        %v2034 = vpop.xlane.xlu0 %2033
        %v2035 = vsel %vm862, %v2031, -inf
        %2036 = vmax.xlane.f32.xlu0 %v2035
        %v2037 = vpop.xlane.xlu0 %2036
        %v2038 = vsub.f32 %v2030, %v2034
        %v2039 = vsub.f32 %v2031, %v2037
        %v2040 = vmul.f32 %v2038, 1.442695
        %v2041 = vpow.pop %v2040
        %v2042 = vmul.f32 %v2039, 1.442695
        %v2043 = vpow.pop %v2042
        %v2044 = vsel %vm858, %v2041, 0.0
        %2045 = vadd.xlane.f32.xlu0 %v2044
        %v2046 = vpop.xlane.xlu0 %2045
        %v2047 = vsel %vm862, %v2043, 0.0
        %2048 = vadd.xlane.f32.xlu0 %v2047
        %v2049 = vpop.xlane.xlu0 %2048
        %v2050 = vrcp.pop %v2046
        %v2051 = vrcp.pop %v2049
        %v2052 = vmul.f32 %v2041, %v2050
        %v2053 = vmul.f32 %v2043, %v2051
        %2055 = vrot.lane.b32.xlu0 %v1893, 112
        %v2056 = vpop.permute.xlu0 %2055
        %2057 = vrot.lane.b32.xlu0 %v1895, 112
        %v2058 = vpop.permute.xlu0 %2057
        %v2061 = vsel %vm858, %v2052, 0
        %v2064 = vsel %vm858, %v2053, 0
        %v2066 = vsel %vm888, %v2058, 0
        %2068 = vmatpush.msra.mxu0 0.0
        %2069 = vmatpush.msra.mxu0 0.0
        %2070 = vmatpush.msra.mxu0 0.0
        %2071 = vmatpush.msra.mxu0 0.0
        %2072 = vmatpush.msra.mxu0 0.0
        %2073 = vmatpush.msra.mxu0 0.0
        %2074 = vmatpush.msra.mxu0 0.0
        %2075 = vmatpush.msra.mxu0 0.0
        %2076 = vmatpush.msra.mxu0 0.0
        %2077 = vmatpush.msra.mxu0 0.0
        %2078 = vmatpush.msra.mxu0 0.0
        %2079 = vmatpush.msra.mxu0 0.0
        %2080 = vmatpush.msra.mxu0 0.0
        %2081 = vmatpush.msra.mxu0 0.0
        %2082 = vmatpush.msra.mxu0 %v2066
        %2083 = vmatpush.msra.mxu0 %v2056
        %2084 = vmatmul.f32.gmra.mxu0 %v2061
        %v2085 = vpop.f32.mrf.mxu0
        %v2086 = vadd.f32 0.0, %v2085
        %2087 = vmatmul.f32.gmra.mxu0 %v2064
        %v2088 = vpop.f32.mrf.mxu0
        %v2089 = vadd.f32 0.0, %v2088
        %2090 = vdwg.mxu0
        %v2091 = vpack.c.bf16 %v2089, %v2086
        %v2093 = vsel %vm824, %v2091, 0
        %2095 = vmatpush.bf16.msra.mxu0 0
        %2096 = vmatpush.bf16.msra.mxu0 0
        %2097 = vmatpush.bf16.msra.mxu0 0
        %2098 = vmatpush.bf16.msra.mxu0 0
        %2099 = vmatpush.bf16.msra.mxu0 0
        %2100 = vmatpush.bf16.msra.mxu0 0
        %2101 = vmatpush.bf16.msra.mxu0 0
        %2102 = vmatpush.bf16.msra.mxu0 %v1021
        %2103 = vmatmul.bf16.gmra.mxu0 %v2093
        %v2104 = vpop.f32.mrf.mxu0
        %v2105 = vadd.f32 0.0, %v2104
        %v2106 = vpop.f32.mrf.mxu0
        %v2107 = vadd.f32 0.0, %v2106
        %2108 = vdwg.mxu0
        %v2110 = vsel %vm824, %v1990, 0
        %2112 = vmatpush.bf16.msra.mxu0 0
        %2113 = vmatpush.bf16.msra.mxu0 0
        %2114 = vmatpush.bf16.msra.mxu0 0
        %2115 = vmatpush.bf16.msra.mxu0 0
        %2116 = vmatpush.bf16.msra.mxu0 0
        %2117 = vmatpush.bf16.msra.mxu0 0
        %2118 = vmatpush.bf16.msra.mxu0 0
        %2119 = vmatpush.bf16.msra.mxu0 %v1044
        %2120 = vmatmul.bf16.gmra.mxu0 %v2110
        %v2121 = vpop.f32.mrf.mxu0
        %v2122 = vadd.f32 %v2105, %v2121
        %v2123 = vpop.f32.mrf.mxu0
        %v2124 = vadd.f32 %v2107, %v2123
        %2125 = vdwg.mxu0
        %2126 = vrot.lane.b32.xlu0 %v1879, 96
        %v2127 = vpop.permute.xlu0 %2126
        %2128 = vrot.lane.b32.xlu0 %v1881, 96
        %v2129 = vpop.permute.xlu0 %2128
        %2130 = vrot.lane.b32.xlu0 %v1879, 32
        %v2131 = vpop.permute.xlu0 %2130
        %2132 = vrot.lane.b32.xlu0 %v1881, 32
        %v2133 = vpop.permute.xlu0 %2132
        %v2134 = vsel %vm824, %v2127, 0
        %v2136 = vsel %vm824, %v2129, 0
        %v2138 = vsel %vm824, %v2131, 0
        %v2140 = vsel %vm824, %v2133, 0
        %2142 = vmatpush.xpose.msra.mxu0 0.0
        %2143 = vmatpush.xpose.msra.mxu0 0.0
        %2144 = vmatpush.xpose.msra.mxu0 0.0
        %2145 = vmatpush.xpose.msra.mxu0 0.0
        %2146 = vmatpush.xpose.msra.mxu0 0.0
        %2147 = vmatpush.xpose.msra.mxu0 0.0
        %2148 = vmatpush.xpose.msra.mxu0 0.0
        %2149 = vmatpush.xpose.msra.mxu0 0.0
        %2150 = vmatpush.xpose.msra.mxu0 0.0
        %2151 = vmatpush.xpose.msra.mxu0 0.0
        %2152 = vmatpush.xpose.msra.mxu0 0.0
        %2153 = vmatpush.xpose.msra.mxu0 0.0
        %2154 = vmatpush.xpose.msra.mxu0 0.0
        %2155 = vmatpush.xpose.msra.mxu0 0.0
        %2156 = vmatpush.xpose.msra.mxu0 %v2140
        %2157 = vmatpush.xpose.msra.mxu0 %v2138
        %2158 = vmatmul.f32.gmra.mxu0 %v2134
        %v2159 = vpop.f32.mrf.mxu0
        %v2160 = vadd.f32 0.0, %v2159
        %2161 = vmatmul.f32.gmra.mxu0 %v2136
        %v2162 = vpop.f32.mrf.mxu0
        %v2163 = vadd.f32 0.0, %v2162
        %2164 = vdwg.mxu0
        %v2165 = vmul.f32 %v2160, 0.25
        %v2166 = vmul.f32 %v2163, 0.25
        %v2167 = vsel %vm858, %v2165, -inf
        %2168 = vmax.xlane.f32.xlu0 %v2167
        %v2169 = vpop.xlane.xlu0 %2168
        %v2170 = vsel %vm862, %v2166, -inf
        %2171 = vmax.xlane.f32.xlu0 %v2170
        %v2172 = vpop.xlane.xlu0 %2171
        %v2173 = vsub.f32 %v2165, %v2169
        %v2174 = vsub.f32 %v2166, %v2172
        %v2175 = vmul.f32 %v2173, 1.442695
        %v2176 = vpow.pop %v2175
        %v2177 = vmul.f32 %v2174, 1.442695
        %v2178 = vpow.pop %v2177
        %v2179 = vsel %vm858, %v2176, 0.0
        %2180 = vadd.xlane.f32.xlu0 %v2179
        %v2181 = vpop.xlane.xlu0 %2180
        %v2182 = vsel %vm862, %v2178, 0.0
        %2183 = vadd.xlane.f32.xlu0 %v2182
        %v2184 = vpop.xlane.xlu0 %2183
        %v2185 = vrcp.pop %v2181
        %v2186 = vrcp.pop %v2184
        %v2187 = vmul.f32 %v2176, %v2185
        %v2188 = vmul.f32 %v2178, %v2186
        %2189 = vrot.lane.b32.xlu0 %v1893, 96
        %v2190 = vpop.permute.xlu0 %2189
        %2191 = vrot.lane.b32.xlu0 %v1895, 96
        %v2192 = vpop.permute.xlu0 %2191
        %v2195 = vsel %vm858, %v2187, 0
        %v2198 = vsel %vm858, %v2188, 0
        %v2200 = vsel %vm888, %v2192, 0
        %2202 = vmatpush.msra.mxu0 0.0
        %2203 = vmatpush.msra.mxu0 0.0
        %2204 = vmatpush.msra.mxu0 0.0
        %2205 = vmatpush.msra.mxu0 0.0
        %2206 = vmatpush.msra.mxu0 0.0
        %2207 = vmatpush.msra.mxu0 0.0
        %2208 = vmatpush.msra.mxu0 0.0
        %2209 = vmatpush.msra.mxu0 0.0
        %2210 = vmatpush.msra.mxu0 0.0
        %2211 = vmatpush.msra.mxu0 0.0
        %2212 = vmatpush.msra.mxu0 0.0
        %2213 = vmatpush.msra.mxu0 0.0
        %2214 = vmatpush.msra.mxu0 0.0
        %2215 = vmatpush.msra.mxu0 0.0
        %2216 = vmatpush.msra.mxu0 %v2200
        %2217 = vmatpush.msra.mxu0 %v2190
        %2218 = vmatmul.f32.gmra.mxu0 %v2195
        %v2219 = vpop.f32.mrf.mxu0
        %v2220 = vadd.f32 0.0, %v2219
        %2221 = vmatmul.f32.gmra.mxu0 %v2198
        %v2222 = vpop.f32.mrf.mxu0
        %v2223 = vadd.f32 0.0, %v2222
        %2224 = vdwg.mxu0
        %v2225 = vpack.c.bf16 %v2223, %v2220
        %v2227 = vsel %vm824, %v2225, 0
        %2229 = vmatpush.bf16.msra.mxu0 0
        %2230 = vmatpush.bf16.msra.mxu0 0
        %2231 = vmatpush.bf16.msra.mxu0 0
        %2232 = vmatpush.bf16.msra.mxu0 0
        %2233 = vmatpush.bf16.msra.mxu0 0
        %2234 = vmatpush.bf16.msra.mxu0 0
        %2235 = vmatpush.bf16.msra.mxu0 0
        %2236 = vmatpush.bf16.msra.mxu0 %v1167
        %2237 = vmatmul.bf16.gmra.mxu0 %v2227
        %v2238 = vpop.f32.mrf.mxu0
        %v2239 = vadd.f32 0.0, %v2238
        %v2240 = vpop.f32.mrf.mxu0
        %v2241 = vadd.f32 0.0, %v2240
        %2242 = vdwg.mxu0
        %v2243 = vadd.f32 %v2122, %v2239
        %v2244 = vadd.f32 %v2124, %v2241
        %2245 = vrot.lane.b32.xlu0 %v1879, 80
        %v2246 = vpop.permute.xlu0 %2245
        %2247 = vrot.lane.b32.xlu0 %v1881, 80
        %v2248 = vpop.permute.xlu0 %2247
        %2249 = vrot.lane.b32.xlu0 %v1879, 16
        %v2250 = vpop.permute.xlu0 %2249
        %2251 = vrot.lane.b32.xlu0 %v1881, 16
        %v2252 = vpop.permute.xlu0 %2251
        %v2253 = vsel %vm824, %v2246, 0
        %v2255 = vsel %vm824, %v2248, 0
        %v2257 = vsel %vm824, %v2250, 0
        %v2259 = vsel %vm824, %v2252, 0
        %2261 = vmatpush.xpose.msra.mxu0 0.0
        %2262 = vmatpush.xpose.msra.mxu0 0.0
        %2263 = vmatpush.xpose.msra.mxu0 0.0
        %2264 = vmatpush.xpose.msra.mxu0 0.0
        %2265 = vmatpush.xpose.msra.mxu0 0.0
        %2266 = vmatpush.xpose.msra.mxu0 0.0
        %2267 = vmatpush.xpose.msra.mxu0 0.0
        %2268 = vmatpush.xpose.msra.mxu0 0.0
        %2269 = vmatpush.xpose.msra.mxu0 0.0
        %2270 = vmatpush.xpose.msra.mxu0 0.0
        %2271 = vmatpush.xpose.msra.mxu0 0.0
        %2272 = vmatpush.xpose.msra.mxu0 0.0
        %2273 = vmatpush.xpose.msra.mxu0 0.0
        %2274 = vmatpush.xpose.msra.mxu0 0.0
        %2275 = vmatpush.xpose.msra.mxu0 %v2259
        %2276 = vmatpush.xpose.msra.mxu0 %v2257
        %2277 = vmatmul.f32.gmra.mxu0 %v2253
        %v2278 = vpop.f32.mrf.mxu0
        %v2279 = vadd.f32 0.0, %v2278
        %2280 = vmatmul.f32.gmra.mxu0 %v2255
        %v2281 = vpop.f32.mrf.mxu0
        %v2282 = vadd.f32 0.0, %v2281
        %2283 = vdwg.mxu0
        %v2284 = vmul.f32 %v2279, 0.25
        %v2285 = vmul.f32 %v2282, 0.25
        %v2286 = vsel %vm858, %v2284, -inf
        %2287 = vmax.xlane.f32.xlu0 %v2286
        %v2288 = vpop.xlane.xlu0 %2287
        %v2289 = vsel %vm862, %v2285, -inf
        %2290 = vmax.xlane.f32.xlu0 %v2289
        %v2291 = vpop.xlane.xlu0 %2290
        %v2292 = vsub.f32 %v2284, %v2288
        %v2293 = vsub.f32 %v2285, %v2291
        %v2294 = vmul.f32 %v2292, 1.442695
        %v2295 = vpow.pop %v2294
        %v2296 = vmul.f32 %v2293, 1.442695
        %v2297 = vpow.pop %v2296
        %v2298 = vsel %vm858, %v2295, 0.0
        %2299 = vadd.xlane.f32.xlu0 %v2298
        %v2300 = vpop.xlane.xlu0 %2299
        %v2301 = vsel %vm862, %v2297, 0.0
        %2302 = vadd.xlane.f32.xlu0 %v2301
        %v2303 = vpop.xlane.xlu0 %2302
        %v2304 = vrcp.pop %v2300
        %v2305 = vrcp.pop %v2303
        %v2306 = vmul.f32 %v2295, %v2304
        %v2307 = vmul.f32 %v2297, %v2305
        %2308 = vrot.lane.b32.xlu0 %v1893, 80
        %v2309 = vpop.permute.xlu0 %2308
        %2310 = vrot.lane.b32.xlu0 %v1895, 80
        %v2311 = vpop.permute.xlu0 %2310
        %v2314 = vsel %vm858, %v2306, 0
        %v2317 = vsel %vm858, %v2307, 0
        %v2319 = vsel %vm888, %v2311, 0
        %2321 = vmatpush.msra.mxu0 0.0
        %2322 = vmatpush.msra.mxu0 0.0
        %2323 = vmatpush.msra.mxu0 0.0
        %2324 = vmatpush.msra.mxu0 0.0
        %2325 = vmatpush.msra.mxu0 0.0
        %2326 = vmatpush.msra.mxu0 0.0
        %2327 = vmatpush.msra.mxu0 0.0
        %2328 = vmatpush.msra.mxu0 0.0
        %2329 = vmatpush.msra.mxu0 0.0
        %2330 = vmatpush.msra.mxu0 0.0
        %2331 = vmatpush.msra.mxu0 0.0
        %2332 = vmatpush.msra.mxu0 0.0
        %2333 = vmatpush.msra.mxu0 0.0
        %2334 = vmatpush.msra.mxu0 0.0
        %2335 = vmatpush.msra.mxu0 %v2319
        %2336 = vmatpush.msra.mxu0 %v2309
        %2337 = vmatmul.f32.gmra.mxu0 %v2314
        %v2338 = vpop.f32.mrf.mxu0
        %v2339 = vadd.f32 0.0, %v2338
        %2340 = vmatmul.f32.gmra.mxu0 %v2317
        %v2341 = vpop.f32.mrf.mxu0
        %v2342 = vadd.f32 0.0, %v2341
        %2343 = vdwg.mxu0
        %v2344 = vpack.c.bf16 %v2342, %v2339
        %v2346 = vsel %vm824, %v2344, 0
        %2348 = vmatpush.bf16.msra.mxu0 0
        %2349 = vmatpush.bf16.msra.mxu0 0
        %2350 = vmatpush.bf16.msra.mxu0 0
        %2351 = vmatpush.bf16.msra.mxu0 0
        %2352 = vmatpush.bf16.msra.mxu0 0
        %2353 = vmatpush.bf16.msra.mxu0 0
        %2354 = vmatpush.bf16.msra.mxu0 0
        %2355 = vmatpush.bf16.msra.mxu0 %v1292
        %2356 = vmatmul.bf16.gmra.mxu0 %v2346
        %v2357 = vpop.f32.mrf.mxu0
        %v2358 = vadd.f32 0.0, %v2357
        %v2359 = vpop.f32.mrf.mxu0
        %v2360 = vadd.f32 0.0, %v2359
        %2361 = vdwg.mxu0
        %v2362 = vadd.f32 %v2243, %v2358
        %v2363 = vadd.f32 %v2244, %v2360
        %v2364 = vadd.f32 %v2362, %v1314
        %v2365 = vadd.f32 %v2363, %v1314
        %v2366 = vadd.f32 %v2364, %v1863
        %v2367 = vadd.f32 %v2365, %v1864
        %v2368 = vsel %vm786, %v2366, 0.0
        %2369 = vadd.xlane.f32.xlu0 %v2368
        %v2370 = vpop.xlane.xlu0 %2369
        %v2371 = vsel %vm1323, %v2367, 0.0
        %2372 = vadd.xlane.f32.xlu0 %v2371
        %v2373 = vpop.xlane.xlu0 %2372
        %v2374 = vmul.f32 %v2370, %v1333
        %v2375 = vmul.f32 %v2373, %v1333
        %v2376 = vsub.f32 %v2366, %v2374
        %v2377 = vsub.f32 %v2367, %v2375
        %v2378 = vmul.f32 %v2376, %v2376
        %v2379 = vmul.f32 %v2377, %v2377
        %v2380 = vsel %vm786, %v2378, 0.0
        %2381 = vadd.xlane.f32.xlu0 %v2380
        %v2382 = vpop.xlane.xlu0 %2381
        %v2383 = vsel %vm1323, %v2379, 0.0
        %2384 = vadd.xlane.f32.xlu0 %v2383
        %v2385 = vpop.xlane.xlu0 %2384
        %v2386 = vmul.f32 %v2382, %v1333
        %v2387 = vmul.f32 %v2385, %v1333
        %v2388 = vadd.f32 %v2386, 1e-12
        %v2389 = vadd.f32 %v2387, 1e-12
        %v2390 = vrsqrt.pop %v2388
        %v2391 = vmul.f32 %v2390, %v2388
        %v2392 = vmul.f32 %v2391, %v2390
        %v2393 = vmul.f32 0.5, %v2392
        %v2394 = vsub.f32 1.5, %v2393
        %v2395 = vmul.f32 %v2390, %v2394
        %vm2396 = vweird.f32 %v2388
        %vm2397 = vweird.f32 %v2390
        %vm2398 = vmor %vm2396, %vm2397
        %v2399 = vsel %vm2398, %v2390, %v2395
        %v2400 = vrsqrt.pop %v2389
        %v2401 = vmul.f32 %v2400, %v2389
        %v2402 = vmul.f32 %v2401, %v2400
        %v2403 = vmul.f32 0.5, %v2402
        %v2404 = vsub.f32 1.5, %v2403
        %v2405 = vmul.f32 %v2400, %v2404
        %vm2406 = vweird.f32 %v2389
        %vm2407 = vweird.f32 %v2400
        %vm2408 = vmor %vm2406, %vm2407
        %v2409 = vsel %vm2408, %v2400, %v2405
        %v2410 = vmul.f32 %v2376, %v2399
        %v2411 = vmul.f32 %v2377, %v2409
        %v2412 = vmul.f32 %v2410, %v1373
        %v2413 = vmul.f32 %v2411, %v1373
        %v2414 = vadd.f32 %v2412, %v1378
        %v2415 = vadd.f32 %v2413, %v1378
        %v2416 = vpack.c.bf16 %v2415, %v2414
        %v2418 = vsel %vm786, %v2416, 0
        %2420 = vmatpush.bf16.msra.mxu0 0
        %2421 = vmatpush.bf16.msra.mxu0 0
        %2422 = vmatpush.bf16.msra.mxu0 0
        %2423 = vmatpush.bf16.msra.mxu0 0
        %2424 = vmatpush.bf16.msra.mxu0 %v1418
        %2425 = vmatpush.bf16.msra.mxu0 %v1416
        %2426 = vmatpush.bf16.msra.mxu0 %v1414
        %2427 = vmatpush.bf16.msra.mxu0 %v1412
        %2428 = vmatmul.bf16.gmra.mxu0 %v2418
        %v2429 = vpop.f32.mrf.mxu0
        %v2430 = vadd.f32 %v1384, %v2429
        %v2431 = vpop.f32.mrf.mxu0
        %v2432 = vadd.f32 %v1384, %v2431
        %2433 = vdwg.mxu0
        %2434 = vmatpush.bf16.msra.mxu0 0
        %2435 = vmatpush.bf16.msra.mxu0 0
        %2436 = vmatpush.bf16.msra.mxu0 0
        %2437 = vmatpush.bf16.msra.mxu0 0
        %2438 = vmatpush.bf16.msra.mxu0 %v1419
        %2439 = vmatpush.bf16.msra.mxu0 %v1417
        %2440 = vmatpush.bf16.msra.mxu0 %v1415
        %2441 = vmatpush.bf16.msra.mxu0 %v1413
        %2442 = vmatmul.bf16.gmra.mxu0 %v2418
        %v2443 = vpop.f32.mrf.mxu0
        %v2444 = vadd.f32 %v1385, %v2443
        %v2445 = vpop.f32.mrf.mxu0
        %v2446 = vadd.f32 %v1385, %v2445
        %2447 = vdwg.mxu0
        %v2448 = vmul.f32 %v2430, 0.5
        %v2449 = vmul.f32 %v2444, 0.5
        %v2450 = vmul.f32 %v2432, 0.5
        %v2451 = vmul.f32 %v2446, 0.5
        %v2452 = vmul.f32 %v2430, 0.70710677
        %v2453 = vmul.f32 %v2444, 0.70710677
        %v2454 = vmul.f32 %v2432, 0.70710677
        %v2455 = vmul.f32 %v2446, 0.70710677
        %v2456 = vand.u32 2147483647, %v2452
        %v2457 = vand.u32 2147483647, %v2453
        %v2458 = vand.u32 2147483647, %v2454
        %v2459 = vand.u32 2147483647, %v2455
        %v2460 = vmul.f32 %v2456, 0.3275911
        %v2461 = vmul.f32 %v2457, 0.3275911
        %v2462 = vmul.f32 %v2458, 0.3275911
        %v2463 = vmul.f32 %v2459, 0.3275911
        %v2464 = vadd.f32 %v2460, 1.0
        %v2465 = vadd.f32 %v2461, 1.0
        %v2466 = vadd.f32 %v2462, 1.0
        %v2467 = vadd.f32 %v2463, 1.0
        %v2468 = vrcp.pop %v2464
        %v2469 = vmul.f32 %v2464, %v2468
        %v2470 = vsub.f32 1.0, %v2469
        %v2471 = vmul.f32 %v2468, %v2470
        %v2472 = vadd.f32 %v2468, %v2471
        %vm2473 = vweird.f32 %v2464
        %vm2474 = vweird.f32 %v2468
        %vm2475 = vmor %vm2473, %vm2474
        %v2476 = vsel %vm2475, %v2468, %v2472
        %v2477 = vand.u32 2147483647, %v2464
        %vm2478 = vcmp.eq.f32.partialorder %v2477, 8.507059e+37
        %v2479 = vand.u32 %v2464, 2147483648
        %v2480 = vor.u32 1.1754944e-38, %v2479
        %v2481 = vsel %vm2478, %v2480, %v2476
        %v2482 = vmul.f32 1.0, %v2481
        %v2483 = vrcp.pop %v2465
        %v2484 = vmul.f32 %v2465, %v2483
        %v2485 = vsub.f32 1.0, %v2484
        %v2486 = vmul.f32 %v2483, %v2485
        %v2487 = vadd.f32 %v2483, %v2486
        %vm2488 = vweird.f32 %v2465
        %vm2489 = vweird.f32 %v2483
        %vm2490 = vmor %vm2488, %vm2489
        %v2491 = vsel %vm2490, %v2483, %v2487
        %v2492 = vand.u32 2147483647, %v2465
        %vm2493 = vcmp.eq.f32.partialorder %v2492, 8.507059e+37
        %v2494 = vand.u32 %v2465, 2147483648
        %v2495 = vor.u32 1.1754944e-38, %v2494
        %v2496 = vsel %vm2493, %v2495, %v2491
        %v2497 = vmul.f32 1.0, %v2496
        %v2498 = vrcp.pop %v2466
        %v2499 = vmul.f32 %v2466, %v2498
        %v2500 = vsub.f32 1.0, %v2499
        %v2501 = vmul.f32 %v2498, %v2500
        %v2502 = vadd.f32 %v2498, %v2501
        %vm2503 = vweird.f32 %v2466
        %vm2504 = vweird.f32 %v2498
        %vm2505 = vmor %vm2503, %vm2504
        %v2506 = vsel %vm2505, %v2498, %v2502
        %v2507 = vand.u32 2147483647, %v2466
        %vm2508 = vcmp.eq.f32.partialorder %v2507, 8.507059e+37
        %v2509 = vand.u32 %v2466, 2147483648
        %v2510 = vor.u32 1.1754944e-38, %v2509
        %v2511 = vsel %vm2508, %v2510, %v2506
        %v2512 = vmul.f32 1.0, %v2511
        %v2513 = vrcp.pop %v2467
        %v2514 = vmul.f32 %v2467, %v2513
        %v2515 = vsub.f32 1.0, %v2514
        %v2516 = vmul.f32 %v2513, %v2515
        %v2517 = vadd.f32 %v2513, %v2516
        %vm2518 = vweird.f32 %v2467
        %vm2519 = vweird.f32 %v2513
        %vm2520 = vmor %vm2518, %vm2519
        %v2521 = vsel %vm2520, %v2513, %v2517
        %v2522 = vand.u32 2147483647, %v2467
        %vm2523 = vcmp.eq.f32.partialorder %v2522, 8.507059e+37
        %v2524 = vand.u32 %v2467, 2147483648
        %v2525 = vor.u32 1.1754944e-38, %v2524
        %v2526 = vsel %vm2523, %v2525, %v2521
        %v2527 = vmul.f32 1.0, %v2526
        %v2528 = vmul.f32 %v2482, 1.0614054
        %v2529 = vmul.f32 %v2497, 1.0614054
        %v2530 = vmul.f32 %v2512, 1.0614054
        %v2531 = vmul.f32 %v2527, 1.0614054
        %v2532 = vadd.f32 %v2528, -1.4531521
        %v2533 = vadd.f32 %v2529, -1.4531521
        %v2534 = vadd.f32 %v2530, -1.4531521
        %v2535 = vadd.f32 %v2531, -1.4531521
        %v2536 = vmul.f32 %v2482, %v2532
        %v2537 = vmul.f32 %v2497, %v2533
        %v2538 = vmul.f32 %v2512, %v2534
        %v2539 = vmul.f32 %v2527, %v2535
        %v2540 = vadd.f32 %v2536, 1.4214138
        %v2541 = vadd.f32 %v2537, 1.4214138
        %v2542 = vadd.f32 %v2538, 1.4214138
        %v2543 = vadd.f32 %v2539, 1.4214138
        %v2544 = vmul.f32 %v2482, %v2540
        %v2545 = vmul.f32 %v2497, %v2541
        %v2546 = vmul.f32 %v2512, %v2542
        %v2547 = vmul.f32 %v2527, %v2543
        %v2548 = vadd.f32 %v2544, -0.28449672
        %v2549 = vadd.f32 %v2545, -0.28449672
        %v2550 = vadd.f32 %v2546, -0.28449672
        %v2551 = vadd.f32 %v2547, -0.28449672
        %v2552 = vmul.f32 %v2482, %v2548
        %v2553 = vmul.f32 %v2497, %v2549
        %v2554 = vmul.f32 %v2512, %v2550
        %v2555 = vmul.f32 %v2527, %v2551
        %v2556 = vadd.f32 %v2552, 0.2548296
        %v2557 = vadd.f32 %v2553, 0.2548296
        %v2558 = vadd.f32 %v2554, 0.2548296
        %v2559 = vadd.f32 %v2555, 0.2548296
        %v2560 = vmul.f32 %v2482, %v2556
        %v2561 = vmul.f32 %v2497, %v2557
        %v2562 = vmul.f32 %v2512, %v2558
        %v2563 = vmul.f32 %v2527, %v2559
        %v2564 = vsub.f32 0.0, %v2452
        %v2565 = vsub.f32 0.0, %v2453
        %v2566 = vsub.f32 0.0, %v2454
        %v2567 = vsub.f32 0.0, %v2455
        %v2568 = vmul.f32 %v2564, %v2452
        %v2569 = vmul.f32 %v2565, %v2453
        %v2570 = vmul.f32 %v2566, %v2454
        %v2571 = vmul.f32 %v2567, %v2455
        %v2572 = vmul.f32 %v2568, 1.442695
        %v2573 = vpow.pop %v2572
        %v2574 = vmul.f32 %v2569, 1.442695
        %v2575 = vpow.pop %v2574
        %v2576 = vmul.f32 %v2570, 1.442695
        %v2577 = vpow.pop %v2576
        %v2578 = vmul.f32 %v2571, 1.442695
        %v2579 = vpow.pop %v2578
        %v2580 = vmul.f32 %v2560, %v2573
        %v2581 = vmul.f32 %v2561, %v2575
        %v2582 = vmul.f32 %v2562, %v2577
        %v2583 = vmul.f32 %v2563, %v2579
        %v2584 = vsub.f32 1.0, %v2580
        %v2585 = vsub.f32 1.0, %v2581
        %v2586 = vsub.f32 1.0, %v2582
        %v2587 = vsub.f32 1.0, %v2583
        %vm2588 = vcmp.ge.f32.partialorder %v2452, 0.0
        %vm2589 = vcmp.ge.f32.partialorder %v2453, 0.0
        %vm2590 = vcmp.ge.f32.partialorder %v2454, 0.0
        %vm2591 = vcmp.ge.f32.partialorder %v2455, 0.0
        %v2592 = vsub.f32 0.0, %v2584
        %v2593 = vsub.f32 0.0, %v2585
        %v2594 = vsub.f32 0.0, %v2586
        %v2595 = vsub.f32 0.0, %v2587
        %v2596 = vsel %vm2588, %v2584, %v2592
        %v2597 = vsel %vm2589, %v2585, %v2593
        %v2598 = vsel %vm2590, %v2586, %v2594
        %v2599 = vsel %vm2591, %v2587, %v2595
        %v2600 = vadd.f32 %v2596, 1.0
        %v2601 = vadd.f32 %v2597, 1.0
        %v2602 = vadd.f32 %v2598, 1.0
        %v2603 = vadd.f32 %v2599, 1.0
        %v2604 = vmul.f32 %v2448, %v2600
        %v2605 = vmul.f32 %v2449, %v2601
        %v2606 = vmul.f32 %v2450, %v2602
        %v2607 = vmul.f32 %v2451, %v2603
        %v2608 = vpack.c.bf16 %v2606, %v2604
        %v2609 = vpack.c.bf16 %v2607, %v2605
        %2610 = vmatpush.bf16.msra.mxu0 %v1695
        %2611 = vmatpush.bf16.msra.mxu0 %v1694
        %2612 = vmatpush.bf16.msra.mxu0 %v1693
        %2613 = vmatpush.bf16.msra.mxu0 %v1692
        %2614 = vmatpush.bf16.msra.mxu0 %v1691
        %2615 = vmatpush.bf16.msra.mxu0 %v1690
        %2616 = vmatpush.bf16.msra.mxu0 %v1689
        %2617 = vmatpush.bf16.msra.mxu0 %v1688
        %2618 = vmatmul.bf16.gmra.mxu0 %v2608
        %v2619 = vpop.f32.mrf.mxu0
        %v2620 = vadd.f32 %v1622, %v2619
        %v2621 = vpop.f32.mrf.mxu0
        %v2622 = vadd.f32 %v1622, %v2621
        %2623 = vdwg.mxu0
        %2624 = vmatpush.bf16.msra.mxu0 %v1703
        %2625 = vmatpush.bf16.msra.mxu0 %v1702
        %2626 = vmatpush.bf16.msra.mxu0 %v1701
        %2627 = vmatpush.bf16.msra.mxu0 %v1700
        %2628 = vmatpush.bf16.msra.mxu0 %v1699
        %2629 = vmatpush.bf16.msra.mxu0 %v1698
        %2630 = vmatpush.bf16.msra.mxu0 %v1697
        %2631 = vmatpush.bf16.msra.mxu0 %v1696
        %2632 = vmatmul.bf16.gmra.mxu0 %v2609
        %v2633 = vpop.f32.mrf.mxu0
        %v2634 = vadd.f32 %v2620, %v2633
        %v2635 = vpop.f32.mrf.mxu0
        %v2636 = vadd.f32 %v2622, %v2635
        %2637 = vdwg.mxu0
        %v2638 = vadd.f32 %v2634, %v2414
        %v2639 = vadd.f32 %v2636, %v2415
        %v2640 = vsel %vm786, %v2638, 0.0
        %2641 = vadd.xlane.f32.xlu0 %v2640
        %v2642 = vpop.xlane.xlu0 %2641
        %v2643 = vsel %vm1323, %v2639, 0.0
        %2644 = vadd.xlane.f32.xlu0 %v2643
        %v2645 = vpop.xlane.xlu0 %2644
        %v2646 = vmul.f32 %v2642, %v1333
        %v2647 = vmul.f32 %v2645, %v1333
        %v2648 = vsub.f32 %v2638, %v2646
        %v2649 = vsub.f32 %v2639, %v2647
        %v2650 = vmul.f32 %v2648, %v2648
        %v2651 = vmul.f32 %v2649, %v2649
        %v2652 = vsel %vm786, %v2650, 0.0
        %2653 = vadd.xlane.f32.xlu0 %v2652
        %v2654 = vpop.xlane.xlu0 %2653
        %v2655 = vsel %vm1323, %v2651, 0.0
        %2656 = vadd.xlane.f32.xlu0 %v2655
        %v2657 = vpop.xlane.xlu0 %2656
        %v2658 = vmul.f32 %v2654, %v1333
        %v2659 = vmul.f32 %v2657, %v1333
        %v2660 = vadd.f32 %v2658, 1e-12
        %v2661 = vadd.f32 %v2659, 1e-12
        %v2662 = vrsqrt.pop %v2660
        %v2663 = vmul.f32 %v2662, %v2660
        %v2664 = vmul.f32 %v2663, %v2662
        %v2665 = vmul.f32 0.5, %v2664
        %v2666 = vsub.f32 1.5, %v2665
        %v2667 = vmul.f32 %v2662, %v2666
        %vm2668 = vweird.f32 %v2660
        %vm2669 = vweird.f32 %v2662
        %vm2670 = vmor %vm2668, %vm2669
        %v2671 = vsel %vm2670, %v2662, %v2667
        %v2672 = vrsqrt.pop %v2661
        %v2673 = vmul.f32 %v2672, %v2661
        %v2674 = vmul.f32 %v2673, %v2672
        %v2675 = vmul.f32 0.5, %v2674
        %v2676 = vsub.f32 1.5, %v2675
        %v2677 = vmul.f32 %v2672, %v2676
        %vm2678 = vweird.f32 %v2661
        %vm2679 = vweird.f32 %v2672
        %vm2680 = vmor %vm2678, %vm2679
        %v2681 = vsel %vm2680, %v2672, %v2677
        %v2682 = vmul.f32 %v2648, %v2671
        %v2683 = vmul.f32 %v2649, %v2681
        %v2684 = vmul.f32 %v2682, %v1795
        %v2685 = vmul.f32 %v2683, %v1795
        %v2686 = vadd.f32 %v2684, %v1800
        %v2687 = vadd.f32 %v2685, %v1800
        %2688 = vst.msk [vmem:[%s1862] sm:$0xff] %vm786, %v2686
        %2689 = vst.msk [vmem:[%s1862 + $0x8] sm:$0x1] %vm1323, %v2687
        // Predicated region
        $region89: #{_lambda_.3} parent=79 // pred_check
          %p2690 = pneg %p1806
        $region90: #{_lambda_.3} parent=79 // pred_check_branch
          %2692 = sbr.rel (%p2690) target = $region92
        $region91: #{_lambda_.3} parent=79 // pred_region
          %v2693 = vpack.c.bf16 %v2687, %v2687
          %v2694 = vld [vmem:[%s13] sm:$0xf]
          %v2695 = vld [vmem:[%s13 + $0x4] sm:$0xf]
          %v2696 = vld [vmem:[%s13 + $0x8] sm:$0xf]
          %v2697 = vld [vmem:[%s13 + $0xc] sm:$0xf]
          %v2698 = vld [vmem:[%s13 + $0x10] sm:$0xf]
          %v2699 = vld [vmem:[%s13 + $0x14] sm:$0xf]
          %v2700 = vld [vmem:[%s13 + $0x18] sm:$0xf]
          %v2701 = vld [vmem:[%s13 + $0x1c] sm:$0xf]
          %v2702 = vld [vmem:[%s14] sm:$0x1]
          %v2711 = vunpack.c.l.b16 %v2694
          %v2712 = vunpack.c.l.b16 %v2695
          %v2713 = vunpack.c.l.b16 %v2696
          %v2714 = vunpack.c.l.b16 %v2697
          %v2715 = vunpack.c.l.b16 %v2698
          %v2716 = vunpack.c.l.b16 %v2699
          %v2717 = vunpack.c.l.b16 %v2700
          %v2718 = vunpack.c.l.b16 %v2701
          %v2719 = vpack.c.b16 %v2712, %v2711
          %v2720 = vpack.c.b16 %v2714, %v2713
          %v2721 = vpack.c.b16 %v2716, %v2715
          %v2722 = vpack.c.b16 %v2718, %v2717
          %v2728 = vsel %vm786, %v2693, 0
          %2730 = vmatpush.bf16.msra.mxu0 0
          %2731 = vmatpush.bf16.msra.mxu0 0
          %2732 = vmatpush.bf16.msra.mxu0 0
          %2733 = vmatpush.bf16.msra.mxu0 0
          %2734 = vmatpush.bf16.msra.mxu0 %v2722
          %2735 = vmatpush.bf16.msra.mxu0 %v2721
          %2736 = vmatpush.bf16.msra.mxu0 %v2720
          %2737 = vmatpush.bf16.msra.mxu0 %v2719
          %2738 = vmatmul.bf16.gmra.mxu0 %v2728
          %v2739 = vpop.f32.mrf.mxu0
          %v2740 = vadd.f32 %v2702, %v2739
          %v2741 = vpop.f32.mrf.mxu0
          %2742 = vdwg.mxu0
          %s2743 = scalar_lea.vmem [#allocation3], 1
          %vm2744 = vcmask 16384
          %2745 = vst.msk [vmem:[%s2743] sm:$0x1] %vm2744, %v2740
        $region92: #{_lambda_.3} parent=79 // pred_fallthru
          _
        // Predicated region
        $region93: #{_lambda_.3} parent=79 // pred_check
          %p2746 = pneg %p415
        $region94: #{_lambda_.3} parent=79 // pred_check_branch
          %2748 = sbr.rel (%p2746) target = $region96
        $region95: #{_lambda_.3} parent=79 // pred_region
          %2750 = vsyncadd [#allocation4], 0
          %s2751 = sshll.u32 [#allocation3], 4
          %s2752 = int_to_ptr.vmem [resolvable:$true] %s2751
          %s2753 = sshll.u32 %s15, 4
          %s2754 = int_to_ptr.hbm [resolvable:$true] %s2753
          %2759 = dma.vmem_to_hbm [thread:$0]  %s2752, 32, %s2754, [#allocation4], 16, 16, 1
        $region96: #{_lambda_.3} parent=79 // pred_fallthru
          _
        // Predicated region
        $region97: #{_lambda_.3} parent=79 // pred_check
          %p2760 = pneg %p415
        $region98: #{_lambda_.3} parent=79 // pred_check_branch
          %2762 = sbr.rel (%p2760) target = $region100
        $region99: #{_lambda_.3} parent=79 // pred_region
          %2764 = dma.done [#allocation4], 32
        $region100: #{_lambda_.3} parent=79 // pred_fallthru
          _
      $region80: #{_lambda_.3} parent=5 // pred_fallthru
        _
      %p2765 = scmp.le.s32.totalorder 2, %s22
      // Predicated region
      $region101: #{_lambda_.3} parent=5 // pred_check
        %p2766 = pneg %p2765
      $region102: #{_lambda_.3} parent=5 // pred_check_branch
        %2768 = sbr.rel (%p2766) target = $region104
      $region103: #{_lambda_.3} parent=5 // pred_region
        %s2769 = ssub.s32 %s22, 2
      $region104: #{_lambda_.3} parent=5 // pred_fallthru
        _
    $region6: #{_lambda_.3} parent=1 // loop_footer
      %s26 = sadd.s32 1, %s22
    $region7: #{_lambda_.3} parent=1 // loop_footer_branch
      %21 = sbr.rel target = $region3
    $region8: #{_lambda_.3} parent=1 // loop_exit
      _
    %2770 = vsyncpa [#allocation4], 1
    %s2771 = scalar_lea.sflag [#allocation4], 1
    %2772 = vsyncpa %s2771, 1

</llo_original>
